<compile_context>
chip_gen: v7x
topology: tpu7x:2x2x1
jax: 0.10.0
libtpu: 0.0.40
codegen_flags: <defaults>
</compile_context>

<pallas_src>
import functools

import jax
import jax.numpy as jnp
from jax.experimental import pallas as pl
from jax.experimental.pallas import tpu as pltpu


def _round_up(x: int, m: int) -> int:
    return ((x + m - 1) // m) * m


def _tpu_vmem_capacity_bytes() -> int:
    """Best-effort VMEM capacity probe; conservative (v7x-safe) fallback."""
    try:
        info = pltpu.get_tpu_info()
        for name in ("vmem_capacity_bytes", "vmem_size_bytes", "vmem_bytes"):
            v = getattr(info, name, None)
            if isinstance(v, int) and v > 0:
                return v
    except Exception:
        pass
    return 64 * 1024 * 1024


# ------------------------------ kernel bodies --------------------------------

def _mm_kernel_single(lhs_ref, rhs_ref, out_ref, *, precision):
    # Whole K resident in VMEM: one MXU pass per output block, no K loop.
    out_ref[...] = jnp.dot(
        lhs_ref[...], rhs_ref[...],
        preferred_element_type=jnp.float32, precision=precision,
    ).astype(out_ref.dtype)


def _mm_kernel_acc_in_out(lhs_ref, rhs_ref, out_ref, *, precision):
    # f32 output: accumulate directly into the VMEM-resident output block.
    # First K step writes directly (saves a zero store + a read-modify-write).
    k = pl.program_id(2)
    part = jnp.dot(lhs_ref[...], rhs_ref[...],
                   preferred_element_type=jnp.float32, precision=precision)

    @pl.when(k == 0)
    def _():
        out_ref[...] = part

    @pl.when(k > 0)
    def _():
        out_ref[...] += part


def _mm_kernel_acc_scratch(lhs_ref, rhs_ref, out_ref, acc_ref, *, precision):
    # Narrow output dtype: f32 accumulator in scratch, cast once in epilogue.
    k = pl.program_id(2)
    part = jnp.dot(lhs_ref[...], rhs_ref[...],
                   preferred_element_type=jnp.float32, precision=precision)

    @pl.when(k == 0)
    def _():
        acc_ref[...] = part

    @pl.when(k > 0)
    def _():
        acc_ref[...] += part

    @pl.when(k == pl.num_programs(2) - 1)
    def _():
        out_ref[...] = acc_ref[...].astype(out_ref.dtype)


# ------------------------------ tile selection --------------------------------

def _choose_mn_tile(dim: int, max_tile: int, align: int) -> int:
    """Tile for a non-padded (ragged-edge) dim: the full dim if it fits in one
    block, else an `align`-multiple <= max_tile chosen so the last ragged block
    wastes as little MXU work as possible (same block count as max_tile)."""
    if dim <= max_tile:
        return dim                       # single block == full dim (always legal)
    n_blocks = pl.cdiv(dim, max_tile)
    return min(max_tile, _round_up(pl.cdiv(dim, n_blocks), align))


def _choose_k_tile(K: int, tk_max: int):
    """(tile, padded_K) for the zero-padded K dim.  Picks the 128-multiple
    (>= 256, to keep per-step MXU work meaningful) minimising padding,
    preferring larger tiles on ties (fewer grid steps)."""
    if K <= tk_max:
        return K, K                      # single K step, no padding at all
    best_t, best_pad = tk_max, _round_up(K, tk_max)
    t = tk_max - 128
    while t >= 256:
        pad = _round_up(K, t)
        if pad < best_pad:
            best_t, best_pad = t, pad
        t -= 128
    return best_t, best_pad


# --------------------------------- wrapper ------------------------------------

def mm(lhs: jax.Array, rhs: jax.Array, *, tm: int | None = None,
       tn: int | None = None, tk: int | None = None,
       precision=jax.lax.Precision.HIGHEST) -> jax.Array:
    """Pallas TPU equivalent of torch.mm(lhs, rhs) for 2-D floating inputs."""
    M, K = lhs.shape
    K2, N = rhs.shape
    assert K == K2, "inner dimensions must match"
    if not (jnp.issubdtype(lhs.dtype, jnp.floating)
            and jnp.issubdtype(rhs.dtype, jnp.floating)):
        # TODO(synk): integer torch.mm accumulates in int; the TPU MXU (v7x) has
        # no integer mode, so an exact integer path is not provided here.
        raise NotImplementedError("mm(): only floating-point inputs are supported")

    out_dtype = jnp.result_type(lhs.dtype, rhs.dtype)
    out_itemsize = jnp.dtype(out_dtype).itemsize
    lhs_bytes = M * K * lhs.dtype.itemsize
    rhs_bytes = K * N * rhs.dtype.itemsize
    out_bytes = M * N * out_itemsize

    # Generation-aware limits / tiles.
    big_vmem = _tpu_vmem_capacity_bytes() >= 100 * 1024 * 1024   # v5e / v6e
    if big_vmem:
        vmem_limit = 100 * 1024 * 1024
        single_shot_bytes = 20 * 1024 * 1024
        tm_max, tn_max, tk_max = 1024, 1024, 512
        if lhs.dtype.itemsize <= 2 and rhs.dtype.itemsize <= 2:
            tk_max = 1024        # bf16 on v5e: bigger K step keeps MXU binding
    else:                        # v7x (64 MiB VMEM) or unknown: stay conservative
        vmem_limit = 44 * 1024 * 1024
        single_shot_bytes = 8 * 1024 * 1024
        tm_max, tn_max, tk_max = 512, 512, 512
    tm_max = tm or tm_max
    tn_max = tn or tn_max
    tk_max = tk or tk_max

    # ------------- single-shot path: whole K resident, grid only over M -------------
    acc_bytes = M * N * 4 if out_dtype != jnp.float32 else 0
    if lhs_bytes + rhs_bytes + out_bytes + acc_bytes <= single_shot_bytes:
        # Split M into 2 parallel blocks so both v7x TensorCores get work
        # (negligible overhead on single-core v5e/v6e).
        bm = _round_up(pl.cdiv(M, 2), 8) if M >= 16 else M
        grid_m = pl.cdiv(M, bm)
        cost = pl.CostEstimate(flops=2 * M * N * K, transcendentals=0,
                               bytes_accessed=lhs_bytes + rhs_bytes + out_bytes)
        return pl.pallas_call(
            functools.partial(_mm_kernel_single, precision=precision),
            out_shape=jax.ShapeDtypeStruct((M, N), out_dtype),
            grid_spec=pltpu.PrefetchScalarGridSpec(
                num_scalar_prefetch=0,
                grid=(grid_m,),
                in_specs=[pl.BlockSpec((bm, K), lambda i: (i, 0)),
                          pl.BlockSpec((K, N), lambda i: (0, 0))],
                out_specs=pl.BlockSpec((bm, N), lambda i: (i, 0)),
            ),
            compiler_params=pltpu.CompilerParams(
                dimension_semantics=("parallel",),
                vmem_limit_bytes=vmem_limit),
            cost_estimate=cost,
        )(lhs, rhs)

    # ------------------------------- tiled path -------------------------------
    tm_ = _choose_mn_tile(M, tm_max, 8)     # sublane-aligned: minimal ragged waste
    tn_ = _choose_mn_tile(N, tn_max, 128)   # lane/MXU-aligned: unmasked stores
    tk_, Kp = _choose_k_tile(K, tk_max)

    # Guarantee >= 2 parallel output blocks (v7x has 2 TensorCores per chip).
    if pl.cdiv(M, tm_) * pl.cdiv(N, tn_) == 1 and M >= 16:
        tm_ = _round_up(pl.cdiv(M, 2), 8)

    grid_m, grid_n, grid_k = pl.cdiv(M, tm_), pl.cdiv(N, tn_), Kp // tk_

    # Only K is zero-padded (garbage along K would corrupt valid outputs);
    # ragged M / N edge blocks are handled by Pallas partial-block masking.
    if Kp != K:
        lhs = jnp.pad(lhs, ((0, 0), (0, Kp - K)))
        rhs = jnp.pad(rhs, ((0, Kp - K), (0, 0)))

    if out_dtype == jnp.float32:
        kernel = functools.partial(_mm_kernel_acc_in_out, precision=precision)
        scratch_shapes = []
    else:
        kernel = functools.partial(_mm_kernel_acc_scratch, precision=precision)
        scratch_shapes = [pltpu.VMEM((tm_, tn_), jnp.float32)]

    cost = pl.CostEstimate(
        flops=2 * M * N * K, transcendentals=0,
        bytes_accessed=lhs_bytes * grid_n + rhs_bytes * grid_m + out_bytes)

    return pl.pallas_call(
        kernel,
        out_shape=jax.ShapeDtypeStruct((M, N), out_dtype),
        grid_spec=pltpu.PrefetchScalarGridSpec(
            num_scalar_prefetch=0,
            grid=(grid_m, grid_n, grid_k),
            in_specs=[pl.BlockSpec((tm_, tk_), lambda i, j, k: (i, k)),
                      pl.BlockSpec((tk_, tn_), lambda i, j, k: (k, j))],
            out_specs=pl.BlockSpec((tm_, tn_), lambda i, j, k: (i, j)),
            scratch_shapes=scratch_shapes),
        compiler_params=pltpu.CompilerParams(
            dimension_semantics=("parallel", "parallel", "arbitrary"),
            vmem_limit_bytes=vmem_limit),
        cost_estimate=cost,
    )(lhs, rhs)


if __name__ == "__main__":
    key = jax.random.PRNGKey(0)
    k0, k1, k2, k3 = jax.random.split(key, 4)

    # Case 1: small, spec-sized problem -> single-shot path (2 parallel M blocks).
    M, K, N = 256, 384, 128
    lhs = jax.random.normal(k0, (M, K), dtype=jnp.float32)
    rhs = jax.random.normal(k1, (K, N), dtype=jnp.float32)
    out = mm(lhs, rhs)
    jax.block_until_ready(out)
    ref = jnp.dot(lhs, rhs, precision=jax.lax.Precision.HIGHEST)
    assert out.shape == (M, N) and out.dtype == ref.dtype
    assert jnp.allclose(out, ref, atol=1e-3, rtol=1e-3)

    # Case 2: larger, non-tile-aligned problem -> tiled path with ragged M/N
    # edge blocks (no M/N padding) and a minimally zero-padded K.
    M2, K2, N2 = 1500, 1300, 1500
    lhs2 = jax.random.normal(k2, (M2, K2), dtype=jnp.float32)
    rhs2 = jax.random.normal(k3, (K2, N2), dtype=jnp.float32)
    out2 = mm(lhs2, rhs2)
    jax.block_until_ready(out2)
    ref2 = jnp.dot(lhs2, rhs2, precision=jax.lax.Precision.HIGHEST)
    assert out2.shape == (M2, N2) and out2.dtype == ref2.dtype
    assert jnp.allclose(out2, ref2, atol=2e-2, rtol=2e-2)

    print("KERNEL_OK")
</pallas_src>

<mosaic_0001>
module attributes {stable_mosaic.version = 11 : i64} {
  func.func @_mm_kernel_single(%arg0: i32, %arg1: memref<128x384xf32, #tpu.memory_space<vmem>>, %arg2: memref<384x128xf32, #tpu.memory_space<vmem>>, %arg3: memref<128x128xf32, #tpu.memory_space<vmem>>) attributes {dimension_semantics = [#tpu.dimension_semantics<parallel>], iteration_bounds = array<i64: 2>, scalar_prefetch = 0 : i64, scratch_operands = 0 : i64, tpu.core_type = #tpu.core_type<tc>, window_params = [{transform_indices = @transform_0, window_bounds = array<i64: 128, 384>}, {pipeline_mode = #tpu.pipeline_mode<synchronous>, transform_indices = @transform_1, window_bounds = array<i64: 384, 128>}, {transform_indices = @transform_2, window_bounds = array<i64: 128, 128>}]} {
    %c0 = arith.constant 0 : index
    %c0_0 = arith.constant 0 : index
    %0 = vector.load %arg1[%c0, %c0_0] : memref<128x384xf32, #tpu.memory_space<vmem>>, vector<128x384xf32>
    %c0_1 = arith.constant 0 : index
    %c0_2 = arith.constant 0 : index
    %1 = vector.load %arg2[%c0_1, %c0_2] : memref<384x128xf32, #tpu.memory_space<vmem>>, vector<384x128xf32>
    %cst = arith.constant dense<0.000000e+00> : vector<128x128xf32>
    %2 = tpu.matmul %0, %1, %cst {dimension_numbers = #tpu.dot_dimension_numbers<[1], [0], [0], [1], [0, 0, 1, 1], [], []>, precision = #tpu.contract_precision<fp32>} : vector<128x384xf32>, vector<384x128xf32>, vector<128x128xf32> -> vector<128x128xf32>
    %c0_3 = arith.constant 0 : index
    %c0_4 = arith.constant 0 : index
    %3 = vector.load %arg3[%c0_3, %c0_4] : memref<128x128xf32, #tpu.memory_space<vmem>>, vector<128x128xf32>
    tpu.vector_store %arg3[%c0_3, %c0_4], %2 {strides = array<i32>} : memref<128x128xf32, #tpu.memory_space<vmem>>, vector<128x128xf32>,
    return
  }
  func.func @transform_0(%arg0: i32) -> (i32, i32) {
    %c0_i32 = arith.constant 0 : i32
    %c0_i32_0 = arith.constant 0 : i32
    return %arg0, %c0_i32 : i32, i32
  }
  func.func @transform_1(%arg0: i32) -> (i32, i32) {
    %c0_i32 = arith.constant 0 : i32
    %c0_i32_0 = arith.constant 0 : i32
    %c0_i32_1 = arith.constant 0 : i32
    return %c0_i32, %c0_i32_0 : i32, i32
  }
  func.func @transform_2(%arg0: i32) -> (i32, i32) {
    %c0_i32 = arith.constant 0 : i32
    %c0_i32_0 = arith.constant 0 : i32
    return %arg0, %c0_i32 : i32, i32
  }
}

</mosaic_0001>

<llo_original>
// kernel: tpu_custom_call.1
$region0: #{tpu_custom_call.1}
  #allocation0 [shape = 'u32[]', space=smem, size = 0x4, offset = 0x4, fixed_abs, tag = 'smem constant byte address 0x4 - core index']
  #allocation1 [shape = 'u32[144,128]{1,0:T(1,128)}', space=vmem, size = 0x12000, scoped, tag = 'internal scratch']
  %s0 = inlined_call_operand.hbm [shape: f32[256,384], index: 0, kind: input, shape index: {}]
  %s1 = inlined_call_operand.hbm [shape: f32[384,128], index: 1, kind: input, shape index: {}]
  %s2 = inlined_call_operand.hbm [shape: f32[256,128], index: 2, kind: output, shape index: {}]
  %s3 = sld [smem:[#allocation0]]
  $region49: #{tpu_custom_call.1} parent=0
    _
  %s5 = ssub.s32 1, %s3
  %s6 = scalar_select 0, %s5, %s3
  $region1: #{tpu_custom_call.1} parent=0
    #allocation2 [shape = 'u8[393216]{0}', space=vmem, size = 0x60000, scoped, tag = 'input window, operand 0']
    #allocation3 [shape = 's32[2]{0}', space=sflag, size = 0x8, scoped, tag = 'scoped memory for tpu_custom_call.1']
    #allocation4 [shape = 's32[2]{0}', space=sflag, size = 0x8, scoped, tag = 'scoped memory for tpu_custom_call.1']
    #allocation5 [shape = 'u8[196608]{0}', space=vmem, size = 0x30000, scoped, tag = 'input window, operand 1, single buffered']
    #allocation6 [shape = 's32[1]{0}', space=sflag, size = 0x4, scoped, tag = 'scoped memory for tpu_custom_call.1']
    #allocation7 [shape = 'u8[131072]{0}', space=vmem, size = 0x20000, scoped, tag = 'output window, operand 0']
    %7 = vsyncpa [#allocation3], 0
    %s8 = scalar_lea.sflag [#allocation3], 1
    %9 = vsyncpa %s8, 0
    %10 = vsyncpa [#allocation6], 0
    %11 = vsyncpa [#allocation4], 0
    %s12 = scalar_lea.sflag [#allocation4], 1
    %13 = vsyncpa %s12, 0
    loop: start=0, step=1, limit=4
    $region2: #{tpu_custom_call.1} parent=1 // loop_pre_header
      _
    $region3: #{tpu_custom_call.1} parent=1 // loop_header
      %s15 = sphi 0, %s19
      %p16 = scmp.ge.s32.totalorder %s15, 4
      %s25 = sphi 0, %s27
      %s28 = sphi 0, %s25
      %s29 = sphi 0, %s28
      %s45 = sphi 0, %s29
      %s49 = sphi 0, %s49
      %s51 = sphi 0, %s49
      %s52 = sphi 0, %s51
      %s66 = sphi 0, %s52
      %s72 = sphi 0, %s74
      %s75 = sphi 0, %s72
      %s76 = sphi 0, %s75
      %s92 = sphi 0, %s76
    $region4: #{tpu_custom_call.1} parent=1 // loop_header_branch
      %18 = sbr.rel (%p16) target = $region8
    $region5: #{tpu_custom_call.1} parent=1 // loop_body
      %s20 = ssub.s32 %s15, 1
      %s21 = ssub.s32 %s15, 2
      %s22 = sadd.s32 %s15, 1
      %s23 = ssub.s32 %s15, %s22
      %p24 = scmp.eq.s32.totalorder %s23, 0
      %s26 = sadd.s32 %s25, 1
      %s27 = scalar_select %p24, %s25, %s26
      %p30 = pneg %p24
      %p31 = scmp.eq.s32.totalorder %s15, 1
      %p32 = por %p30, %p31
      %p33 = scmp.ne.s32.totalorder %s25, %s28
      %p34 = scmp.eq.s32.totalorder %s15, 0
      %p35 = por %p33, %p34
      %p36 = scmp.ne.s32.totalorder %s25, %s28
      %p37 = scmp.eq.s32.totalorder %s20, 1
      %p38 = por %p36, %p37
      %p39 = scmp.ne.s32.totalorder %s28, %s29
      %p40 = scmp.eq.s32.totalorder %s20, 0
      %p41 = por %p39, %p40
      %p42 = scmp.ne.s32.totalorder %s28, %s29
      %p43 = scmp.eq.s32.totalorder %s21, 1
      %p44 = por %p42, %p43
      %p46 = scmp.ne.s32.totalorder %s29, %s45
      %p47 = scmp.eq.s32.totalorder %s21, 0
      %p48 = por %p46, %p47
      %s50 = sadd.s32 %s49, 1
      %p53 = scmp.eq.s32.totalorder %s15, 1
      %p54 = scmp.ne.s32.totalorder %s49, %s51
      %p55 = scmp.eq.s32.totalorder %s15, 0
      %p56 = por %p54, %p55
      %p57 = scmp.ne.s32.totalorder %s49, %s51
      %p58 = scmp.eq.s32.totalorder %s20, 1
      %p59 = por %p57, %p58
      %p60 = scmp.ne.s32.totalorder %s51, %s52
      %p61 = scmp.eq.s32.totalorder %s20, 0
      %p62 = por %p60, %p61
      %p63 = scmp.ne.s32.totalorder %s51, %s52
      %p64 = scmp.eq.s32.totalorder %s21, 1
      %p65 = por %p63, %p64
      %p67 = scmp.ne.s32.totalorder %s52, %s66
      %p68 = scmp.eq.s32.totalorder %s21, 0
      %p69 = por %p67, %p68
      %s70 = ssub.s32 %s15, %s22
      %p71 = scmp.eq.s32.totalorder %s70, 0
      %s73 = sadd.s32 %s72, 1
      %s74 = scalar_select %p71, %s72, %s73
      %p77 = pneg %p71
      %p78 = scmp.eq.s32.totalorder %s15, 1
      %p79 = por %p77, %p78
      %p80 = scmp.ne.s32.totalorder %s72, %s75
      %p81 = scmp.eq.s32.totalorder %s15, 0
      %p82 = por %p80, %p81
      %p83 = scmp.ne.s32.totalorder %s72, %s75
      %p84 = scmp.eq.s32.totalorder %s20, 1
      %p85 = por %p83, %p84
      %p86 = scmp.ne.s32.totalorder %s75, %s76
      %p87 = scmp.eq.s32.totalorder %s20, 0
      %p88 = por %p86, %p87
      %p89 = scmp.ne.s32.totalorder %s75, %s76
      %p90 = scmp.eq.s32.totalorder %s21, 1
      %p91 = por %p89, %p90
      %p93 = scmp.ne.s32.totalorder %s76, %s92
      %p94 = scmp.eq.s32.totalorder %s21, 0
      %p95 = por %p93, %p94
      %p96 = scmp.le.s32.totalorder 1, %s15
      %p97 = scmp.lt.s32.totalorder %s15, 3
      %p98 = pnand %p96, %p97
      %p99 = pneg %p98
      // Predicated region
      $region9: #{tpu_custom_call.1} parent=5 // pred_check
        _
      $region10: #{tpu_custom_call.1} parent=5 // pred_check_branch
        %101 = sbr.rel (%p98) target = $region12
      $region11: #{tpu_custom_call.1} parent=5 // pred_region
        %s102 = ssub.s32 %s15, 1
        // Predicated region
        $region13: #{tpu_custom_call.1} parent=11 // pred_check
          %p103 = pneg %p62
        $region14: #{tpu_custom_call.1} parent=11 // pred_check_branch
          %105 = sbr.rel (%p103) target = $region16
        $region15: #{tpu_custom_call.1} parent=11 // pred_region
          %s107 = ssub.s32 6144, 6144
          %108 = vsyncadd [#allocation6], %s107
          %s109 = sshll.u32 [#allocation5], 4
          %s110 = int_to_ptr.vmem [resolvable:$true] %s109
          %115 = dma.hbm_to_vmem [thread:$0]  %s1, 6144, %s110, [#allocation6], 128, 128, 8
        $region16: #{tpu_custom_call.1} parent=11 // pred_fallthru
          _
      $region12: #{tpu_custom_call.1} parent=5 // pred_fallthru
        _
      %p116 = scmp.lt.s32.totalorder %s15, 2
      // Predicated region
      $region17: #{tpu_custom_call.1} parent=5 // pred_check
        %p117 = pneg %p116
      $region18: #{tpu_custom_call.1} parent=5 // pred_check_branch
        %119 = sbr.rel (%p117) target = $region20
      $region19: #{tpu_custom_call.1} parent=5 // pred_region
        // Predicated region
        $region21: #{tpu_custom_call.1} parent=19 // pred_check
          %p120 = pneg %p35
        $region22: #{tpu_custom_call.1} parent=19 // pred_check_branch
          %122 = sbr.rel (%p120) target = $region24
        $region23: #{tpu_custom_call.1} parent=19 // pred_region
          %s123 = sand.u32 %s25, 1
          %s124 = scalar_lea.sflag [#allocation3], %s123
          %s125 = sand.u32 %s25, 1
          %s126 = smul.addr %s125, 384
          %s127 = scalar_lea.vmem [#allocation2], %s126
          %s128 = smul.u32 16, %s15
          %s130 = ssub.s32 6144, 6144
          %131 = vsyncadd %s124, %s130
          %s132 = smul.addr %s128, 3
          %s133 = smul.addr %s132, 128
          %s134 = scalar_lea.hbm %s0, %s133
          %s135 = sshll.u32 %s127, 4
          %s136 = int_to_ptr.vmem [resolvable:$true] %s135
          %141 = dma.hbm_to_vmem [thread:$0]  %s134, 6144, %s136, %s124, 384, 384, 24
        $region24: #{tpu_custom_call.1} parent=19 // pred_fallthru
          _
      $region20: #{tpu_custom_call.1} parent=5 // pred_fallthru
        _
      %p142 = scmp.le.s32.totalorder 1, %s15
      %p143 = scmp.lt.s32.totalorder %s15, 3
      %p144 = pnand %p142, %p143
      %p145 = pneg %p144
      // Predicated region
      $region25: #{tpu_custom_call.1} parent=5 // pred_check
        _
      $region26: #{tpu_custom_call.1} parent=5 // pred_check_branch
        %147 = sbr.rel (%p144) target = $region28
      $region27: #{tpu_custom_call.1} parent=5 // pred_region
        %s148 = ssub.s32 %s15, 1
        %s149 = sand.u32 %s28, 1
        %s150 = scalar_lea.sflag [#allocation3], %s149
        %s151 = sand.u32 %s28, 1
        %s152 = smul.addr %s151, 384
        %s153 = scalar_lea.vmem [#allocation2], %s152
        // Predicated region
        $region29: #{tpu_custom_call.1} parent=27 // pred_check
          %p154 = pneg %p41
        $region30: #{tpu_custom_call.1} parent=27 // pred_check_branch
          %156 = sbr.rel (%p154) target = $region32
        $region31: #{tpu_custom_call.1} parent=27 // pred_region
          %157 = dma.done %s150, 6144
        $region32: #{tpu_custom_call.1} parent=27 // pred_fallthru
          _
        // Predicated region
        $region33: #{tpu_custom_call.1} parent=27 // pred_check
          %p158 = pneg %p62
        $region34: #{tpu_custom_call.1} parent=27 // pred_check_branch
          %160 = sbr.rel (%p158) target = $region36
        $region35: #{tpu_custom_call.1} parent=27 // pred_region
          %161 = dma.done [#allocation6], 6144
        $region36: #{tpu_custom_call.1} parent=27 // pred_fallthru
          _
        %s162 = sand.u32 %s28, 1
        %s163 = scalar_lea.sflag [#allocation3], %s162
        %s164 = sand.u32 %s28, 1
        %s165 = smul.addr %s164, 384
        %s166 = scalar_lea.vmem [#allocation2], %s165
        %p167 = pneg %p41
        %p168 = pneg %p38
        %p169 = pneg %p62
        %p170 = pneg %p59
        %p171 = pneg %p88
        %p172 = pneg %p85
        %s173 = sand.u32 %s75, 1
        %s174 = scalar_lea.sflag [#allocation4], %s173
        %s175 = sand.u32 %s75, 1
        %s176 = smul.addr %s175, 128
        %s177 = scalar_lea.vmem [#allocation7], %s176
        %s178 = smul.u32 16, %s20
        %s179 = smul.u32 16, %s20
        %v180 = vld [vmem:[%s153] sm:$0xff]
        %v181 = vld [vmem:[%s153 + $0x8] sm:$0xff]
        %v182 = vld [vmem:[%s153 + $0x10] sm:$0xff]
        %v183 = vld [vmem:[%s153 + $0x18] sm:$0xff]
        %v184 = vld [vmem:[%s153 + $0x20] sm:$0xff]
        %v185 = vld [vmem:[%s153 + $0x28] sm:$0xff]
        %v186 = vld [vmem:[%s153 + $0x30] sm:$0xff]
        %v187 = vld [vmem:[%s153 + $0x38] sm:$0xff]
        %v188 = vld [vmem:[%s153 + $0x40] sm:$0xff]
        %v189 = vld [vmem:[%s153 + $0x48] sm:$0xff]
        %v190 = vld [vmem:[%s153 + $0x50] sm:$0xff]
        %v191 = vld [vmem:[%s153 + $0x58] sm:$0xff]
        %v192 = vld [vmem:[%s153 + $0x60] sm:$0xff]
        %v193 = vld [vmem:[%s153 + $0x68] sm:$0xff]
        %v194 = vld [vmem:[%s153 + $0x70] sm:$0xff]
        %v195 = vld [vmem:[%s153 + $0x78] sm:$0xff]
        %v196 = vld [vmem:[%s153 + $0x80] sm:$0xff]
        %v197 = vld [vmem:[%s153 + $0x88] sm:$0xff]
        %v198 = vld [vmem:[%s153 + $0x90] sm:$0xff]
        %v199 = vld [vmem:[%s153 + $0x98] sm:$0xff]
        %v200 = vld [vmem:[%s153 + $0xa0] sm:$0xff]
        %v201 = vld [vmem:[%s153 + $0xa8] sm:$0xff]
        %v202 = vld [vmem:[%s153 + $0xb0] sm:$0xff]
        %v203 = vld [vmem:[%s153 + $0xb8] sm:$0xff]
        %v204 = vld [vmem:[%s153 + $0xc0] sm:$0xff]
        %v205 = vld [vmem:[%s153 + $0xc8] sm:$0xff]
        %v206 = vld [vmem:[%s153 + $0xd0] sm:$0xff]
        %v207 = vld [vmem:[%s153 + $0xd8] sm:$0xff]
        %v208 = vld [vmem:[%s153 + $0xe0] sm:$0xff]
        %v209 = vld [vmem:[%s153 + $0xe8] sm:$0xff]
        %v210 = vld [vmem:[%s153 + $0xf0] sm:$0xff]
        %v211 = vld [vmem:[%s153 + $0xf8] sm:$0xff]
        %v212 = vld [vmem:[%s153 + $0x100] sm:$0xff]
        %v213 = vld [vmem:[%s153 + $0x108] sm:$0xff]
        %v214 = vld [vmem:[%s153 + $0x110] sm:$0xff]
        %v215 = vld [vmem:[%s153 + $0x118] sm:$0xff]
        %v216 = vld [vmem:[%s153 + $0x120] sm:$0xff]
        %v217 = vld [vmem:[%s153 + $0x128] sm:$0xff]
        %v218 = vld [vmem:[%s153 + $0x130] sm:$0xff]
        %v219 = vld [vmem:[%s153 + $0x138] sm:$0xff]
        %v220 = vld [vmem:[%s153 + $0x140] sm:$0xff]
        %v221 = vld [vmem:[%s153 + $0x148] sm:$0xff]
        %v222 = vld [vmem:[%s153 + $0x150] sm:$0xff]
        %v223 = vld [vmem:[%s153 + $0x158] sm:$0xff]
        %v224 = vld [vmem:[%s153 + $0x160] sm:$0xff]
        %v225 = vld [vmem:[%s153 + $0x168] sm:$0xff]
        %v226 = vld [vmem:[%s153 + $0x170] sm:$0xff]
        %v227 = vld [vmem:[%s153 + $0x178] sm:$0xff]
        %v228 = vld [vmem:[#allocation5] sm:$0xff]
        %v229 = vld [vmem:[#allocation5 + $0x8] sm:$0xff]
        %v230 = vld [vmem:[#allocation5 + $0x10] sm:$0xff]
        %v231 = vld [vmem:[#allocation5 + $0x18] sm:$0xff]
        %v232 = vld [vmem:[#allocation5 + $0x20] sm:$0xff]
        %v233 = vld [vmem:[#allocation5 + $0x28] sm:$0xff]
        %v234 = vld [vmem:[#allocation5 + $0x30] sm:$0xff]
        %v235 = vld [vmem:[#allocation5 + $0x38] sm:$0xff]
        %v236 = vld [vmem:[#allocation5 + $0x40] sm:$0xff]
        %v237 = vld [vmem:[#allocation5 + $0x48] sm:$0xff]
        %v238 = vld [vmem:[#allocation5 + $0x50] sm:$0xff]
        %v239 = vld [vmem:[#allocation5 + $0x58] sm:$0xff]
        %v240 = vld [vmem:[#allocation5 + $0x60] sm:$0xff]
        %v241 = vld [vmem:[#allocation5 + $0x68] sm:$0xff]
        %v242 = vld [vmem:[#allocation5 + $0x70] sm:$0xff]
        %v243 = vld [vmem:[#allocation5 + $0x78] sm:$0xff]
        %v244 = vld [vmem:[#allocation5 + $0x80] sm:$0xff]
        %v245 = vld [vmem:[#allocation5 + $0x88] sm:$0xff]
        %v246 = vld [vmem:[#allocation5 + $0x90] sm:$0xff]
        %v247 = vld [vmem:[#allocation5 + $0x98] sm:$0xff]
        %v248 = vld [vmem:[#allocation5 + $0xa0] sm:$0xff]
        %v249 = vld [vmem:[#allocation5 + $0xa8] sm:$0xff]
        %v250 = vld [vmem:[#allocation5 + $0xb0] sm:$0xff]
        %v251 = vld [vmem:[#allocation5 + $0xb8] sm:$0xff]
        %v252 = vld [vmem:[#allocation5 + $0xc0] sm:$0xff]
        %v253 = vld [vmem:[#allocation5 + $0xc8] sm:$0xff]
        %v254 = vld [vmem:[#allocation5 + $0xd0] sm:$0xff]
        %v255 = vld [vmem:[#allocation5 + $0xd8] sm:$0xff]
        %v256 = vld [vmem:[#allocation5 + $0xe0] sm:$0xff]
        %v257 = vld [vmem:[#allocation5 + $0xe8] sm:$0xff]
        %v258 = vld [vmem:[#allocation5 + $0xf0] sm:$0xff]
        %v259 = vld [vmem:[#allocation5 + $0xf8] sm:$0xff]
        %v260 = vld [vmem:[#allocation5 + $0x100] sm:$0xff]
        %v261 = vld [vmem:[#allocation5 + $0x108] sm:$0xff]
        %v262 = vld [vmem:[#allocation5 + $0x110] sm:$0xff]
        %v263 = vld [vmem:[#allocation5 + $0x118] sm:$0xff]
        %v264 = vld [vmem:[#allocation5 + $0x120] sm:$0xff]
        %v265 = vld [vmem:[#allocation5 + $0x128] sm:$0xff]
        %v266 = vld [vmem:[#allocation5 + $0x130] sm:$0xff]
        %v267 = vld [vmem:[#allocation5 + $0x138] sm:$0xff]
        %v268 = vld [vmem:[#allocation5 + $0x140] sm:$0xff]
        %v269 = vld [vmem:[#allocation5 + $0x148] sm:$0xff]
        %v270 = vld [vmem:[#allocation5 + $0x150] sm:$0xff]
        %v271 = vld [vmem:[#allocation5 + $0x158] sm:$0xff]
        %v272 = vld [vmem:[#allocation5 + $0x160] sm:$0xff]
        %v273 = vld [vmem:[#allocation5 + $0x168] sm:$0xff]
        %v274 = vld [vmem:[#allocation5 + $0x170] sm:$0xff]
        %v275 = vld [vmem:[#allocation5 + $0x178] sm:$0xff]
        %276 = vmatprep.subr.mxu0 0.0
        %v277 = vand.u32 %v228, 4294901760
        %278 = vmatpush1.msra.mxu0 %v277
        %279 = vmatprep.subr.mxu0 0.0
        %v280 = vand.u32 %v229, 4294901760
        %281 = vmatpush1.msra.mxu0 %v280
        %282 = vmatprep.subr.mxu0 0.0
        %v283 = vand.u32 %v230, 4294901760
        %284 = vmatpush1.msra.mxu0 %v283
        %285 = vmatprep.subr.mxu0 0.0
        %v286 = vand.u32 %v231, 4294901760
        %287 = vmatpush1.msra.mxu0 %v286
        %288 = vmatprep.subr.mxu0 0.0
        %v289 = vand.u32 %v232, 4294901760
        %290 = vmatpush1.msra.mxu0 %v289
        %291 = vmatprep.subr.mxu0 0.0
        %v292 = vand.u32 %v233, 4294901760
        %293 = vmatpush1.msra.mxu0 %v292
        %294 = vmatprep.subr.mxu0 0.0
        %v295 = vand.u32 %v234, 4294901760
        %296 = vmatpush1.msra.mxu0 %v295
        %297 = vmatprep.subr.mxu0 0.0
        %v298 = vand.u32 %v235, 4294901760
        %299 = vmatpush1.msra.mxu0 %v298
        %300 = vmatprep.subr.mxu0 0.0
        %v301 = vand.u32 %v236, 4294901760
        %302 = vmatpush1.msra.mxu0 %v301
        %303 = vmatprep.subr.mxu0 0.0
        %v304 = vand.u32 %v237, 4294901760
        %305 = vmatpush1.msra.mxu0 %v304
        %306 = vmatprep.subr.mxu0 0.0
        %v307 = vand.u32 %v238, 4294901760
        %308 = vmatpush1.msra.mxu0 %v307
        %309 = vmatprep.subr.mxu0 0.0
        %v310 = vand.u32 %v239, 4294901760
        %311 = vmatpush1.msra.mxu0 %v310
        %312 = vmatprep.subr.mxu0 0.0
        %v313 = vand.u32 %v240, 4294901760
        %314 = vmatpush1.msra.mxu0 %v313
        %315 = vmatprep.subr.mxu0 0.0
        %v316 = vand.u32 %v241, 4294901760
        %317 = vmatpush1.msra.mxu0 %v316
        %318 = vmatprep.subr.mxu0 0.0
        %v319 = vand.u32 %v242, 4294901760
        %320 = vmatpush1.msra.mxu0 %v319
        %321 = vmatprep.subr.mxu0 0.0
        %v322 = vand.u32 %v243, 4294901760
        %323 = vmatpush1.msra.mxu0 %v322
        %324 = vmatprep.subr.mxu0 0.0
        %v325 = vand.u32 %v244, 4294901760
        %326 = vmatpush1.msra.mxu0 %v325
        %327 = vmatprep.subr.mxu0 0.0
        %v328 = vand.u32 %v245, 4294901760
        %329 = vmatpush1.msra.mxu0 %v328
        %330 = vmatprep.subr.mxu0 0.0
        %v331 = vand.u32 %v246, 4294901760
        %332 = vmatpush1.msra.mxu0 %v331
        %333 = vmatprep.subr.mxu0 0.0
        %v334 = vand.u32 %v247, 4294901760
        %335 = vmatpush1.msra.mxu0 %v334
        %336 = vmatprep.subr.mxu0 0.0
        %v337 = vand.u32 %v248, 4294901760
        %338 = vmatpush1.msra.mxu0 %v337
        %339 = vmatprep.subr.mxu0 0.0
        %v340 = vand.u32 %v249, 4294901760
        %341 = vmatpush1.msra.mxu0 %v340
        %342 = vmatprep.subr.mxu0 0.0
        %v343 = vand.u32 %v250, 4294901760
        %344 = vmatpush1.msra.mxu0 %v343
        %345 = vmatprep.subr.mxu0 0.0
        %v346 = vand.u32 %v251, 4294901760
        %347 = vmatpush1.msra.mxu0 %v346
        %348 = vmatprep.subr.mxu0 0.0
        %v349 = vand.u32 %v252, 4294901760
        %350 = vmatpush1.msra.mxu0 %v349
        %351 = vmatprep.subr.mxu0 0.0
        %v352 = vand.u32 %v253, 4294901760
        %353 = vmatpush1.msra.mxu0 %v352
        %354 = vmatprep.subr.mxu0 0.0
        %v355 = vand.u32 %v254, 4294901760
        %356 = vmatpush1.msra.mxu0 %v355
        %357 = vmatprep.subr.mxu0 0.0
        %v358 = vand.u32 %v255, 4294901760
        %359 = vmatpush1.msra.mxu0 %v358
        %360 = vmatprep.subr.mxu0 0.0
        %v361 = vand.u32 %v256, 4294901760
        %362 = vmatpush1.msra.mxu0 %v361
        %363 = vmatprep.subr.mxu0 0.0
        %v364 = vand.u32 %v257, 4294901760
        %365 = vmatpush1.msra.mxu0 %v364
        %366 = vmatprep.subr.mxu0 0.0
        %v367 = vand.u32 %v258, 4294901760
        %368 = vmatpush1.msra.mxu0 %v367
        %369 = vmatprep.subr.mxu0 0.0
        %v370 = vand.u32 %v259, 4294901760
        %371 = vmatpush1.msra.mxu0 %v370
        %v372 = vand.u32 %v181, 4294901760
        %v373 = vsub.f32 %v181, %v372
        %v374 = vand.u32 %v373, 4294901760
        %v375 = vsub.f32 %v373, %v374
        %v376 = vand.u32 %v375, 4294901760
        %377 = vmatprep.mubr.f32.mxu0 %v376
        %v378 = vand.u32 %v180, 4294901760
        %v379 = vsub.f32 %v180, %v378
        %v380 = vand.u32 %v379, 4294901760
        %v381 = vsub.f32 %v379, %v380
        %v382 = vand.u32 %v381, 4294901760
        %383 = vmatmul.mubr.f32.gmra.mrb[0].mxu0 %v382
        %v384 = vpop.f32.mrb[0].mxu0
        %v385 = vadd.f32 0.0, %v384
        %v386 = vpop.f32.mrb[0].mxu0
        %v387 = vand.u32 %v184, 4294901760
        %v388 = vsub.f32 %v184, %v387
        %v389 = vand.u32 %v388, 4294901760
        %v390 = vsub.f32 %v388, %v389
        %v391 = vand.u32 %v390, 4294901760
        %392 = vmatprep.mubr.f32.mxu0 %v391
        %v393 = vand.u32 %v183, 4294901760
        %v394 = vsub.f32 %v183, %v393
        %v395 = vand.u32 %v394, 4294901760
        %v396 = vsub.f32 %v394, %v395
        %v397 = vand.u32 %v396, 4294901760
        %398 = vmatmul.mubr.f32.gmra.mrb[0].mxu0 %v397
        %v399 = vpop.f32.mrb[0].mxu0
        %v400 = vadd.f32 0.0, %v399
        %v401 = vpop.f32.mrb[0].mxu0
        %v402 = vand.u32 %v187, 4294901760
        %v403 = vsub.f32 %v187, %v402
        %v404 = vand.u32 %v403, 4294901760
        %v405 = vsub.f32 %v403, %v404
        %v406 = vand.u32 %v405, 4294901760
        %407 = vmatprep.mubr.f32.mxu0 %v406
        %v408 = vand.u32 %v186, 4294901760
        %v409 = vsub.f32 %v186, %v408
        %v410 = vand.u32 %v409, 4294901760
        %v411 = vsub.f32 %v409, %v410
        %v412 = vand.u32 %v411, 4294901760
        %413 = vmatmul.mubr.f32.gmra.mrb[0].mxu0 %v412
        %v414 = vpop.f32.mrb[0].mxu0
        %v415 = vadd.f32 0.0, %v414
        %v416 = vpop.f32.mrb[0].mxu0
        %v417 = vand.u32 %v190, 4294901760
        %v418 = vsub.f32 %v190, %v417
        %v419 = vand.u32 %v418, 4294901760
        %v420 = vsub.f32 %v418, %v419
        %v421 = vand.u32 %v420, 4294901760
        %422 = vmatprep.mubr.f32.mxu0 %v421
        %v423 = vand.u32 %v189, 4294901760
        %v424 = vsub.f32 %v189, %v423
        %v425 = vand.u32 %v424, 4294901760
        %v426 = vsub.f32 %v424, %v425
        %v427 = vand.u32 %v426, 4294901760
        %428 = vmatmul.mubr.f32.gmra.mrb[0].mxu0 %v427
        %v429 = vpop.f32.mrb[0].mxu0
        %v430 = vadd.f32 0.0, %v429
        %v431 = vpop.f32.mrb[0].mxu0
        %v432 = vand.u32 %v193, 4294901760
        %v433 = vsub.f32 %v193, %v432
        %v434 = vand.u32 %v433, 4294901760
        %v435 = vsub.f32 %v433, %v434
        %v436 = vand.u32 %v435, 4294901760
        %437 = vmatprep.mubr.f32.mxu0 %v436
        %v438 = vand.u32 %v192, 4294901760
        %v439 = vsub.f32 %v192, %v438
        %v440 = vand.u32 %v439, 4294901760
        %v441 = vsub.f32 %v439, %v440
        %v442 = vand.u32 %v441, 4294901760
        %443 = vmatmul.mubr.f32.gmra.mrb[0].mxu0 %v442
        %v444 = vpop.f32.mrb[0].mxu0
        %v445 = vadd.f32 0.0, %v444
        %v446 = vpop.f32.mrb[0].mxu0
        %v447 = vand.u32 %v196, 4294901760
        %v448 = vsub.f32 %v196, %v447
        %v449 = vand.u32 %v448, 4294901760
        %v450 = vsub.f32 %v448, %v449
        %v451 = vand.u32 %v450, 4294901760
        %452 = vmatprep.mubr.f32.mxu0 %v451
        %v453 = vand.u32 %v195, 4294901760
        %v454 = vsub.f32 %v195, %v453
        %v455 = vand.u32 %v454, 4294901760
        %v456 = vsub.f32 %v454, %v455
        %v457 = vand.u32 %v456, 4294901760
        %458 = vmatmul.mubr.f32.gmra.mrb[0].mxu0 %v457
        %v459 = vpop.f32.mrb[0].mxu0
        %v460 = vadd.f32 0.0, %v459
        %v461 = vpop.f32.mrb[0].mxu0
        %v462 = vand.u32 %v199, 4294901760
        %v463 = vsub.f32 %v199, %v462
        %v464 = vand.u32 %v463, 4294901760
        %v465 = vsub.f32 %v463, %v464
        %v466 = vand.u32 %v465, 4294901760
        %467 = vmatprep.mubr.f32.mxu0 %v466
        %v468 = vand.u32 %v198, 4294901760
        %v469 = vsub.f32 %v198, %v468
        %v470 = vand.u32 %v469, 4294901760
        %v471 = vsub.f32 %v469, %v470
        %v472 = vand.u32 %v471, 4294901760
        %473 = vmatmul.mubr.f32.gmra.mrb[0].mxu0 %v472
        %v474 = vpop.f32.mrb[0].mxu0
        %v475 = vadd.f32 0.0, %v474
        %v476 = vpop.f32.mrb[0].mxu0
        %v477 = vand.u32 %v202, 4294901760
        %v478 = vsub.f32 %v202, %v477
        %v479 = vand.u32 %v478, 4294901760
        %v480 = vsub.f32 %v478, %v479
        %v481 = vand.u32 %v480, 4294901760
        %482 = vmatprep.mubr.f32.mxu0 %v481
        %v483 = vand.u32 %v201, 4294901760
        %v484 = vsub.f32 %v201, %v483
        %v485 = vand.u32 %v484, 4294901760
        %v486 = vsub.f32 %v484, %v485
        %v487 = vand.u32 %v486, 4294901760
        %488 = vmatmul.mubr.f32.gmra.mrb[0].mxu0 %v487
        %v489 = vpop.f32.mrb[0].mxu0
        %v490 = vadd.f32 0.0, %v489
        %v491 = vpop.f32.mrb[0].mxu0
        %v492 = vand.u32 %v205, 4294901760
        %v493 = vsub.f32 %v205, %v492
        %v494 = vand.u32 %v493, 4294901760
        %v495 = vsub.f32 %v493, %v494
        %v496 = vand.u32 %v495, 4294901760
        %497 = vmatprep.mubr.f32.mxu0 %v496
        %v498 = vand.u32 %v204, 4294901760
        %v499 = vsub.f32 %v204, %v498
        %v500 = vand.u32 %v499, 4294901760
        %v501 = vsub.f32 %v499, %v500
        %v502 = vand.u32 %v501, 4294901760
        %503 = vmatmul.mubr.f32.gmra.mrb[0].mxu0 %v502
        %v504 = vpop.f32.mrb[0].mxu0
        %v505 = vadd.f32 0.0, %v504
        %v506 = vpop.f32.mrb[0].mxu0
        %v507 = vand.u32 %v208, 4294901760
        %v508 = vsub.f32 %v208, %v507
        %v509 = vand.u32 %v508, 4294901760
        %v510 = vsub.f32 %v508, %v509
        %v511 = vand.u32 %v510, 4294901760
        %512 = vmatprep.mubr.f32.mxu0 %v511
        %v513 = vand.u32 %v207, 4294901760
        %v514 = vsub.f32 %v207, %v513
        %v515 = vand.u32 %v514, 4294901760
        %v516 = vsub.f32 %v514, %v515
        %v517 = vand.u32 %v516, 4294901760
        %518 = vmatmul.mubr.f32.gmra.mrb[0].mxu0 %v517
        %v519 = vpop.f32.mrb[0].mxu0
        %v520 = vadd.f32 0.0, %v519
        %v521 = vpop.f32.mrb[0].mxu0
        %v522 = vand.u32 %v211, 4294901760
        %v523 = vsub.f32 %v211, %v522
        %v524 = vand.u32 %v523, 4294901760
        %v525 = vsub.f32 %v523, %v524
        %v526 = vand.u32 %v525, 4294901760
        %527 = vmatprep.mubr.f32.mxu0 %v526
        %v528 = vand.u32 %v210, 4294901760
        %v529 = vsub.f32 %v210, %v528
        %v530 = vand.u32 %v529, 4294901760
        %v531 = vsub.f32 %v529, %v530
        %v532 = vand.u32 %v531, 4294901760
        %533 = vmatmul.mubr.f32.gmra.mrb[0].mxu0 %v532
        %v534 = vpop.f32.mrb[0].mxu0
        %v535 = vadd.f32 0.0, %v534
        %v536 = vpop.f32.mrb[0].mxu0
        %v537 = vand.u32 %v214, 4294901760
        %v538 = vsub.f32 %v214, %v537
        %v539 = vand.u32 %v538, 4294901760
        %v540 = vsub.f32 %v538, %v539
        %v541 = vand.u32 %v540, 4294901760
        %542 = vmatprep.mubr.f32.mxu0 %v541
        %v543 = vand.u32 %v213, 4294901760
        %v544 = vsub.f32 %v213, %v543
        %v545 = vand.u32 %v544, 4294901760
        %v546 = vsub.f32 %v544, %v545
        %v547 = vand.u32 %v546, 4294901760
        %548 = vmatmul.mubr.f32.gmra.mrb[0].mxu0 %v547
        %v549 = vpop.f32.mrb[0].mxu0
        %v550 = vadd.f32 0.0, %v549
        %v551 = vpop.f32.mrb[0].mxu0
        %v552 = vand.u32 %v217, 4294901760
        %v553 = vsub.f32 %v217, %v552
        %v554 = vand.u32 %v553, 4294901760
        %v555 = vsub.f32 %v553, %v554
        %v556 = vand.u32 %v555, 4294901760
        %557 = vmatprep.mubr.f32.mxu0 %v556
        %v558 = vand.u32 %v216, 4294901760
        %v559 = vsub.f32 %v216, %v558
        %v560 = vand.u32 %v559, 4294901760
        %v561 = vsub.f32 %v559, %v560
        %v562 = vand.u32 %v561, 4294901760
        %563 = vmatmul.mubr.f32.gmra.mrb[0].mxu0 %v562
        %v564 = vpop.f32.mrb[0].mxu0
        %v565 = vadd.f32 0.0, %v564
        %v566 = vpop.f32.mrb[0].mxu0
        %v567 = vand.u32 %v220, 4294901760
        %v568 = vsub.f32 %v220, %v567
        %v569 = vand.u32 %v568, 4294901760
        %v570 = vsub.f32 %v568, %v569
        %v571 = vand.u32 %v570, 4294901760
        %572 = vmatprep.mubr.f32.mxu0 %v571
        %v573 = vand.u32 %v219, 4294901760
        %v574 = vsub.f32 %v219, %v573
        %v575 = vand.u32 %v574, 4294901760
        %v576 = vsub.f32 %v574, %v575
        %v577 = vand.u32 %v576, 4294901760
        %578 = vmatmul.mubr.f32.gmra.mrb[0].mxu0 %v577
        %v579 = vpop.f32.mrb[0].mxu0
        %v580 = vadd.f32 0.0, %v579
        %v581 = vpop.f32.mrb[0].mxu0
        %v582 = vand.u32 %v223, 4294901760
        %v583 = vsub.f32 %v223, %v582
        %v584 = vand.u32 %v583, 4294901760
        %v585 = vsub.f32 %v583, %v584
        %v586 = vand.u32 %v585, 4294901760
        %587 = vmatprep.mubr.f32.mxu0 %v586
        %v588 = vand.u32 %v222, 4294901760
        %v589 = vsub.f32 %v222, %v588
        %v590 = vand.u32 %v589, 4294901760
        %v591 = vsub.f32 %v589, %v590
        %v592 = vand.u32 %v591, 4294901760
        %593 = vmatmul.mubr.f32.gmra.mrb[0].mxu0 %v592
        %v594 = vpop.f32.mrb[0].mxu0
        %v595 = vadd.f32 0.0, %v594
        %v596 = vpop.f32.mrb[0].mxu0
        %v597 = vand.u32 %v226, 4294901760
        %v598 = vsub.f32 %v226, %v597
        %v599 = vand.u32 %v598, 4294901760
        %v600 = vsub.f32 %v598, %v599
        %v601 = vand.u32 %v600, 4294901760
        %602 = vmatprep.mubr.f32.mxu0 %v601
        %v603 = vand.u32 %v225, 4294901760
        %v604 = vsub.f32 %v225, %v603
        %v605 = vand.u32 %v604, 4294901760
        %v606 = vsub.f32 %v604, %v605
        %v607 = vand.u32 %v606, 4294901760
        %608 = vmatmul.mubr.f32.gmra.mrb[0].mxu0 %v607
        %v609 = vpop.f32.mrb[0].mxu0
        %v610 = vadd.f32 0.0, %v609
        %v611 = vpop.f32.mrb[0].mxu0
        %612 = vdwg.mxu0
        %613 = vmatprep.subr.mxu0 0.0
        %v614 = vand.u32 %v228, 4294901760
        %v615 = vsub.f32 %v228, %v614
        %v616 = vand.u32 %v615, 4294901760
        %v617 = vsub.f32 %v615, %v616
        %v618 = vand.u32 %v617, 4294901760
        %619 = vmatpush1.msra.mxu0 %v618
        %620 = vmatprep.subr.mxu0 0.0
        %v621 = vand.u32 %v229, 4294901760
        %v622 = vsub.f32 %v229, %v621
        %v623 = vand.u32 %v622, 4294901760
        %v624 = vsub.f32 %v622, %v623
        %v625 = vand.u32 %v624, 4294901760
        %626 = vmatpush1.msra.mxu0 %v625
        %627 = vmatprep.subr.mxu0 0.0
        %v628 = vand.u32 %v230, 4294901760
        %v629 = vsub.f32 %v230, %v628
        %v630 = vand.u32 %v629, 4294901760
        %v631 = vsub.f32 %v629, %v630
        %v632 = vand.u32 %v631, 4294901760
        %633 = vmatpush1.msra.mxu0 %v632
        %634 = vmatprep.subr.mxu0 0.0
        %v635 = vand.u32 %v231, 4294901760
        %v636 = vsub.f32 %v231, %v635
        %v637 = vand.u32 %v636, 4294901760
        %v638 = vsub.f32 %v636, %v637
        %v639 = vand.u32 %v638, 4294901760
        %640 = vmatpush1.msra.mxu0 %v639
        %641 = vmatprep.subr.mxu0 0.0
        %v642 = vand.u32 %v232, 4294901760
        %v643 = vsub.f32 %v232, %v642
        %v644 = vand.u32 %v643, 4294901760
        %v645 = vsub.f32 %v643, %v644
        %v646 = vand.u32 %v645, 4294901760
        %647 = vmatpush1.msra.mxu0 %v646
        %648 = vmatprep.subr.mxu0 0.0
        %v649 = vand.u32 %v233, 4294901760
        %v650 = vsub.f32 %v233, %v649
        %v651 = vand.u32 %v650, 4294901760
        %v652 = vsub.f32 %v650, %v651
        %v653 = vand.u32 %v652, 4294901760
        %654 = vmatpush1.msra.mxu0 %v653
        %655 = vmatprep.subr.mxu0 0.0
        %v656 = vand.u32 %v234, 4294901760
        %v657 = vsub.f32 %v234, %v656
        %v658 = vand.u32 %v657, 4294901760
        %v659 = vsub.f32 %v657, %v658
        %v660 = vand.u32 %v659, 4294901760
        %661 = vmatpush1.msra.mxu0 %v660
        %662 = vmatprep.subr.mxu0 0.0
        %v663 = vand.u32 %v235, 4294901760
        %v664 = vsub.f32 %v235, %v663
        %v665 = vand.u32 %v664, 4294901760
        %v666 = vsub.f32 %v664, %v665
        %v667 = vand.u32 %v666, 4294901760
        %668 = vmatpush1.msra.mxu0 %v667
        %669 = vmatprep.subr.mxu0 0.0
        %v670 = vand.u32 %v236, 4294901760
        %v671 = vsub.f32 %v236, %v670
        %v672 = vand.u32 %v671, 4294901760
        %v673 = vsub.f32 %v671, %v672
        %v674 = vand.u32 %v673, 4294901760
        %675 = vmatpush1.msra.mxu0 %v674
        %676 = vmatprep.subr.mxu0 0.0
        %v677 = vand.u32 %v237, 4294901760
        %v678 = vsub.f32 %v237, %v677
        %v679 = vand.u32 %v678, 4294901760
        %v680 = vsub.f32 %v678, %v679
        %v681 = vand.u32 %v680, 4294901760
        %682 = vmatpush1.msra.mxu0 %v681
        %683 = vmatprep.subr.mxu0 0.0
        %v684 = vand.u32 %v238, 4294901760
        %v685 = vsub.f32 %v238, %v684
        %v686 = vand.u32 %v685, 4294901760
        %v687 = vsub.f32 %v685, %v686
        %v688 = vand.u32 %v687, 4294901760
        %689 = vmatpush1.msra.mxu0 %v688
        %690 = vmatprep.subr.mxu0 0.0
        %v691 = vand.u32 %v239, 4294901760
        %v692 = vsub.f32 %v239, %v691
        %v693 = vand.u32 %v692, 4294901760
        %v694 = vsub.f32 %v692, %v693
        %v695 = vand.u32 %v694, 4294901760
        %696 = vmatpush1.msra.mxu0 %v695
        %697 = vmatprep.subr.mxu0 0.0
        %v698 = vand.u32 %v240, 4294901760
        %v699 = vsub.f32 %v240, %v698
        %v700 = vand.u32 %v699, 4294901760
        %v701 = vsub.f32 %v699, %v700
        %v702 = vand.u32 %v701, 4294901760
        %703 = vmatpush1.msra.mxu0 %v702
        %704 = vmatprep.subr.mxu0 0.0
        %v705 = vand.u32 %v241, 4294901760
        %v706 = vsub.f32 %v241, %v705
        %v707 = vand.u32 %v706, 4294901760
        %v708 = vsub.f32 %v706, %v707
        %v709 = vand.u32 %v708, 4294901760
        %710 = vmatpush1.msra.mxu0 %v709
        %711 = vmatprep.subr.mxu0 0.0
        %v712 = vand.u32 %v242, 4294901760
        %v713 = vsub.f32 %v242, %v712
        %v714 = vand.u32 %v713, 4294901760
        %v715 = vsub.f32 %v713, %v714
        %v716 = vand.u32 %v715, 4294901760
        %717 = vmatpush1.msra.mxu0 %v716
        %718 = vmatprep.subr.mxu0 0.0
        %v719 = vand.u32 %v243, 4294901760
        %v720 = vsub.f32 %v243, %v719
        %v721 = vand.u32 %v720, 4294901760
        %v722 = vsub.f32 %v720, %v721
        %v723 = vand.u32 %v722, 4294901760
        %724 = vmatpush1.msra.mxu0 %v723
        %725 = vmatprep.subr.mxu0 0.0
        %v726 = vand.u32 %v244, 4294901760
        %v727 = vsub.f32 %v244, %v726
        %v728 = vand.u32 %v727, 4294901760
        %v729 = vsub.f32 %v727, %v728
        %v730 = vand.u32 %v729, 4294901760
        %731 = vmatpush1.msra.mxu0 %v730
        %732 = vmatprep.subr.mxu0 0.0
        %v733 = vand.u32 %v245, 4294901760
        %v734 = vsub.f32 %v245, %v733
        %v735 = vand.u32 %v734, 4294901760
        %v736 = vsub.f32 %v734, %v735
        %v737 = vand.u32 %v736, 4294901760
        %738 = vmatpush1.msra.mxu0 %v737
        %739 = vmatprep.subr.mxu0 0.0
        %v740 = vand.u32 %v246, 4294901760
        %v741 = vsub.f32 %v246, %v740
        %v742 = vand.u32 %v741, 4294901760
        %v743 = vsub.f32 %v741, %v742
        %v744 = vand.u32 %v743, 4294901760
        %745 = vmatpush1.msra.mxu0 %v744
        %746 = vmatprep.subr.mxu0 0.0
        %v747 = vand.u32 %v247, 4294901760
        %v748 = vsub.f32 %v247, %v747
        %v749 = vand.u32 %v748, 4294901760
        %v750 = vsub.f32 %v748, %v749
        %v751 = vand.u32 %v750, 4294901760
        %752 = vmatpush1.msra.mxu0 %v751
        %753 = vmatprep.subr.mxu0 0.0
        %v754 = vand.u32 %v248, 4294901760
        %v755 = vsub.f32 %v248, %v754
        %v756 = vand.u32 %v755, 4294901760
        %v757 = vsub.f32 %v755, %v756
        %v758 = vand.u32 %v757, 4294901760
        %759 = vmatpush1.msra.mxu0 %v758
        %760 = vmatprep.subr.mxu0 0.0
        %v761 = vand.u32 %v249, 4294901760
        %v762 = vsub.f32 %v249, %v761
        %v763 = vand.u32 %v762, 4294901760
        %v764 = vsub.f32 %v762, %v763
        %v765 = vand.u32 %v764, 4294901760
        %766 = vmatpush1.msra.mxu0 %v765
        %767 = vmatprep.subr.mxu0 0.0
        %v768 = vand.u32 %v250, 4294901760
        %v769 = vsub.f32 %v250, %v768
        %v770 = vand.u32 %v769, 4294901760
        %v771 = vsub.f32 %v769, %v770
        %v772 = vand.u32 %v771, 4294901760
        %773 = vmatpush1.msra.mxu0 %v772
        %774 = vmatprep.subr.mxu0 0.0
        %v775 = vand.u32 %v251, 4294901760
        %v776 = vsub.f32 %v251, %v775
        %v777 = vand.u32 %v776, 4294901760
        %v778 = vsub.f32 %v776, %v777
        %v779 = vand.u32 %v778, 4294901760
        %780 = vmatpush1.msra.mxu0 %v779
        %781 = vmatprep.subr.mxu0 0.0
        %v782 = vand.u32 %v252, 4294901760
        %v783 = vsub.f32 %v252, %v782
        %v784 = vand.u32 %v783, 4294901760
        %v785 = vsub.f32 %v783, %v784
        %v786 = vand.u32 %v785, 4294901760
        %787 = vmatpush1.msra.mxu0 %v786
        %788 = vmatprep.subr.mxu0 0.0
        %v789 = vand.u32 %v253, 4294901760
        %v790 = vsub.f32 %v253, %v789
        %v791 = vand.u32 %v790, 4294901760
        %v792 = vsub.f32 %v790, %v791
        %v793 = vand.u32 %v792, 4294901760
        %794 = vmatpush1.msra.mxu0 %v793
        %795 = vmatprep.subr.mxu0 0.0
        %v796 = vand.u32 %v254, 4294901760
        %v797 = vsub.f32 %v254, %v796
        %v798 = vand.u32 %v797, 4294901760
        %v799 = vsub.f32 %v797, %v798
        %v800 = vand.u32 %v799, 4294901760
        %801 = vmatpush1.msra.mxu0 %v800
        %802 = vmatprep.subr.mxu0 0.0
        %v803 = vand.u32 %v255, 4294901760
        %v804 = vsub.f32 %v255, %v803
        %v805 = vand.u32 %v804, 4294901760
        %v806 = vsub.f32 %v804, %v805
        %v807 = vand.u32 %v806, 4294901760
        %808 = vmatpush1.msra.mxu0 %v807
        %809 = vmatprep.subr.mxu0 0.0
        %v810 = vand.u32 %v256, 4294901760
        %v811 = vsub.f32 %v256, %v810
        %v812 = vand.u32 %v811, 4294901760
        %v813 = vsub.f32 %v811, %v812
        %v814 = vand.u32 %v813, 4294901760
        %815 = vmatpush1.msra.mxu0 %v814
        %816 = vmatprep.subr.mxu0 0.0
        %v817 = vand.u32 %v257, 4294901760
        %v818 = vsub.f32 %v257, %v817
        %v819 = vand.u32 %v818, 4294901760
        %v820 = vsub.f32 %v818, %v819
        %v821 = vand.u32 %v820, 4294901760
        %822 = vmatpush1.msra.mxu0 %v821
        %823 = vmatprep.subr.mxu0 0.0
        %v824 = vand.u32 %v258, 4294901760
        %v825 = vsub.f32 %v258, %v824
        %v826 = vand.u32 %v825, 4294901760
        %v827 = vsub.f32 %v825, %v826
        %v828 = vand.u32 %v827, 4294901760
        %829 = vmatpush1.msra.mxu0 %v828
        %830 = vmatprep.subr.mxu0 0.0
        %v831 = vand.u32 %v259, 4294901760
        %v832 = vsub.f32 %v259, %v831
        %v833 = vand.u32 %v832, 4294901760
        %v834 = vsub.f32 %v832, %v833
        %v835 = vand.u32 %v834, 4294901760
        %836 = vmatpush1.msra.mxu0 %v835
        %v837 = vand.u32 %v181, 4294901760
        %838 = vmatprep.mubr.f32.mxu0 %v837
        %v839 = vand.u32 %v180, 4294901760
        %840 = vmatmul.mubr.f32.gmra.mrb[0].mxu0 %v839
        %v841 = vpop.f32.mrb[0].mxu0
        %v842 = vadd.f32 %v385, %v841
        %v843 = vpop.f32.mrb[0].mxu0
        %v844 = vand.u32 %v184, 4294901760
        %845 = vmatprep.mubr.f32.mxu0 %v844
        %v846 = vand.u32 %v183, 4294901760
        %847 = vmatmul.mubr.f32.gmra.mrb[0].mxu0 %v846
        %v848 = vpop.f32.mrb[0].mxu0
        %v849 = vadd.f32 %v400, %v848
        %v850 = vpop.f32.mrb[0].mxu0
        %v851 = vand.u32 %v187, 4294901760
        %852 = vmatprep.mubr.f32.mxu0 %v851
        %v853 = vand.u32 %v186, 4294901760
        %854 = vmatmul.mubr.f32.gmra.mrb[0].mxu0 %v853
        %v855 = vpop.f32.mrb[0].mxu0
        %v856 = vadd.f32 %v415, %v855
        %v857 = vpop.f32.mrb[0].mxu0
        %v858 = vand.u32 %v190, 4294901760
        %859 = vmatprep.mubr.f32.mxu0 %v858
        %v860 = vand.u32 %v189, 4294901760
        %861 = vmatmul.mubr.f32.gmra.mrb[0].mxu0 %v860
        %v862 = vpop.f32.mrb[0].mxu0
        %v863 = vadd.f32 %v430, %v862
        %v864 = vpop.f32.mrb[0].mxu0
        %v865 = vand.u32 %v193, 4294901760
        %866 = vmatprep.mubr.f32.mxu0 %v865
        %v867 = vand.u32 %v192, 4294901760
        %868 = vmatmul.mubr.f32.gmra.mrb[0].mxu0 %v867
        %v869 = vpop.f32.mrb[0].mxu0
        %v870 = vadd.f32 %v445, %v869
        %v871 = vpop.f32.mrb[0].mxu0
        %v872 = vand.u32 %v196, 4294901760
        %873 = vmatprep.mubr.f32.mxu0 %v872
        %v874 = vand.u32 %v195, 4294901760
        %875 = vmatmul.mubr.f32.gmra.mrb[0].mxu0 %v874
        %v876 = vpop.f32.mrb[0].mxu0
        %v877 = vadd.f32 %v460, %v876
        %v878 = vpop.f32.mrb[0].mxu0
        %v879 = vand.u32 %v199, 4294901760
        %880 = vmatprep.mubr.f32.mxu0 %v879
        %v881 = vand.u32 %v198, 4294901760
        %882 = vmatmul.mubr.f32.gmra.mrb[0].mxu0 %v881
        %v883 = vpop.f32.mrb[0].mxu0
        %v884 = vadd.f32 %v475, %v883
        %v885 = vpop.f32.mrb[0].mxu0
        %v886 = vand.u32 %v202, 4294901760
        %887 = vmatprep.mubr.f32.mxu0 %v886
        %v888 = vand.u32 %v201, 4294901760
        %889 = vmatmul.mubr.f32.gmra.mrb[0].mxu0 %v888
        %v890 = vpop.f32.mrb[0].mxu0
        %v891 = vadd.f32 %v490, %v890
        %v892 = vpop.f32.mrb[0].mxu0
        %v893 = vand.u32 %v205, 4294901760
        %894 = vmatprep.mubr.f32.mxu0 %v893
        %v895 = vand.u32 %v204, 4294901760
        %896 = vmatmul.mubr.f32.gmra.mrb[0].mxu0 %v895
        %v897 = vpop.f32.mrb[0].mxu0
        %v898 = vadd.f32 %v505, %v897
        %v899 = vpop.f32.mrb[0].mxu0
        %v900 = vand.u32 %v208, 4294901760
        %901 = vmatprep.mubr.f32.mxu0 %v900
        %v902 = vand.u32 %v207, 4294901760
        %903 = vmatmul.mubr.f32.gmra.mrb[0].mxu0 %v902
        %v904 = vpop.f32.mrb[0].mxu0
        %v905 = vadd.f32 %v520, %v904
        %v906 = vpop.f32.mrb[0].mxu0
        %v907 = vand.u32 %v211, 4294901760
        %908 = vmatprep.mubr.f32.mxu0 %v907
        %v909 = vand.u32 %v210, 4294901760
        %910 = vmatmul.mubr.f32.gmra.mrb[0].mxu0 %v909
        %v911 = vpop.f32.mrb[0].mxu0
        %v912 = vadd.f32 %v535, %v911
        %v913 = vpop.f32.mrb[0].mxu0
        %v914 = vand.u32 %v214, 4294901760
        %915 = vmatprep.mubr.f32.mxu0 %v914
        %v916 = vand.u32 %v213, 4294901760
        %917 = vmatmul.mubr.f32.gmra.mrb[0].mxu0 %v916
        %v918 = vpop.f32.mrb[0].mxu0
        %v919 = vadd.f32 %v550, %v918
        %v920 = vpop.f32.mrb[0].mxu0
        %v921 = vand.u32 %v217, 4294901760
        %922 = vmatprep.mubr.f32.mxu0 %v921
        %v923 = vand.u32 %v216, 4294901760
        %924 = vmatmul.mubr.f32.gmra.mrb[0].mxu0 %v923
        %v925 = vpop.f32.mrb[0].mxu0
        %v926 = vadd.f32 %v565, %v925
        %v927 = vpop.f32.mrb[0].mxu0
        %v928 = vand.u32 %v220, 4294901760
        %929 = vmatprep.mubr.f32.mxu0 %v928
        %v930 = vand.u32 %v219, 4294901760
        %931 = vmatmul.mubr.f32.gmra.mrb[0].mxu0 %v930
        %v932 = vpop.f32.mrb[0].mxu0
        %v933 = vadd.f32 %v580, %v932
        %v934 = vpop.f32.mrb[0].mxu0
        %v935 = vand.u32 %v223, 4294901760
        %936 = vmatprep.mubr.f32.mxu0 %v935
        %v937 = vand.u32 %v222, 4294901760
        %938 = vmatmul.mubr.f32.gmra.mrb[0].mxu0 %v937
        %v939 = vpop.f32.mrb[0].mxu0
        %v940 = vadd.f32 %v595, %v939
        %v941 = vpop.f32.mrb[0].mxu0
        %v942 = vand.u32 %v226, 4294901760
        %943 = vmatprep.mubr.f32.mxu0 %v942
        %v944 = vand.u32 %v225, 4294901760
        %945 = vmatmul.mubr.f32.gmra.mrb[0].mxu0 %v944
        %v946 = vpop.f32.mrb[0].mxu0
        %v947 = vadd.f32 %v610, %v946
        %v948 = vpop.f32.mrb[0].mxu0
        %949 = vdwg.mxu0
        %950 = vmatprep.subr.mxu0 0.0
        %v951 = vand.u32 %v228, 4294901760
        %v952 = vsub.f32 %v228, %v951
        %953 = vmatpush1.msra.mxu0 %v952
        %954 = vmatprep.subr.mxu0 0.0
        %v955 = vand.u32 %v229, 4294901760
        %v956 = vsub.f32 %v229, %v955
        %957 = vmatpush1.msra.mxu0 %v956
        %958 = vmatprep.subr.mxu0 0.0
        %v959 = vand.u32 %v230, 4294901760
        %v960 = vsub.f32 %v230, %v959
        %961 = vmatpush1.msra.mxu0 %v960
        %962 = vmatprep.subr.mxu0 0.0
        %v963 = vand.u32 %v231, 4294901760
        %v964 = vsub.f32 %v231, %v963
        %965 = vmatpush1.msra.mxu0 %v964
        %966 = vmatprep.subr.mxu0 0.0
        %v967 = vand.u32 %v232, 4294901760
        %v968 = vsub.f32 %v232, %v967
        %969 = vmatpush1.msra.mxu0 %v968
        %970 = vmatprep.subr.mxu0 0.0
        %v971 = vand.u32 %v233, 4294901760
        %v972 = vsub.f32 %v233, %v971
        %973 = vmatpush1.msra.mxu0 %v972
        %974 = vmatprep.subr.mxu0 0.0
        %v975 = vand.u32 %v234, 4294901760
        %v976 = vsub.f32 %v234, %v975
        %977 = vmatpush1.msra.mxu0 %v976
        %978 = vmatprep.subr.mxu0 0.0
        %v979 = vand.u32 %v235, 4294901760
        %v980 = vsub.f32 %v235, %v979
        %981 = vmatpush1.msra.mxu0 %v980
        %982 = vmatprep.subr.mxu0 0.0
        %v983 = vand.u32 %v236, 4294901760
        %v984 = vsub.f32 %v236, %v983
        %985 = vmatpush1.msra.mxu0 %v984
        %986 = vmatprep.subr.mxu0 0.0
        %v987 = vand.u32 %v237, 4294901760
        %v988 = vsub.f32 %v237, %v987
        %989 = vmatpush1.msra.mxu0 %v988
        %990 = vmatprep.subr.mxu0 0.0
        %v991 = vand.u32 %v238, 4294901760
        %v992 = vsub.f32 %v238, %v991
        %993 = vmatpush1.msra.mxu0 %v992
        %994 = vmatprep.subr.mxu0 0.0
        %v995 = vand.u32 %v239, 4294901760
        %v996 = vsub.f32 %v239, %v995
        %997 = vmatpush1.msra.mxu0 %v996
        %998 = vmatprep.subr.mxu0 0.0
        %v999 = vand.u32 %v240, 4294901760
        %v1000 = vsub.f32 %v240, %v999
        %1001 = vmatpush1.msra.mxu0 %v1000
        %1002 = vmatprep.subr.mxu0 0.0
        %v1003 = vand.u32 %v241, 4294901760
        %v1004 = vsub.f32 %v241, %v1003
        %1005 = vmatpush1.msra.mxu0 %v1004
        %1006 = vmatprep.subr.mxu0 0.0
        %v1007 = vand.u32 %v242, 4294901760
        %v1008 = vsub.f32 %v242, %v1007
        %1009 = vmatpush1.msra.mxu0 %v1008
        %1010 = vmatprep.subr.mxu0 0.0
        %v1011 = vand.u32 %v243, 4294901760
        %v1012 = vsub.f32 %v243, %v1011
        %1013 = vmatpush1.msra.mxu0 %v1012
        %1014 = vmatprep.subr.mxu0 0.0
        %v1015 = vand.u32 %v244, 4294901760
        %v1016 = vsub.f32 %v244, %v1015
        %1017 = vmatpush1.msra.mxu0 %v1016
        %1018 = vmatprep.subr.mxu0 0.0
        %v1019 = vand.u32 %v245, 4294901760
        %v1020 = vsub.f32 %v245, %v1019
        %1021 = vmatpush1.msra.mxu0 %v1020
        %1022 = vmatprep.subr.mxu0 0.0
        %v1023 = vand.u32 %v246, 4294901760
        %v1024 = vsub.f32 %v246, %v1023
        %1025 = vmatpush1.msra.mxu0 %v1024
        %1026 = vmatprep.subr.mxu0 0.0
        %v1027 = vand.u32 %v247, 4294901760
        %v1028 = vsub.f32 %v247, %v1027
        %1029 = vmatpush1.msra.mxu0 %v1028
        %1030 = vmatprep.subr.mxu0 0.0
        %v1031 = vand.u32 %v248, 4294901760
        %v1032 = vsub.f32 %v248, %v1031
        %1033 = vmatpush1.msra.mxu0 %v1032
        %1034 = vmatprep.subr.mxu0 0.0
        %v1035 = vand.u32 %v249, 4294901760
        %v1036 = vsub.f32 %v249, %v1035
        %1037 = vmatpush1.msra.mxu0 %v1036
        %1038 = vmatprep.subr.mxu0 0.0
        %v1039 = vand.u32 %v250, 4294901760
        %v1040 = vsub.f32 %v250, %v1039
        %1041 = vmatpush1.msra.mxu0 %v1040
        %1042 = vmatprep.subr.mxu0 0.0
        %v1043 = vand.u32 %v251, 4294901760
        %v1044 = vsub.f32 %v251, %v1043
        %1045 = vmatpush1.msra.mxu0 %v1044
        %1046 = vmatprep.subr.mxu0 0.0
        %v1047 = vand.u32 %v252, 4294901760
        %v1048 = vsub.f32 %v252, %v1047
        %1049 = vmatpush1.msra.mxu0 %v1048
        %1050 = vmatprep.subr.mxu0 0.0
        %v1051 = vand.u32 %v253, 4294901760
        %v1052 = vsub.f32 %v253, %v1051
        %1053 = vmatpush1.msra.mxu0 %v1052
        %1054 = vmatprep.subr.mxu0 0.0
        %v1055 = vand.u32 %v254, 4294901760
        %v1056 = vsub.f32 %v254, %v1055
        %1057 = vmatpush1.msra.mxu0 %v1056
        %1058 = vmatprep.subr.mxu0 0.0
        %v1059 = vand.u32 %v255, 4294901760
        %v1060 = vsub.f32 %v255, %v1059
        %1061 = vmatpush1.msra.mxu0 %v1060
        %1062 = vmatprep.subr.mxu0 0.0
        %v1063 = vand.u32 %v256, 4294901760
        %v1064 = vsub.f32 %v256, %v1063
        %1065 = vmatpush1.msra.mxu0 %v1064
        %1066 = vmatprep.subr.mxu0 0.0
        %v1067 = vand.u32 %v257, 4294901760
        %v1068 = vsub.f32 %v257, %v1067
        %1069 = vmatpush1.msra.mxu0 %v1068
        %1070 = vmatprep.subr.mxu0 0.0
        %v1071 = vand.u32 %v258, 4294901760
        %v1072 = vsub.f32 %v258, %v1071
        %1073 = vmatpush1.msra.mxu0 %v1072
        %1074 = vmatprep.subr.mxu0 0.0
        %v1075 = vand.u32 %v259, 4294901760
        %v1076 = vsub.f32 %v259, %v1075
        %1077 = vmatpush1.msra.mxu0 %v1076
        %v1078 = vand.u32 %v181, 4294901760
        %v1079 = vsub.f32 %v181, %v1078
        %1080 = vmatprep.mubr.f32.mxu0 %v1079
        %v1081 = vand.u32 %v180, 4294901760
        %v1082 = vsub.f32 %v180, %v1081
        %1083 = vmatmul.mubr.f32.gmra.mrb[0].mxu0 %v1082
        %v1084 = vpop.f32.mrb[0].mxu0
        %v1085 = vadd.f32 %v842, %v1084
        %v1086 = vpop.f32.mrb[0].mxu0
        %v1087 = vand.u32 %v184, 4294901760
        %v1088 = vsub.f32 %v184, %v1087
        %1089 = vmatprep.mubr.f32.mxu0 %v1088
        %v1090 = vand.u32 %v183, 4294901760
        %v1091 = vsub.f32 %v183, %v1090
        %1092 = vmatmul.mubr.f32.gmra.mrb[0].mxu0 %v1091
        %v1093 = vpop.f32.mrb[0].mxu0
        %v1094 = vadd.f32 %v849, %v1093
        %v1095 = vpop.f32.mrb[0].mxu0
        %v1096 = vand.u32 %v187, 4294901760
        %v1097 = vsub.f32 %v187, %v1096
        %1098 = vmatprep.mubr.f32.mxu0 %v1097
        %v1099 = vand.u32 %v186, 4294901760
        %v1100 = vsub.f32 %v186, %v1099
        %1101 = vmatmul.mubr.f32.gmra.mrb[0].mxu0 %v1100
        %v1102 = vpop.f32.mrb[0].mxu0
        %v1103 = vadd.f32 %v856, %v1102
        %v1104 = vpop.f32.mrb[0].mxu0
        %v1105 = vand.u32 %v190, 4294901760
        %v1106 = vsub.f32 %v190, %v1105
        %1107 = vmatprep.mubr.f32.mxu0 %v1106
        %v1108 = vand.u32 %v189, 4294901760
        %v1109 = vsub.f32 %v189, %v1108
        %1110 = vmatmul.mubr.f32.gmra.mrb[0].mxu0 %v1109
        %v1111 = vpop.f32.mrb[0].mxu0
        %v1112 = vadd.f32 %v863, %v1111
        %v1113 = vpop.f32.mrb[0].mxu0
        %v1114 = vand.u32 %v193, 4294901760
        %v1115 = vsub.f32 %v193, %v1114
        %1116 = vmatprep.mubr.f32.mxu0 %v1115
        %v1117 = vand.u32 %v192, 4294901760
        %v1118 = vsub.f32 %v192, %v1117
        %1119 = vmatmul.mubr.f32.gmra.mrb[0].mxu0 %v1118
        %v1120 = vpop.f32.mrb[0].mxu0
        %v1121 = vadd.f32 %v870, %v1120
        %v1122 = vpop.f32.mrb[0].mxu0
        %v1123 = vand.u32 %v196, 4294901760
        %v1124 = vsub.f32 %v196, %v1123
        %1125 = vmatprep.mubr.f32.mxu0 %v1124
        %v1126 = vand.u32 %v195, 4294901760
        %v1127 = vsub.f32 %v195, %v1126
        %1128 = vmatmul.mubr.f32.gmra.mrb[0].mxu0 %v1127
        %v1129 = vpop.f32.mrb[0].mxu0
        %v1130 = vadd.f32 %v877, %v1129
        %v1131 = vpop.f32.mrb[0].mxu0
        %v1132 = vand.u32 %v199, 4294901760
        %v1133 = vsub.f32 %v199, %v1132
        %1134 = vmatprep.mubr.f32.mxu0 %v1133
        %v1135 = vand.u32 %v198, 4294901760
        %v1136 = vsub.f32 %v198, %v1135
        %1137 = vmatmul.mubr.f32.gmra.mrb[0].mxu0 %v1136
        %v1138 = vpop.f32.mrb[0].mxu0
        %v1139 = vadd.f32 %v884, %v1138
        %v1140 = vpop.f32.mrb[0].mxu0
        %v1141 = vand.u32 %v202, 4294901760
        %v1142 = vsub.f32 %v202, %v1141
        %1143 = vmatprep.mubr.f32.mxu0 %v1142
        %v1144 = vand.u32 %v201, 4294901760
        %v1145 = vsub.f32 %v201, %v1144
        %1146 = vmatmul.mubr.f32.gmra.mrb[0].mxu0 %v1145
        %v1147 = vpop.f32.mrb[0].mxu0
        %v1148 = vadd.f32 %v891, %v1147
        %v1149 = vpop.f32.mrb[0].mxu0
        %v1150 = vand.u32 %v205, 4294901760
        %v1151 = vsub.f32 %v205, %v1150
        %1152 = vmatprep.mubr.f32.mxu0 %v1151
        %v1153 = vand.u32 %v204, 4294901760
        %v1154 = vsub.f32 %v204, %v1153
        %1155 = vmatmul.mubr.f32.gmra.mrb[0].mxu0 %v1154
        %v1156 = vpop.f32.mrb[0].mxu0
        %v1157 = vadd.f32 %v898, %v1156
        %v1158 = vpop.f32.mrb[0].mxu0
        %v1159 = vand.u32 %v208, 4294901760
        %v1160 = vsub.f32 %v208, %v1159
        %1161 = vmatprep.mubr.f32.mxu0 %v1160
        %v1162 = vand.u32 %v207, 4294901760
        %v1163 = vsub.f32 %v207, %v1162
        %1164 = vmatmul.mubr.f32.gmra.mrb[0].mxu0 %v1163
        %v1165 = vpop.f32.mrb[0].mxu0
        %v1166 = vadd.f32 %v905, %v1165
        %v1167 = vpop.f32.mrb[0].mxu0
        %v1168 = vand.u32 %v211, 4294901760
        %v1169 = vsub.f32 %v211, %v1168
        %1170 = vmatprep.mubr.f32.mxu0 %v1169
        %v1171 = vand.u32 %v210, 4294901760
        %v1172 = vsub.f32 %v210, %v1171
        %1173 = vmatmul.mubr.f32.gmra.mrb[0].mxu0 %v1172
        %v1174 = vpop.f32.mrb[0].mxu0
        %v1175 = vadd.f32 %v912, %v1174
        %v1176 = vpop.f32.mrb[0].mxu0
        %v1177 = vand.u32 %v214, 4294901760
        %v1178 = vsub.f32 %v214, %v1177
        %1179 = vmatprep.mubr.f32.mxu0 %v1178
        %v1180 = vand.u32 %v213, 4294901760
        %v1181 = vsub.f32 %v213, %v1180
        %1182 = vmatmul.mubr.f32.gmra.mrb[0].mxu0 %v1181
        %v1183 = vpop.f32.mrb[0].mxu0
        %v1184 = vadd.f32 %v919, %v1183
        %v1185 = vpop.f32.mrb[0].mxu0
        %v1186 = vand.u32 %v217, 4294901760
        %v1187 = vsub.f32 %v217, %v1186
        %1188 = vmatprep.mubr.f32.mxu0 %v1187
        %v1189 = vand.u32 %v216, 4294901760
        %v1190 = vsub.f32 %v216, %v1189
        %1191 = vmatmul.mubr.f32.gmra.mrb[0].mxu0 %v1190
        %v1192 = vpop.f32.mrb[0].mxu0
        %v1193 = vadd.f32 %v926, %v1192
        %v1194 = vpop.f32.mrb[0].mxu0
        %v1195 = vand.u32 %v220, 4294901760
        %v1196 = vsub.f32 %v220, %v1195
        %1197 = vmatprep.mubr.f32.mxu0 %v1196
        %v1198 = vand.u32 %v219, 4294901760
        %v1199 = vsub.f32 %v219, %v1198
        %1200 = vmatmul.mubr.f32.gmra.mrb[0].mxu0 %v1199
        %v1201 = vpop.f32.mrb[0].mxu0
        %v1202 = vadd.f32 %v933, %v1201
        %v1203 = vpop.f32.mrb[0].mxu0
        %v1204 = vand.u32 %v223, 4294901760
        %v1205 = vsub.f32 %v223, %v1204
        %1206 = vmatprep.mubr.f32.mxu0 %v1205
        %v1207 = vand.u32 %v222, 4294901760
        %v1208 = vsub.f32 %v222, %v1207
        %1209 = vmatmul.mubr.f32.gmra.mrb[0].mxu0 %v1208
        %v1210 = vpop.f32.mrb[0].mxu0
        %v1211 = vadd.f32 %v940, %v1210
        %v1212 = vpop.f32.mrb[0].mxu0
        %v1213 = vand.u32 %v226, 4294901760
        %v1214 = vsub.f32 %v226, %v1213
        %1215 = vmatprep.mubr.f32.mxu0 %v1214
        %v1216 = vand.u32 %v225, 4294901760
        %v1217 = vsub.f32 %v225, %v1216
        %1218 = vmatmul.mubr.f32.gmra.mrb[0].mxu0 %v1217
        %v1219 = vpop.f32.mrb[0].mxu0
        %v1220 = vadd.f32 %v947, %v1219
        %v1221 = vpop.f32.mrb[0].mxu0
        %1222 = vdwg.mxu0
        %1223 = vmatprep.subr.mxu0 0.0
        %v1224 = vand.u32 %v228, 4294901760
        %1225 = vmatpush1.msra.mxu0 %v1224
        %1226 = vmatprep.subr.mxu0 0.0
        %v1227 = vand.u32 %v229, 4294901760
        %1228 = vmatpush1.msra.mxu0 %v1227
        %1229 = vmatprep.subr.mxu0 0.0
        %v1230 = vand.u32 %v230, 4294901760
        %1231 = vmatpush1.msra.mxu0 %v1230
        %1232 = vmatprep.subr.mxu0 0.0
        %v1233 = vand.u32 %v231, 4294901760
        %1234 = vmatpush1.msra.mxu0 %v1233
        %1235 = vmatprep.subr.mxu0 0.0
        %v1236 = vand.u32 %v232, 4294901760
        %1237 = vmatpush1.msra.mxu0 %v1236
        %1238 = vmatprep.subr.mxu0 0.0
        %v1239 = vand.u32 %v233, 4294901760
        %1240 = vmatpush1.msra.mxu0 %v1239
        %1241 = vmatprep.subr.mxu0 0.0
        %v1242 = vand.u32 %v234, 4294901760
        %1243 = vmatpush1.msra.mxu0 %v1242
        %1244 = vmatprep.subr.mxu0 0.0
        %v1245 = vand.u32 %v235, 4294901760
        %1246 = vmatpush1.msra.mxu0 %v1245
        %1247 = vmatprep.subr.mxu0 0.0
        %v1248 = vand.u32 %v236, 4294901760
        %1249 = vmatpush1.msra.mxu0 %v1248
        %1250 = vmatprep.subr.mxu0 0.0
        %v1251 = vand.u32 %v237, 4294901760
        %1252 = vmatpush1.msra.mxu0 %v1251
        %1253 = vmatprep.subr.mxu0 0.0
        %v1254 = vand.u32 %v238, 4294901760
        %1255 = vmatpush1.msra.mxu0 %v1254
        %1256 = vmatprep.subr.mxu0 0.0
        %v1257 = vand.u32 %v239, 4294901760
        %1258 = vmatpush1.msra.mxu0 %v1257
        %1259 = vmatprep.subr.mxu0 0.0
        %v1260 = vand.u32 %v240, 4294901760
        %1261 = vmatpush1.msra.mxu0 %v1260
        %1262 = vmatprep.subr.mxu0 0.0
        %v1263 = vand.u32 %v241, 4294901760
        %1264 = vmatpush1.msra.mxu0 %v1263
        %1265 = vmatprep.subr.mxu0 0.0
        %v1266 = vand.u32 %v242, 4294901760
        %1267 = vmatpush1.msra.mxu0 %v1266
        %1268 = vmatprep.subr.mxu0 0.0
        %v1269 = vand.u32 %v243, 4294901760
        %1270 = vmatpush1.msra.mxu0 %v1269
        %1271 = vmatprep.subr.mxu0 0.0
        %v1272 = vand.u32 %v244, 4294901760
        %1273 = vmatpush1.msra.mxu0 %v1272
        %1274 = vmatprep.subr.mxu0 0.0
        %v1275 = vand.u32 %v245, 4294901760
        %1276 = vmatpush1.msra.mxu0 %v1275
        %1277 = vmatprep.subr.mxu0 0.0
        %v1278 = vand.u32 %v246, 4294901760
        %1279 = vmatpush1.msra.mxu0 %v1278
        %1280 = vmatprep.subr.mxu0 0.0
        %v1281 = vand.u32 %v247, 4294901760
        %1282 = vmatpush1.msra.mxu0 %v1281
        %1283 = vmatprep.subr.mxu0 0.0
        %v1284 = vand.u32 %v248, 4294901760
        %1285 = vmatpush1.msra.mxu0 %v1284
        %1286 = vmatprep.subr.mxu0 0.0
        %v1287 = vand.u32 %v249, 4294901760
        %1288 = vmatpush1.msra.mxu0 %v1287
        %1289 = vmatprep.subr.mxu0 0.0
        %v1290 = vand.u32 %v250, 4294901760
        %1291 = vmatpush1.msra.mxu0 %v1290
        %1292 = vmatprep.subr.mxu0 0.0
        %v1293 = vand.u32 %v251, 4294901760
        %1294 = vmatpush1.msra.mxu0 %v1293
        %1295 = vmatprep.subr.mxu0 0.0
        %v1296 = vand.u32 %v252, 4294901760
        %1297 = vmatpush1.msra.mxu0 %v1296
        %1298 = vmatprep.subr.mxu0 0.0
        %v1299 = vand.u32 %v253, 4294901760
        %1300 = vmatpush1.msra.mxu0 %v1299
        %1301 = vmatprep.subr.mxu0 0.0
        %v1302 = vand.u32 %v254, 4294901760
        %1303 = vmatpush1.msra.mxu0 %v1302
        %1304 = vmatprep.subr.mxu0 0.0
        %v1305 = vand.u32 %v255, 4294901760
        %1306 = vmatpush1.msra.mxu0 %v1305
        %1307 = vmatprep.subr.mxu0 0.0
        %v1308 = vand.u32 %v256, 4294901760
        %1309 = vmatpush1.msra.mxu0 %v1308
        %1310 = vmatprep.subr.mxu0 0.0
        %v1311 = vand.u32 %v257, 4294901760
        %1312 = vmatpush1.msra.mxu0 %v1311
        %1313 = vmatprep.subr.mxu0 0.0
        %v1314 = vand.u32 %v258, 4294901760
        %1315 = vmatpush1.msra.mxu0 %v1314
        %1316 = vmatprep.subr.mxu0 0.0
        %v1317 = vand.u32 %v259, 4294901760
        %1318 = vmatpush1.msra.mxu0 %v1317
        %v1319 = vand.u32 %v181, 4294901760
        %v1320 = vsub.f32 %v181, %v1319
        %v1321 = vand.u32 %v1320, 4294901760
        %1322 = vmatprep.mubr.f32.mxu0 %v1321
        %v1323 = vand.u32 %v180, 4294901760
        %v1324 = vsub.f32 %v180, %v1323
        %v1325 = vand.u32 %v1324, 4294901760
        %1326 = vmatmul.mubr.f32.gmra.mrb[0].mxu0 %v1325
        %v1327 = vpop.f32.mrb[0].mxu0
        %v1328 = vadd.f32 %v1085, %v1327
        %v1329 = vpop.f32.mrb[0].mxu0
        %v1330 = vand.u32 %v184, 4294901760
        %v1331 = vsub.f32 %v184, %v1330
        %v1332 = vand.u32 %v1331, 4294901760
        %1333 = vmatprep.mubr.f32.mxu0 %v1332
        %v1334 = vand.u32 %v183, 4294901760
        %v1335 = vsub.f32 %v183, %v1334
        %v1336 = vand.u32 %v1335, 4294901760
        %1337 = vmatmul.mubr.f32.gmra.mrb[0].mxu0 %v1336
        %v1338 = vpop.f32.mrb[0].mxu0
        %v1339 = vadd.f32 %v1094, %v1338
        %v1340 = vpop.f32.mrb[0].mxu0
        %v1341 = vand.u32 %v187, 4294901760
        %v1342 = vsub.f32 %v187, %v1341
        %v1343 = vand.u32 %v1342, 4294901760
        %1344 = vmatprep.mubr.f32.mxu0 %v1343
        %v1345 = vand.u32 %v186, 4294901760
        %v1346 = vsub.f32 %v186, %v1345
        %v1347 = vand.u32 %v1346, 4294901760
        %1348 = vmatmul.mubr.f32.gmra.mrb[0].mxu0 %v1347
        %v1349 = vpop.f32.mrb[0].mxu0
        %v1350 = vadd.f32 %v1103, %v1349
        %v1351 = vpop.f32.mrb[0].mxu0
        %v1352 = vand.u32 %v190, 4294901760
        %v1353 = vsub.f32 %v190, %v1352
        %v1354 = vand.u32 %v1353, 4294901760
        %1355 = vmatprep.mubr.f32.mxu0 %v1354
        %v1356 = vand.u32 %v189, 4294901760
        %v1357 = vsub.f32 %v189, %v1356
        %v1358 = vand.u32 %v1357, 4294901760
        %1359 = vmatmul.mubr.f32.gmra.mrb[0].mxu0 %v1358
        %v1360 = vpop.f32.mrb[0].mxu0
        %v1361 = vadd.f32 %v1112, %v1360
        %v1362 = vpop.f32.mrb[0].mxu0
        %v1363 = vand.u32 %v193, 4294901760
        %v1364 = vsub.f32 %v193, %v1363
        %v1365 = vand.u32 %v1364, 4294901760
        %1366 = vmatprep.mubr.f32.mxu0 %v1365
        %v1367 = vand.u32 %v192, 4294901760
        %v1368 = vsub.f32 %v192, %v1367
        %v1369 = vand.u32 %v1368, 4294901760
        %1370 = vmatmul.mubr.f32.gmra.mrb[0].mxu0 %v1369
        %v1371 = vpop.f32.mrb[0].mxu0
        %v1372 = vadd.f32 %v1121, %v1371
        %v1373 = vpop.f32.mrb[0].mxu0
        %v1374 = vand.u32 %v196, 4294901760
        %v1375 = vsub.f32 %v196, %v1374
        %v1376 = vand.u32 %v1375, 4294901760
        %1377 = vmatprep.mubr.f32.mxu0 %v1376
        %v1378 = vand.u32 %v195, 4294901760
        %v1379 = vsub.f32 %v195, %v1378
        %v1380 = vand.u32 %v1379, 4294901760
        %1381 = vmatmul.mubr.f32.gmra.mrb[0].mxu0 %v1380
        %v1382 = vpop.f32.mrb[0].mxu0
        %v1383 = vadd.f32 %v1130, %v1382
        %v1384 = vpop.f32.mrb[0].mxu0
        %v1385 = vand.u32 %v199, 4294901760
        %v1386 = vsub.f32 %v199, %v1385
        %v1387 = vand.u32 %v1386, 4294901760
        %1388 = vmatprep.mubr.f32.mxu0 %v1387
        %v1389 = vand.u32 %v198, 4294901760
        %v1390 = vsub.f32 %v198, %v1389
        %v1391 = vand.u32 %v1390, 4294901760
        %1392 = vmatmul.mubr.f32.gmra.mrb[0].mxu0 %v1391
        %v1393 = vpop.f32.mrb[0].mxu0
        %v1394 = vadd.f32 %v1139, %v1393
        %v1395 = vpop.f32.mrb[0].mxu0
        %v1396 = vand.u32 %v202, 4294901760
        %v1397 = vsub.f32 %v202, %v1396
        %v1398 = vand.u32 %v1397, 4294901760
        %1399 = vmatprep.mubr.f32.mxu0 %v1398
        %v1400 = vand.u32 %v201, 4294901760
        %v1401 = vsub.f32 %v201, %v1400
        %v1402 = vand.u32 %v1401, 4294901760
        %1403 = vmatmul.mubr.f32.gmra.mrb[0].mxu0 %v1402
        %v1404 = vpop.f32.mrb[0].mxu0
        %v1405 = vadd.f32 %v1148, %v1404
        %v1406 = vpop.f32.mrb[0].mxu0
        %v1407 = vand.u32 %v205, 4294901760
        %v1408 = vsub.f32 %v205, %v1407
        %v1409 = vand.u32 %v1408, 4294901760
        %1410 = vmatprep.mubr.f32.mxu0 %v1409
        %v1411 = vand.u32 %v204, 4294901760
        %v1412 = vsub.f32 %v204, %v1411
        %v1413 = vand.u32 %v1412, 4294901760
        %1414 = vmatmul.mubr.f32.gmra.mrb[0].mxu0 %v1413
        %v1415 = vpop.f32.mrb[0].mxu0
        %v1416 = vadd.f32 %v1157, %v1415
        %v1417 = vpop.f32.mrb[0].mxu0
        %v1418 = vand.u32 %v208, 4294901760
        %v1419 = vsub.f32 %v208, %v1418
        %v1420 = vand.u32 %v1419, 4294901760
        %1421 = vmatprep.mubr.f32.mxu0 %v1420
        %v1422 = vand.u32 %v207, 4294901760
        %v1423 = vsub.f32 %v207, %v1422
        %v1424 = vand.u32 %v1423, 4294901760
        %1425 = vmatmul.mubr.f32.gmra.mrb[0].mxu0 %v1424
        %v1426 = vpop.f32.mrb[0].mxu0
        %v1427 = vadd.f32 %v1166, %v1426
        %v1428 = vpop.f32.mrb[0].mxu0
        %v1429 = vand.u32 %v211, 4294901760
        %v1430 = vsub.f32 %v211, %v1429
        %v1431 = vand.u32 %v1430, 4294901760
        %1432 = vmatprep.mubr.f32.mxu0 %v1431
        %v1433 = vand.u32 %v210, 4294901760
        %v1434 = vsub.f32 %v210, %v1433
        %v1435 = vand.u32 %v1434, 4294901760
        %1436 = vmatmul.mubr.f32.gmra.mrb[0].mxu0 %v1435
        %v1437 = vpop.f32.mrb[0].mxu0
        %v1438 = vadd.f32 %v1175, %v1437
        %v1439 = vpop.f32.mrb[0].mxu0
        %v1440 = vand.u32 %v214, 4294901760
        %v1441 = vsub.f32 %v214, %v1440
        %v1442 = vand.u32 %v1441, 4294901760
        %1443 = vmatprep.mubr.f32.mxu0 %v1442
        %v1444 = vand.u32 %v213, 4294901760
        %v1445 = vsub.f32 %v213, %v1444
        %v1446 = vand.u32 %v1445, 4294901760
        %1447 = vmatmul.mubr.f32.gmra.mrb[0].mxu0 %v1446
        %v1448 = vpop.f32.mrb[0].mxu0
        %v1449 = vadd.f32 %v1184, %v1448
        %v1450 = vpop.f32.mrb[0].mxu0
        %v1451 = vand.u32 %v217, 4294901760
        %v1452 = vsub.f32 %v217, %v1451
        %v1453 = vand.u32 %v1452, 4294901760
        %1454 = vmatprep.mubr.f32.mxu0 %v1453
        %v1455 = vand.u32 %v216, 4294901760
        %v1456 = vsub.f32 %v216, %v1455
        %v1457 = vand.u32 %v1456, 4294901760
        %1458 = vmatmul.mubr.f32.gmra.mrb[0].mxu0 %v1457
        %v1459 = vpop.f32.mrb[0].mxu0
        %v1460 = vadd.f32 %v1193, %v1459
        %v1461 = vpop.f32.mrb[0].mxu0
        %v1462 = vand.u32 %v220, 4294901760
        %v1463 = vsub.f32 %v220, %v1462
        %v1464 = vand.u32 %v1463, 4294901760
        %1465 = vmatprep.mubr.f32.mxu0 %v1464
        %v1466 = vand.u32 %v219, 4294901760
        %v1467 = vsub.f32 %v219, %v1466
        %v1468 = vand.u32 %v1467, 4294901760
        %1469 = vmatmul.mubr.f32.gmra.mrb[0].mxu0 %v1468
        %v1470 = vpop.f32.mrb[0].mxu0
        %v1471 = vadd.f32 %v1202, %v1470
        %v1472 = vpop.f32.mrb[0].mxu0
        %v1473 = vand.u32 %v223, 4294901760
        %v1474 = vsub.f32 %v223, %v1473
        %v1475 = vand.u32 %v1474, 4294901760
        %1476 = vmatprep.mubr.f32.mxu0 %v1475
        %v1477 = vand.u32 %v222, 4294901760
        %v1478 = vsub.f32 %v222, %v1477
        %v1479 = vand.u32 %v1478, 4294901760
        %1480 = vmatmul.mubr.f32.gmra.mrb[0].mxu0 %v1479
        %v1481 = vpop.f32.mrb[0].mxu0
        %v1482 = vadd.f32 %v1211, %v1481
        %v1483 = vpop.f32.mrb[0].mxu0
        %v1484 = vand.u32 %v226, 4294901760
        %v1485 = vsub.f32 %v226, %v1484
        %v1486 = vand.u32 %v1485, 4294901760
        %1487 = vmatprep.mubr.f32.mxu0 %v1486
        %v1488 = vand.u32 %v225, 4294901760
        %v1489 = vsub.f32 %v225, %v1488
        %v1490 = vand.u32 %v1489, 4294901760
        %1491 = vmatmul.mubr.f32.gmra.mrb[0].mxu0 %v1490
        %v1492 = vpop.f32.mrb[0].mxu0
        %v1493 = vadd.f32 %v1220, %v1492
        %v1494 = vpop.f32.mrb[0].mxu0
        %1495 = vdwg.mxu0
        %1496 = vmatprep.subr.mxu0 0.0
        %v1497 = vand.u32 %v228, 4294901760
        %v1498 = vsub.f32 %v228, %v1497
        %v1499 = vand.u32 %v1498, 4294901760
        %1500 = vmatpush1.msra.mxu0 %v1499
        %1501 = vmatprep.subr.mxu0 0.0
        %v1502 = vand.u32 %v229, 4294901760
        %v1503 = vsub.f32 %v229, %v1502
        %v1504 = vand.u32 %v1503, 4294901760
        %1505 = vmatpush1.msra.mxu0 %v1504
        %1506 = vmatprep.subr.mxu0 0.0
        %v1507 = vand.u32 %v230, 4294901760
        %v1508 = vsub.f32 %v230, %v1507
        %v1509 = vand.u32 %v1508, 4294901760
        %1510 = vmatpush1.msra.mxu0 %v1509
        %1511 = vmatprep.subr.mxu0 0.0
        %v1512 = vand.u32 %v231, 4294901760
        %v1513 = vsub.f32 %v231, %v1512
        %v1514 = vand.u32 %v1513, 4294901760
        %1515 = vmatpush1.msra.mxu0 %v1514
        %1516 = vmatprep.subr.mxu0 0.0
        %v1517 = vand.u32 %v232, 4294901760
        %v1518 = vsub.f32 %v232, %v1517
        %v1519 = vand.u32 %v1518, 4294901760
        %1520 = vmatpush1.msra.mxu0 %v1519
        %1521 = vmatprep.subr.mxu0 0.0
        %v1522 = vand.u32 %v233, 4294901760
        %v1523 = vsub.f32 %v233, %v1522
        %v1524 = vand.u32 %v1523, 4294901760
        %1525 = vmatpush1.msra.mxu0 %v1524
        %1526 = vmatprep.subr.mxu0 0.0
        %v1527 = vand.u32 %v234, 4294901760
        %v1528 = vsub.f32 %v234, %v1527
        %v1529 = vand.u32 %v1528, 4294901760
        %1530 = vmatpush1.msra.mxu0 %v1529
        %1531 = vmatprep.subr.mxu0 0.0
        %v1532 = vand.u32 %v235, 4294901760
        %v1533 = vsub.f32 %v235, %v1532
        %v1534 = vand.u32 %v1533, 4294901760
        %1535 = vmatpush1.msra.mxu0 %v1534
        %1536 = vmatprep.subr.mxu0 0.0
        %v1537 = vand.u32 %v236, 4294901760
        %v1538 = vsub.f32 %v236, %v1537
        %v1539 = vand.u32 %v1538, 4294901760
        %1540 = vmatpush1.msra.mxu0 %v1539
        %1541 = vmatprep.subr.mxu0 0.0
        %v1542 = vand.u32 %v237, 4294901760
        %v1543 = vsub.f32 %v237, %v1542
        %v1544 = vand.u32 %v1543, 4294901760
        %1545 = vmatpush1.msra.mxu0 %v1544
        %1546 = vmatprep.subr.mxu0 0.0
        %v1547 = vand.u32 %v238, 4294901760
        %v1548 = vsub.f32 %v238, %v1547
        %v1549 = vand.u32 %v1548, 4294901760
        %1550 = vmatpush1.msra.mxu0 %v1549
        %1551 = vmatprep.subr.mxu0 0.0
        %v1552 = vand.u32 %v239, 4294901760
        %v1553 = vsub.f32 %v239, %v1552
        %v1554 = vand.u32 %v1553, 4294901760
        %1555 = vmatpush1.msra.mxu0 %v1554
        %1556 = vmatprep.subr.mxu0 0.0
        %v1557 = vand.u32 %v240, 4294901760
        %v1558 = vsub.f32 %v240, %v1557
        %v1559 = vand.u32 %v1558, 4294901760
        %1560 = vmatpush1.msra.mxu0 %v1559
        %1561 = vmatprep.subr.mxu0 0.0
        %v1562 = vand.u32 %v241, 4294901760
        %v1563 = vsub.f32 %v241, %v1562
        %v1564 = vand.u32 %v1563, 4294901760
        %1565 = vmatpush1.msra.mxu0 %v1564
        %1566 = vmatprep.subr.mxu0 0.0
        %v1567 = vand.u32 %v242, 4294901760
        %v1568 = vsub.f32 %v242, %v1567
        %v1569 = vand.u32 %v1568, 4294901760
        %1570 = vmatpush1.msra.mxu0 %v1569
        %1571 = vmatprep.subr.mxu0 0.0
        %v1572 = vand.u32 %v243, 4294901760
        %v1573 = vsub.f32 %v243, %v1572
        %v1574 = vand.u32 %v1573, 4294901760
        %1575 = vmatpush1.msra.mxu0 %v1574
        %1576 = vmatprep.subr.mxu0 0.0
        %v1577 = vand.u32 %v244, 4294901760
        %v1578 = vsub.f32 %v244, %v1577
        %v1579 = vand.u32 %v1578, 4294901760
        %1580 = vmatpush1.msra.mxu0 %v1579
        %1581 = vmatprep.subr.mxu0 0.0
        %v1582 = vand.u32 %v245, 4294901760
        %v1583 = vsub.f32 %v245, %v1582
        %v1584 = vand.u32 %v1583, 4294901760
        %1585 = vmatpush1.msra.mxu0 %v1584
        %1586 = vmatprep.subr.mxu0 0.0
        %v1587 = vand.u32 %v246, 4294901760
        %v1588 = vsub.f32 %v246, %v1587
        %v1589 = vand.u32 %v1588, 4294901760
        %1590 = vmatpush1.msra.mxu0 %v1589
        %1591 = vmatprep.subr.mxu0 0.0
        %v1592 = vand.u32 %v247, 4294901760
        %v1593 = vsub.f32 %v247, %v1592
        %v1594 = vand.u32 %v1593, 4294901760
        %1595 = vmatpush1.msra.mxu0 %v1594
        %1596 = vmatprep.subr.mxu0 0.0
        %v1597 = vand.u32 %v248, 4294901760
        %v1598 = vsub.f32 %v248, %v1597
        %v1599 = vand.u32 %v1598, 4294901760
        %1600 = vmatpush1.msra.mxu0 %v1599
        %1601 = vmatprep.subr.mxu0 0.0
        %v1602 = vand.u32 %v249, 4294901760
        %v1603 = vsub.f32 %v249, %v1602
        %v1604 = vand.u32 %v1603, 4294901760
        %1605 = vmatpush1.msra.mxu0 %v1604
        %1606 = vmatprep.subr.mxu0 0.0
        %v1607 = vand.u32 %v250, 4294901760
        %v1608 = vsub.f32 %v250, %v1607
        %v1609 = vand.u32 %v1608, 4294901760
        %1610 = vmatpush1.msra.mxu0 %v1609
        %1611 = vmatprep.subr.mxu0 0.0
        %v1612 = vand.u32 %v251, 4294901760
        %v1613 = vsub.f32 %v251, %v1612
        %v1614 = vand.u32 %v1613, 4294901760
        %1615 = vmatpush1.msra.mxu0 %v1614
        %1616 = vmatprep.subr.mxu0 0.0
        %v1617 = vand.u32 %v252, 4294901760
        %v1618 = vsub.f32 %v252, %v1617
        %v1619 = vand.u32 %v1618, 4294901760
        %1620 = vmatpush1.msra.mxu0 %v1619
        %1621 = vmatprep.subr.mxu0 0.0
        %v1622 = vand.u32 %v253, 4294901760
        %v1623 = vsub.f32 %v253, %v1622
        %v1624 = vand.u32 %v1623, 4294901760
        %1625 = vmatpush1.msra.mxu0 %v1624
        %1626 = vmatprep.subr.mxu0 0.0
        %v1627 = vand.u32 %v254, 4294901760
        %v1628 = vsub.f32 %v254, %v1627
        %v1629 = vand.u32 %v1628, 4294901760
        %1630 = vmatpush1.msra.mxu0 %v1629
        %1631 = vmatprep.subr.mxu0 0.0
        %v1632 = vand.u32 %v255, 4294901760
        %v1633 = vsub.f32 %v255, %v1632
        %v1634 = vand.u32 %v1633, 4294901760
        %1635 = vmatpush1.msra.mxu0 %v1634
        %1636 = vmatprep.subr.mxu0 0.0
        %v1637 = vand.u32 %v256, 4294901760
        %v1638 = vsub.f32 %v256, %v1637
        %v1639 = vand.u32 %v1638, 4294901760
        %1640 = vmatpush1.msra.mxu0 %v1639
        %1641 = vmatprep.subr.mxu0 0.0
        %v1642 = vand.u32 %v257, 4294901760
        %v1643 = vsub.f32 %v257, %v1642
        %v1644 = vand.u32 %v1643, 4294901760
        %1645 = vmatpush1.msra.mxu0 %v1644
        %1646 = vmatprep.subr.mxu0 0.0
        %v1647 = vand.u32 %v258, 4294901760
        %v1648 = vsub.f32 %v258, %v1647
        %v1649 = vand.u32 %v1648, 4294901760
        %1650 = vmatpush1.msra.mxu0 %v1649
        %1651 = vmatprep.subr.mxu0 0.0
        %v1652 = vand.u32 %v259, 4294901760
        %v1653 = vsub.f32 %v259, %v1652
        %v1654 = vand.u32 %v1653, 4294901760
        %1655 = vmatpush1.msra.mxu0 %v1654
        %v1656 = vand.u32 %v181, 4294901760
        %1657 = vmatprep.mubr.f32.mxu0 %v1656
        %v1658 = vand.u32 %v180, 4294901760
        %1659 = vmatmul.mubr.f32.gmra.mrb[0].mxu0 %v1658
        %v1660 = vpop.f32.mrb[0].mxu0
        %v1661 = vadd.f32 %v1328, %v1660
        %v1662 = vpop.f32.mrb[0].mxu0
        %v1663 = vand.u32 %v184, 4294901760
        %1664 = vmatprep.mubr.f32.mxu0 %v1663
        %v1665 = vand.u32 %v183, 4294901760
        %1666 = vmatmul.mubr.f32.gmra.mrb[0].mxu0 %v1665
        %v1667 = vpop.f32.mrb[0].mxu0
        %v1668 = vadd.f32 %v1339, %v1667
        %v1669 = vpop.f32.mrb[0].mxu0
        %v1670 = vand.u32 %v187, 4294901760
        %1671 = vmatprep.mubr.f32.mxu0 %v1670
        %v1672 = vand.u32 %v186, 4294901760
        %1673 = vmatmul.mubr.f32.gmra.mrb[0].mxu0 %v1672
        %v1674 = vpop.f32.mrb[0].mxu0
        %v1675 = vadd.f32 %v1350, %v1674
        %v1676 = vpop.f32.mrb[0].mxu0
        %v1677 = vand.u32 %v190, 4294901760
        %1678 = vmatprep.mubr.f32.mxu0 %v1677
        %v1679 = vand.u32 %v189, 4294901760
        %1680 = vmatmul.mubr.f32.gmra.mrb[0].mxu0 %v1679
        %v1681 = vpop.f32.mrb[0].mxu0
        %v1682 = vadd.f32 %v1361, %v1681
        %v1683 = vpop.f32.mrb[0].mxu0
        %v1684 = vand.u32 %v193, 4294901760
        %1685 = vmatprep.mubr.f32.mxu0 %v1684
        %v1686 = vand.u32 %v192, 4294901760
        %1687 = vmatmul.mubr.f32.gmra.mrb[0].mxu0 %v1686
        %v1688 = vpop.f32.mrb[0].mxu0
        %v1689 = vadd.f32 %v1372, %v1688
        %v1690 = vpop.f32.mrb[0].mxu0
        %v1691 = vand.u32 %v196, 4294901760
        %1692 = vmatprep.mubr.f32.mxu0 %v1691
        %v1693 = vand.u32 %v195, 4294901760
        %1694 = vmatmul.mubr.f32.gmra.mrb[0].mxu0 %v1693
        %v1695 = vpop.f32.mrb[0].mxu0
        %v1696 = vadd.f32 %v1383, %v1695
        %v1697 = vpop.f32.mrb[0].mxu0
        %v1698 = vand.u32 %v199, 4294901760
        %1699 = vmatprep.mubr.f32.mxu0 %v1698
        %v1700 = vand.u32 %v198, 4294901760
        %1701 = vmatmul.mubr.f32.gmra.mrb[0].mxu0 %v1700
        %v1702 = vpop.f32.mrb[0].mxu0
        %v1703 = vadd.f32 %v1394, %v1702
        %v1704 = vpop.f32.mrb[0].mxu0
        %v1705 = vand.u32 %v202, 4294901760
        %1706 = vmatprep.mubr.f32.mxu0 %v1705
        %v1707 = vand.u32 %v201, 4294901760
        %1708 = vmatmul.mubr.f32.gmra.mrb[0].mxu0 %v1707
        %v1709 = vpop.f32.mrb[0].mxu0
        %v1710 = vadd.f32 %v1405, %v1709
        %v1711 = vpop.f32.mrb[0].mxu0
        %v1712 = vand.u32 %v205, 4294901760
        %1713 = vmatprep.mubr.f32.mxu0 %v1712
        %v1714 = vand.u32 %v204, 4294901760
        %1715 = vmatmul.mubr.f32.gmra.mrb[0].mxu0 %v1714
        %v1716 = vpop.f32.mrb[0].mxu0
        %v1717 = vadd.f32 %v1416, %v1716
        %v1718 = vpop.f32.mrb[0].mxu0
        %v1719 = vand.u32 %v208, 4294901760
        %1720 = vmatprep.mubr.f32.mxu0 %v1719
        %v1721 = vand.u32 %v207, 4294901760
        %1722 = vmatmul.mubr.f32.gmra.mrb[0].mxu0 %v1721
        %v1723 = vpop.f32.mrb[0].mxu0
        %v1724 = vadd.f32 %v1427, %v1723
        %v1725 = vpop.f32.mrb[0].mxu0
        %v1726 = vand.u32 %v211, 4294901760
        %1727 = vmatprep.mubr.f32.mxu0 %v1726
        %v1728 = vand.u32 %v210, 4294901760
        %1729 = vmatmul.mubr.f32.gmra.mrb[0].mxu0 %v1728
        %v1730 = vpop.f32.mrb[0].mxu0
        %v1731 = vadd.f32 %v1438, %v1730
        %v1732 = vpop.f32.mrb[0].mxu0
        %v1733 = vand.u32 %v214, 4294901760
        %1734 = vmatprep.mubr.f32.mxu0 %v1733
        %v1735 = vand.u32 %v213, 4294901760
        %1736 = vmatmul.mubr.f32.gmra.mrb[0].mxu0 %v1735
        %v1737 = vpop.f32.mrb[0].mxu0
        %v1738 = vadd.f32 %v1449, %v1737
        %v1739 = vpop.f32.mrb[0].mxu0
        %v1740 = vand.u32 %v217, 4294901760
        %1741 = vmatprep.mubr.f32.mxu0 %v1740
        %v1742 = vand.u32 %v216, 4294901760
        %1743 = vmatmul.mubr.f32.gmra.mrb[0].mxu0 %v1742
        %v1744 = vpop.f32.mrb[0].mxu0
        %v1745 = vadd.f32 %v1460, %v1744
        %v1746 = vpop.f32.mrb[0].mxu0
        %v1747 = vand.u32 %v220, 4294901760
        %1748 = vmatprep.mubr.f32.mxu0 %v1747
        %v1749 = vand.u32 %v219, 4294901760
        %1750 = vmatmul.mubr.f32.gmra.mrb[0].mxu0 %v1749
        %v1751 = vpop.f32.mrb[0].mxu0
        %v1752 = vadd.f32 %v1471, %v1751
        %v1753 = vpop.f32.mrb[0].mxu0
        %v1754 = vand.u32 %v223, 4294901760
        %1755 = vmatprep.mubr.f32.mxu0 %v1754
        %v1756 = vand.u32 %v222, 4294901760
        %1757 = vmatmul.mubr.f32.gmra.mrb[0].mxu0 %v1756
        %v1758 = vpop.f32.mrb[0].mxu0
        %v1759 = vadd.f32 %v1482, %v1758
        %v1760 = vpop.f32.mrb[0].mxu0
        %v1761 = vand.u32 %v226, 4294901760
        %1762 = vmatprep.mubr.f32.mxu0 %v1761
        %v1763 = vand.u32 %v225, 4294901760
        %1764 = vmatmul.mubr.f32.gmra.mrb[0].mxu0 %v1763
        %v1765 = vpop.f32.mrb[0].mxu0
        %v1766 = vadd.f32 %v1493, %v1765
        %v1767 = vpop.f32.mrb[0].mxu0
        %1768 = vdwg.mxu0
        %1769 = vmatprep.subr.mxu0 0.0
        %v1770 = vand.u32 %v228, 4294901760
        %1771 = vmatpush1.msra.mxu0 %v1770
        %1772 = vmatprep.subr.mxu0 0.0
        %v1773 = vand.u32 %v229, 4294901760
        %1774 = vmatpush1.msra.mxu0 %v1773
        %1775 = vmatprep.subr.mxu0 0.0
        %v1776 = vand.u32 %v230, 4294901760
        %1777 = vmatpush1.msra.mxu0 %v1776
        %1778 = vmatprep.subr.mxu0 0.0
        %v1779 = vand.u32 %v231, 4294901760
        %1780 = vmatpush1.msra.mxu0 %v1779
        %1781 = vmatprep.subr.mxu0 0.0
        %v1782 = vand.u32 %v232, 4294901760
        %1783 = vmatpush1.msra.mxu0 %v1782
        %1784 = vmatprep.subr.mxu0 0.0
        %v1785 = vand.u32 %v233, 4294901760
        %1786 = vmatpush1.msra.mxu0 %v1785
        %1787 = vmatprep.subr.mxu0 0.0
        %v1788 = vand.u32 %v234, 4294901760
        %1789 = vmatpush1.msra.mxu0 %v1788
        %1790 = vmatprep.subr.mxu0 0.0
        %v1791 = vand.u32 %v235, 4294901760
        %1792 = vmatpush1.msra.mxu0 %v1791
        %1793 = vmatprep.subr.mxu0 0.0
        %v1794 = vand.u32 %v236, 4294901760
        %1795 = vmatpush1.msra.mxu0 %v1794
        %1796 = vmatprep.subr.mxu0 0.0
        %v1797 = vand.u32 %v237, 4294901760
        %1798 = vmatpush1.msra.mxu0 %v1797
        %1799 = vmatprep.subr.mxu0 0.0
        %v1800 = vand.u32 %v238, 4294901760
        %1801 = vmatpush1.msra.mxu0 %v1800
        %1802 = vmatprep.subr.mxu0 0.0
        %v1803 = vand.u32 %v239, 4294901760
        %1804 = vmatpush1.msra.mxu0 %v1803
        %1805 = vmatprep.subr.mxu0 0.0
        %v1806 = vand.u32 %v240, 4294901760
        %1807 = vmatpush1.msra.mxu0 %v1806
        %1808 = vmatprep.subr.mxu0 0.0
        %v1809 = vand.u32 %v241, 4294901760
        %1810 = vmatpush1.msra.mxu0 %v1809
        %1811 = vmatprep.subr.mxu0 0.0
        %v1812 = vand.u32 %v242, 4294901760
        %1813 = vmatpush1.msra.mxu0 %v1812
        %1814 = vmatprep.subr.mxu0 0.0
        %v1815 = vand.u32 %v243, 4294901760
        %1816 = vmatpush1.msra.mxu0 %v1815
        %1817 = vmatprep.subr.mxu0 0.0
        %v1818 = vand.u32 %v244, 4294901760
        %1819 = vmatpush1.msra.mxu0 %v1818
        %1820 = vmatprep.subr.mxu0 0.0
        %v1821 = vand.u32 %v245, 4294901760
        %1822 = vmatpush1.msra.mxu0 %v1821
        %1823 = vmatprep.subr.mxu0 0.0
        %v1824 = vand.u32 %v246, 4294901760
        %1825 = vmatpush1.msra.mxu0 %v1824
        %1826 = vmatprep.subr.mxu0 0.0
        %v1827 = vand.u32 %v247, 4294901760
        %1828 = vmatpush1.msra.mxu0 %v1827
        %1829 = vmatprep.subr.mxu0 0.0
        %v1830 = vand.u32 %v248, 4294901760
        %1831 = vmatpush1.msra.mxu0 %v1830
        %1832 = vmatprep.subr.mxu0 0.0
        %v1833 = vand.u32 %v249, 4294901760
        %1834 = vmatpush1.msra.mxu0 %v1833
        %1835 = vmatprep.subr.mxu0 0.0
        %v1836 = vand.u32 %v250, 4294901760
        %1837 = vmatpush1.msra.mxu0 %v1836
        %1838 = vmatprep.subr.mxu0 0.0
        %v1839 = vand.u32 %v251, 4294901760
        %1840 = vmatpush1.msra.mxu0 %v1839
        %1841 = vmatprep.subr.mxu0 0.0
        %v1842 = vand.u32 %v252, 4294901760
        %1843 = vmatpush1.msra.mxu0 %v1842
        %1844 = vmatprep.subr.mxu0 0.0
        %v1845 = vand.u32 %v253, 4294901760
        %1846 = vmatpush1.msra.mxu0 %v1845
        %1847 = vmatprep.subr.mxu0 0.0
        %v1848 = vand.u32 %v254, 4294901760
        %1849 = vmatpush1.msra.mxu0 %v1848
        %1850 = vmatprep.subr.mxu0 0.0
        %v1851 = vand.u32 %v255, 4294901760
        %1852 = vmatpush1.msra.mxu0 %v1851
        %1853 = vmatprep.subr.mxu0 0.0
        %v1854 = vand.u32 %v256, 4294901760
        %1855 = vmatpush1.msra.mxu0 %v1854
        %1856 = vmatprep.subr.mxu0 0.0
        %v1857 = vand.u32 %v257, 4294901760
        %1858 = vmatpush1.msra.mxu0 %v1857
        %1859 = vmatprep.subr.mxu0 0.0
        %v1860 = vand.u32 %v258, 4294901760
        %1861 = vmatpush1.msra.mxu0 %v1860
        %1862 = vmatprep.subr.mxu0 0.0
        %v1863 = vand.u32 %v259, 4294901760
        %1864 = vmatpush1.msra.mxu0 %v1863
        %v1865 = vand.u32 %v181, 4294901760
        %1866 = vmatprep.mubr.f32.mxu0 %v1865
        %v1867 = vand.u32 %v180, 4294901760
        %1868 = vmatmul.mubr.f32.gmra.mrb[0].mxu0 %v1867
        %v1869 = vpop.f32.mrb[0].mxu0
        %v1870 = vadd.f32 %v1661, %v1869
        %v1871 = vpop.f32.mrb[0].mxu0
        %v1872 = vand.u32 %v184, 4294901760
        %1873 = vmatprep.mubr.f32.mxu0 %v1872
        %v1874 = vand.u32 %v183, 4294901760
        %1875 = vmatmul.mubr.f32.gmra.mrb[0].mxu0 %v1874
        %v1876 = vpop.f32.mrb[0].mxu0
        %v1877 = vadd.f32 %v1668, %v1876
        %v1878 = vpop.f32.mrb[0].mxu0
        %v1879 = vand.u32 %v187, 4294901760
        %1880 = vmatprep.mubr.f32.mxu0 %v1879
        %v1881 = vand.u32 %v186, 4294901760
        %1882 = vmatmul.mubr.f32.gmra.mrb[0].mxu0 %v1881
        %v1883 = vpop.f32.mrb[0].mxu0
        %v1884 = vadd.f32 %v1675, %v1883
        %v1885 = vpop.f32.mrb[0].mxu0
        %v1886 = vand.u32 %v190, 4294901760
        %1887 = vmatprep.mubr.f32.mxu0 %v1886
        %v1888 = vand.u32 %v189, 4294901760
        %1889 = vmatmul.mubr.f32.gmra.mrb[0].mxu0 %v1888
        %v1890 = vpop.f32.mrb[0].mxu0
        %v1891 = vadd.f32 %v1682, %v1890
        %v1892 = vpop.f32.mrb[0].mxu0
        %v1893 = vand.u32 %v193, 4294901760
        %1894 = vmatprep.mubr.f32.mxu0 %v1893
        %v1895 = vand.u32 %v192, 4294901760
        %1896 = vmatmul.mubr.f32.gmra.mrb[0].mxu0 %v1895
        %v1897 = vpop.f32.mrb[0].mxu0
        %v1898 = vadd.f32 %v1689, %v1897
        %v1899 = vpop.f32.mrb[0].mxu0
        %v1900 = vand.u32 %v196, 4294901760
        %1901 = vmatprep.mubr.f32.mxu0 %v1900
        %v1902 = vand.u32 %v195, 4294901760
        %1903 = vmatmul.mubr.f32.gmra.mrb[0].mxu0 %v1902
        %v1904 = vpop.f32.mrb[0].mxu0
        %v1905 = vadd.f32 %v1696, %v1904
        %v1906 = vpop.f32.mrb[0].mxu0
        %v1907 = vand.u32 %v199, 4294901760
        %1908 = vmatprep.mubr.f32.mxu0 %v1907
        %v1909 = vand.u32 %v198, 4294901760
        %1910 = vmatmul.mubr.f32.gmra.mrb[0].mxu0 %v1909
        %v1911 = vpop.f32.mrb[0].mxu0
        %v1912 = vadd.f32 %v1703, %v1911
        %v1913 = vpop.f32.mrb[0].mxu0
        %v1914 = vand.u32 %v202, 4294901760
        %1915 = vmatprep.mubr.f32.mxu0 %v1914
        %v1916 = vand.u32 %v201, 4294901760
        %1917 = vmatmul.mubr.f32.gmra.mrb[0].mxu0 %v1916
        %v1918 = vpop.f32.mrb[0].mxu0
        %v1919 = vadd.f32 %v1710, %v1918
        %v1920 = vpop.f32.mrb[0].mxu0
        %v1921 = vand.u32 %v205, 4294901760
        %1922 = vmatprep.mubr.f32.mxu0 %v1921
        %v1923 = vand.u32 %v204, 4294901760
        %1924 = vmatmul.mubr.f32.gmra.mrb[0].mxu0 %v1923
        %v1925 = vpop.f32.mrb[0].mxu0
        %v1926 = vadd.f32 %v1717, %v1925
        %v1927 = vpop.f32.mrb[0].mxu0
        %v1928 = vand.u32 %v208, 4294901760
        %1929 = vmatprep.mubr.f32.mxu0 %v1928
        %v1930 = vand.u32 %v207, 4294901760
        %1931 = vmatmul.mubr.f32.gmra.mrb[0].mxu0 %v1930
        %v1932 = vpop.f32.mrb[0].mxu0
        %v1933 = vadd.f32 %v1724, %v1932
        %v1934 = vpop.f32.mrb[0].mxu0
        %v1935 = vand.u32 %v211, 4294901760
        %1936 = vmatprep.mubr.f32.mxu0 %v1935
        %v1937 = vand.u32 %v210, 4294901760
        %1938 = vmatmul.mubr.f32.gmra.mrb[0].mxu0 %v1937
        %v1939 = vpop.f32.mrb[0].mxu0
        %v1940 = vadd.f32 %v1731, %v1939
        %v1941 = vpop.f32.mrb[0].mxu0
        %v1942 = vand.u32 %v214, 4294901760
        %1943 = vmatprep.mubr.f32.mxu0 %v1942
        %v1944 = vand.u32 %v213, 4294901760
        %1945 = vmatmul.mubr.f32.gmra.mrb[0].mxu0 %v1944
        %v1946 = vpop.f32.mrb[0].mxu0
        %v1947 = vadd.f32 %v1738, %v1946
        %v1948 = vpop.f32.mrb[0].mxu0
        %v1949 = vand.u32 %v217, 4294901760
        %1950 = vmatprep.mubr.f32.mxu0 %v1949
        %v1951 = vand.u32 %v216, 4294901760
        %1952 = vmatmul.mubr.f32.gmra.mrb[0].mxu0 %v1951
        %v1953 = vpop.f32.mrb[0].mxu0
        %v1954 = vadd.f32 %v1745, %v1953
        %v1955 = vpop.f32.mrb[0].mxu0
        %v1956 = vand.u32 %v220, 4294901760
        %1957 = vmatprep.mubr.f32.mxu0 %v1956
        %v1958 = vand.u32 %v219, 4294901760
        %1959 = vmatmul.mubr.f32.gmra.mrb[0].mxu0 %v1958
        %v1960 = vpop.f32.mrb[0].mxu0
        %v1961 = vadd.f32 %v1752, %v1960
        %v1962 = vpop.f32.mrb[0].mxu0
        %v1963 = vand.u32 %v223, 4294901760
        %1964 = vmatprep.mubr.f32.mxu0 %v1963
        %v1965 = vand.u32 %v222, 4294901760
        %1966 = vmatmul.mubr.f32.gmra.mrb[0].mxu0 %v1965
        %v1967 = vpop.f32.mrb[0].mxu0
        %v1968 = vadd.f32 %v1759, %v1967
        %v1969 = vpop.f32.mrb[0].mxu0
        %v1970 = vand.u32 %v226, 4294901760
        %1971 = vmatprep.mubr.f32.mxu0 %v1970
        %v1972 = vand.u32 %v225, 4294901760
        %1973 = vmatmul.mubr.f32.gmra.mrb[0].mxu0 %v1972
        %v1974 = vpop.f32.mrb[0].mxu0
        %v1975 = vadd.f32 %v1766, %v1974
        %v1976 = vpop.f32.mrb[0].mxu0
        %1977 = vdwg.mxu0
        %1978 = vmatprep.subr.mxu0 0.0
        %v1979 = vand.u32 %v260, 4294901760
        %1980 = vmatpush1.msra.mxu0 %v1979
        %1981 = vmatprep.subr.mxu0 0.0
        %v1982 = vand.u32 %v261, 4294901760
        %1983 = vmatpush1.msra.mxu0 %v1982
        %1984 = vmatprep.subr.mxu0 0.0
        %v1985 = vand.u32 %v262, 4294901760
        %1986 = vmatpush1.msra.mxu0 %v1985
        %1987 = vmatprep.subr.mxu0 0.0
        %v1988 = vand.u32 %v263, 4294901760
        %1989 = vmatpush1.msra.mxu0 %v1988
        %1990 = vmatprep.subr.mxu0 0.0
        %v1991 = vand.u32 %v264, 4294901760
        %1992 = vmatpush1.msra.mxu0 %v1991
        %1993 = vmatprep.subr.mxu0 0.0
        %v1994 = vand.u32 %v265, 4294901760
        %1995 = vmatpush1.msra.mxu0 %v1994
        %1996 = vmatprep.subr.mxu0 0.0
        %v1997 = vand.u32 %v266, 4294901760
        %1998 = vmatpush1.msra.mxu0 %v1997
        %1999 = vmatprep.subr.mxu0 0.0
        %v2000 = vand.u32 %v267, 4294901760
        %2001 = vmatpush1.msra.mxu0 %v2000
        %2002 = vmatprep.subr.mxu0 0.0
        %v2003 = vand.u32 %v268, 4294901760
        %2004 = vmatpush1.msra.mxu0 %v2003
        %2005 = vmatprep.subr.mxu0 0.0
        %v2006 = vand.u32 %v269, 4294901760
        %2007 = vmatpush1.msra.mxu0 %v2006
        %2008 = vmatprep.subr.mxu0 0.0
        %v2009 = vand.u32 %v270, 4294901760
        %2010 = vmatpush1.msra.mxu0 %v2009
        %2011 = vmatprep.subr.mxu0 0.0
        %v2012 = vand.u32 %v271, 4294901760
        %2013 = vmatpush1.msra.mxu0 %v2012
        %2014 = vmatprep.subr.mxu0 0.0
        %v2015 = vand.u32 %v272, 4294901760
        %2016 = vmatpush1.msra.mxu0 %v2015
        %2017 = vmatprep.subr.mxu0 0.0
        %v2018 = vand.u32 %v273, 4294901760
        %2019 = vmatpush1.msra.mxu0 %v2018
        %2020 = vmatprep.subr.mxu0 0.0
        %v2021 = vand.u32 %v274, 4294901760
        %2022 = vmatpush1.msra.mxu0 %v2021
        %2023 = vmatprep.subr.mxu0 0.0
        %v2024 = vand.u32 %v275, 4294901760
        %2025 = vmatpush1.msra.mxu0 %v2024
        %2026 = vmatprep.subr.mxu0 0.0
        %2027 = vmatpush1.msra.mxu0 0.0
        %2028 = vmatprep.subr.mxu0 0.0
        %2029 = vmatpush1.msra.mxu0 0.0
        %2030 = vmatprep.subr.mxu0 0.0
        %2031 = vmatpush1.msra.mxu0 0.0
        %2032 = vmatprep.subr.mxu0 0.0
        %2033 = vmatpush1.msra.mxu0 0.0
        %2034 = vmatprep.subr.mxu0 0.0
        %2035 = vmatpush1.msra.mxu0 0.0
        %2036 = vmatprep.subr.mxu0 0.0
        %2037 = vmatpush1.msra.mxu0 0.0
        %2038 = vmatprep.subr.mxu0 0.0
        %2039 = vmatpush1.msra.mxu0 0.0
        %2040 = vmatprep.subr.mxu0 0.0
        %2041 = vmatpush1.msra.mxu0 0.0
        %2042 = vmatprep.subr.mxu0 0.0
        %2043 = vmatpush1.msra.mxu0 0.0
        %2044 = vmatprep.subr.mxu0 0.0
        %2045 = vmatpush1.msra.mxu0 0.0
        %2046 = vmatprep.subr.mxu0 0.0
        %2047 = vmatpush1.msra.mxu0 0.0
        %2048 = vmatprep.subr.mxu0 0.0
        %2049 = vmatpush1.msra.mxu0 0.0
        %2050 = vmatprep.subr.mxu0 0.0
        %2051 = vmatpush1.msra.mxu0 0.0
        %2052 = vmatprep.subr.mxu0 0.0
        %2053 = vmatpush1.msra.mxu0 0.0
        %2054 = vmatprep.subr.mxu0 0.0
        %2055 = vmatpush1.msra.mxu0 0.0
        %2056 = vmatprep.subr.mxu0 0.0
        %2057 = vmatpush1.msra.mxu0 0.0
        %2058 = vmatprep.mubr.f32.mxu0 0.0
        %v2059 = vand.u32 %v182, 4294901760
        %v2060 = vsub.f32 %v182, %v2059
        %v2061 = vand.u32 %v2060, 4294901760
        %v2062 = vsub.f32 %v2060, %v2061
        %v2063 = vand.u32 %v2062, 4294901760
        %2064 = vmatmul.mubr.f32.gmra.mrb[0].mxu0 %v2063
        %v2065 = vpop.f32.mrb[0].mxu0
        %v2066 = vadd.f32 %v1870, %v2065
        %v2067 = vpop.f32.mrb[0].mxu0
        %2068 = vmatprep.mubr.f32.mxu0 0.0
        %v2069 = vand.u32 %v185, 4294901760
        %v2070 = vsub.f32 %v185, %v2069
        %v2071 = vand.u32 %v2070, 4294901760
        %v2072 = vsub.f32 %v2070, %v2071
        %v2073 = vand.u32 %v2072, 4294901760
        %2074 = vmatmul.mubr.f32.gmra.mrb[0].mxu0 %v2073
        %v2075 = vpop.f32.mrb[0].mxu0
        %v2076 = vadd.f32 %v1877, %v2075
        %v2077 = vpop.f32.mrb[0].mxu0
        %2078 = vmatprep.mubr.f32.mxu0 0.0
        %v2079 = vand.u32 %v188, 4294901760
        %v2080 = vsub.f32 %v188, %v2079
        %v2081 = vand.u32 %v2080, 4294901760
        %v2082 = vsub.f32 %v2080, %v2081
        %v2083 = vand.u32 %v2082, 4294901760
        %2084 = vmatmul.mubr.f32.gmra.mrb[0].mxu0 %v2083
        %v2085 = vpop.f32.mrb[0].mxu0
        %v2086 = vadd.f32 %v1884, %v2085
        %v2087 = vpop.f32.mrb[0].mxu0
        %2088 = vmatprep.mubr.f32.mxu0 0.0
        %v2089 = vand.u32 %v191, 4294901760
        %v2090 = vsub.f32 %v191, %v2089
        %v2091 = vand.u32 %v2090, 4294901760
        %v2092 = vsub.f32 %v2090, %v2091
        %v2093 = vand.u32 %v2092, 4294901760
        %2094 = vmatmul.mubr.f32.gmra.mrb[0].mxu0 %v2093
        %v2095 = vpop.f32.mrb[0].mxu0
        %v2096 = vadd.f32 %v1891, %v2095
        %v2097 = vpop.f32.mrb[0].mxu0
        %2098 = vmatprep.mubr.f32.mxu0 0.0
        %v2099 = vand.u32 %v194, 4294901760
        %v2100 = vsub.f32 %v194, %v2099
        %v2101 = vand.u32 %v2100, 4294901760
        %v2102 = vsub.f32 %v2100, %v2101
        %v2103 = vand.u32 %v2102, 4294901760
        %2104 = vmatmul.mubr.f32.gmra.mrb[0].mxu0 %v2103
        %v2105 = vpop.f32.mrb[0].mxu0
        %v2106 = vadd.f32 %v1898, %v2105
        %v2107 = vpop.f32.mrb[0].mxu0
        %2108 = vmatprep.mubr.f32.mxu0 0.0
        %v2109 = vand.u32 %v197, 4294901760
        %v2110 = vsub.f32 %v197, %v2109
        %v2111 = vand.u32 %v2110, 4294901760
        %v2112 = vsub.f32 %v2110, %v2111
        %v2113 = vand.u32 %v2112, 4294901760
        %2114 = vmatmul.mubr.f32.gmra.mrb[0].mxu0 %v2113
        %v2115 = vpop.f32.mrb[0].mxu0
        %v2116 = vadd.f32 %v1905, %v2115
        %v2117 = vpop.f32.mrb[0].mxu0
        %2118 = vmatprep.mubr.f32.mxu0 0.0
        %v2119 = vand.u32 %v200, 4294901760
        %v2120 = vsub.f32 %v200, %v2119
        %v2121 = vand.u32 %v2120, 4294901760
        %v2122 = vsub.f32 %v2120, %v2121
        %v2123 = vand.u32 %v2122, 4294901760
        %2124 = vmatmul.mubr.f32.gmra.mrb[0].mxu0 %v2123
        %v2125 = vpop.f32.mrb[0].mxu0
        %v2126 = vadd.f32 %v1912, %v2125
        %v2127 = vpop.f32.mrb[0].mxu0
        %2128 = vmatprep.mubr.f32.mxu0 0.0
        %v2129 = vand.u32 %v203, 4294901760
        %v2130 = vsub.f32 %v203, %v2129
        %v2131 = vand.u32 %v2130, 4294901760
        %v2132 = vsub.f32 %v2130, %v2131
        %v2133 = vand.u32 %v2132, 4294901760
        %2134 = vmatmul.mubr.f32.gmra.mrb[0].mxu0 %v2133
        %v2135 = vpop.f32.mrb[0].mxu0
        %v2136 = vadd.f32 %v1919, %v2135
        %v2137 = vpop.f32.mrb[0].mxu0
        %2138 = vmatprep.mubr.f32.mxu0 0.0
        %v2139 = vand.u32 %v206, 4294901760
        %v2140 = vsub.f32 %v206, %v2139
        %v2141 = vand.u32 %v2140, 4294901760
        %v2142 = vsub.f32 %v2140, %v2141
        %v2143 = vand.u32 %v2142, 4294901760
        %2144 = vmatmul.mubr.f32.gmra.mrb[0].mxu0 %v2143
        %v2145 = vpop.f32.mrb[0].mxu0
        %v2146 = vadd.f32 %v1926, %v2145
        %v2147 = vpop.f32.mrb[0].mxu0
        %2148 = vmatprep.mubr.f32.mxu0 0.0
        %v2149 = vand.u32 %v209, 4294901760
        %v2150 = vsub.f32 %v209, %v2149
        %v2151 = vand.u32 %v2150, 4294901760
        %v2152 = vsub.f32 %v2150, %v2151
        %v2153 = vand.u32 %v2152, 4294901760
        %2154 = vmatmul.mubr.f32.gmra.mrb[0].mxu0 %v2153
        %v2155 = vpop.f32.mrb[0].mxu0
        %v2156 = vadd.f32 %v1933, %v2155
        %v2157 = vpop.f32.mrb[0].mxu0
        %2158 = vmatprep.mubr.f32.mxu0 0.0
        %v2159 = vand.u32 %v212, 4294901760
        %v2160 = vsub.f32 %v212, %v2159
        %v2161 = vand.u32 %v2160, 4294901760
        %v2162 = vsub.f32 %v2160, %v2161
        %v2163 = vand.u32 %v2162, 4294901760
        %2164 = vmatmul.mubr.f32.gmra.mrb[0].mxu0 %v2163
        %v2165 = vpop.f32.mrb[0].mxu0
        %v2166 = vadd.f32 %v1940, %v2165
        %v2167 = vpop.f32.mrb[0].mxu0
        %2168 = vmatprep.mubr.f32.mxu0 0.0
        %v2169 = vand.u32 %v215, 4294901760
        %v2170 = vsub.f32 %v215, %v2169
        %v2171 = vand.u32 %v2170, 4294901760
        %v2172 = vsub.f32 %v2170, %v2171
        %v2173 = vand.u32 %v2172, 4294901760
        %2174 = vmatmul.mubr.f32.gmra.mrb[0].mxu0 %v2173
        %v2175 = vpop.f32.mrb[0].mxu0
        %v2176 = vadd.f32 %v1947, %v2175
        %v2177 = vpop.f32.mrb[0].mxu0
        %2178 = vmatprep.mubr.f32.mxu0 0.0
        %v2179 = vand.u32 %v218, 4294901760
        %v2180 = vsub.f32 %v218, %v2179
        %v2181 = vand.u32 %v2180, 4294901760
        %v2182 = vsub.f32 %v2180, %v2181
        %v2183 = vand.u32 %v2182, 4294901760
        %2184 = vmatmul.mubr.f32.gmra.mrb[0].mxu0 %v2183
        %v2185 = vpop.f32.mrb[0].mxu0
        %v2186 = vadd.f32 %v1954, %v2185
        %v2187 = vpop.f32.mrb[0].mxu0
        %2188 = vmatprep.mubr.f32.mxu0 0.0
        %v2189 = vand.u32 %v221, 4294901760
        %v2190 = vsub.f32 %v221, %v2189
        %v2191 = vand.u32 %v2190, 4294901760
        %v2192 = vsub.f32 %v2190, %v2191
        %v2193 = vand.u32 %v2192, 4294901760
        %2194 = vmatmul.mubr.f32.gmra.mrb[0].mxu0 %v2193
        %v2195 = vpop.f32.mrb[0].mxu0
        %v2196 = vadd.f32 %v1961, %v2195
        %v2197 = vpop.f32.mrb[0].mxu0
        %2198 = vmatprep.mubr.f32.mxu0 0.0
        %v2199 = vand.u32 %v224, 4294901760
        %v2200 = vsub.f32 %v224, %v2199
        %v2201 = vand.u32 %v2200, 4294901760
        %v2202 = vsub.f32 %v2200, %v2201
        %v2203 = vand.u32 %v2202, 4294901760
        %2204 = vmatmul.mubr.f32.gmra.mrb[0].mxu0 %v2203
        %v2205 = vpop.f32.mrb[0].mxu0
        %v2206 = vadd.f32 %v1968, %v2205
        %v2207 = vpop.f32.mrb[0].mxu0
        %2208 = vmatprep.mubr.f32.mxu0 0.0
        %v2209 = vand.u32 %v227, 4294901760
        %v2210 = vsub.f32 %v227, %v2209
        %v2211 = vand.u32 %v2210, 4294901760
        %v2212 = vsub.f32 %v2210, %v2211
        %v2213 = vand.u32 %v2212, 4294901760
        %2214 = vmatmul.mubr.f32.gmra.mrb[0].mxu0 %v2213
        %v2215 = vpop.f32.mrb[0].mxu0
        %v2216 = vadd.f32 %v1975, %v2215
        %v2217 = vpop.f32.mrb[0].mxu0
        %2218 = vdwg.mxu0
        %2219 = vmatprep.subr.mxu0 0.0
        %v2220 = vand.u32 %v260, 4294901760
        %v2221 = vsub.f32 %v260, %v2220
        %v2222 = vand.u32 %v2221, 4294901760
        %v2223 = vsub.f32 %v2221, %v2222
        %v2224 = vand.u32 %v2223, 4294901760
        %2225 = vmatpush1.msra.mxu0 %v2224
        %2226 = vmatprep.subr.mxu0 0.0
        %v2227 = vand.u32 %v261, 4294901760
        %v2228 = vsub.f32 %v261, %v2227
        %v2229 = vand.u32 %v2228, 4294901760
        %v2230 = vsub.f32 %v2228, %v2229
        %v2231 = vand.u32 %v2230, 4294901760
        %2232 = vmatpush1.msra.mxu0 %v2231
        %2233 = vmatprep.subr.mxu0 0.0
        %v2234 = vand.u32 %v262, 4294901760
        %v2235 = vsub.f32 %v262, %v2234
        %v2236 = vand.u32 %v2235, 4294901760
        %v2237 = vsub.f32 %v2235, %v2236
        %v2238 = vand.u32 %v2237, 4294901760
        %2239 = vmatpush1.msra.mxu0 %v2238
        %2240 = vmatprep.subr.mxu0 0.0
        %v2241 = vand.u32 %v263, 4294901760
        %v2242 = vsub.f32 %v263, %v2241
        %v2243 = vand.u32 %v2242, 4294901760
        %v2244 = vsub.f32 %v2242, %v2243
        %v2245 = vand.u32 %v2244, 4294901760
        %2246 = vmatpush1.msra.mxu0 %v2245
        %2247 = vmatprep.subr.mxu0 0.0
        %v2248 = vand.u32 %v264, 4294901760
        %v2249 = vsub.f32 %v264, %v2248
        %v2250 = vand.u32 %v2249, 4294901760
        %v2251 = vsub.f32 %v2249, %v2250
        %v2252 = vand.u32 %v2251, 4294901760
        %2253 = vmatpush1.msra.mxu0 %v2252
        %2254 = vmatprep.subr.mxu0 0.0
        %v2255 = vand.u32 %v265, 4294901760
        %v2256 = vsub.f32 %v265, %v2255
        %v2257 = vand.u32 %v2256, 4294901760
        %v2258 = vsub.f32 %v2256, %v2257
        %v2259 = vand.u32 %v2258, 4294901760
        %2260 = vmatpush1.msra.mxu0 %v2259
        %2261 = vmatprep.subr.mxu0 0.0
        %v2262 = vand.u32 %v266, 4294901760
        %v2263 = vsub.f32 %v266, %v2262
        %v2264 = vand.u32 %v2263, 4294901760
        %v2265 = vsub.f32 %v2263, %v2264
        %v2266 = vand.u32 %v2265, 4294901760
        %2267 = vmatpush1.msra.mxu0 %v2266
        %2268 = vmatprep.subr.mxu0 0.0
        %v2269 = vand.u32 %v267, 4294901760
        %v2270 = vsub.f32 %v267, %v2269
        %v2271 = vand.u32 %v2270, 4294901760
        %v2272 = vsub.f32 %v2270, %v2271
        %v2273 = vand.u32 %v2272, 4294901760
        %2274 = vmatpush1.msra.mxu0 %v2273
        %2275 = vmatprep.subr.mxu0 0.0
        %v2276 = vand.u32 %v268, 4294901760
        %v2277 = vsub.f32 %v268, %v2276
        %v2278 = vand.u32 %v2277, 4294901760
        %v2279 = vsub.f32 %v2277, %v2278
        %v2280 = vand.u32 %v2279, 4294901760
        %2281 = vmatpush1.msra.mxu0 %v2280
        %2282 = vmatprep.subr.mxu0 0.0
        %v2283 = vand.u32 %v269, 4294901760
        %v2284 = vsub.f32 %v269, %v2283
        %v2285 = vand.u32 %v2284, 4294901760
        %v2286 = vsub.f32 %v2284, %v2285
        %v2287 = vand.u32 %v2286, 4294901760
        %2288 = vmatpush1.msra.mxu0 %v2287
        %2289 = vmatprep.subr.mxu0 0.0
        %v2290 = vand.u32 %v270, 4294901760
        %v2291 = vsub.f32 %v270, %v2290
        %v2292 = vand.u32 %v2291, 4294901760
        %v2293 = vsub.f32 %v2291, %v2292
        %v2294 = vand.u32 %v2293, 4294901760
        %2295 = vmatpush1.msra.mxu0 %v2294
        %2296 = vmatprep.subr.mxu0 0.0
        %v2297 = vand.u32 %v271, 4294901760
        %v2298 = vsub.f32 %v271, %v2297
        %v2299 = vand.u32 %v2298, 4294901760
        %v2300 = vsub.f32 %v2298, %v2299
        %v2301 = vand.u32 %v2300, 4294901760
        %2302 = vmatpush1.msra.mxu0 %v2301
        %2303 = vmatprep.subr.mxu0 0.0
        %v2304 = vand.u32 %v272, 4294901760
        %v2305 = vsub.f32 %v272, %v2304
        %v2306 = vand.u32 %v2305, 4294901760
        %v2307 = vsub.f32 %v2305, %v2306
        %v2308 = vand.u32 %v2307, 4294901760
        %2309 = vmatpush1.msra.mxu0 %v2308
        %2310 = vmatprep.subr.mxu0 0.0
        %v2311 = vand.u32 %v273, 4294901760
        %v2312 = vsub.f32 %v273, %v2311
        %v2313 = vand.u32 %v2312, 4294901760
        %v2314 = vsub.f32 %v2312, %v2313
        %v2315 = vand.u32 %v2314, 4294901760
        %2316 = vmatpush1.msra.mxu0 %v2315
        %2317 = vmatprep.subr.mxu0 0.0
        %v2318 = vand.u32 %v274, 4294901760
        %v2319 = vsub.f32 %v274, %v2318
        %v2320 = vand.u32 %v2319, 4294901760
        %v2321 = vsub.f32 %v2319, %v2320
        %v2322 = vand.u32 %v2321, 4294901760
        %2323 = vmatpush1.msra.mxu0 %v2322
        %2324 = vmatprep.subr.mxu0 0.0
        %v2325 = vand.u32 %v275, 4294901760
        %v2326 = vsub.f32 %v275, %v2325
        %v2327 = vand.u32 %v2326, 4294901760
        %v2328 = vsub.f32 %v2326, %v2327
        %v2329 = vand.u32 %v2328, 4294901760
        %2330 = vmatpush1.msra.mxu0 %v2329
        %2331 = vmatprep.subr.mxu0 0.0
        %2332 = vmatpush1.msra.mxu0 0.0
        %2333 = vmatprep.subr.mxu0 0.0
        %2334 = vmatpush1.msra.mxu0 0.0
        %2335 = vmatprep.subr.mxu0 0.0
        %2336 = vmatpush1.msra.mxu0 0.0
        %2337 = vmatprep.subr.mxu0 0.0
        %2338 = vmatpush1.msra.mxu0 0.0
        %2339 = vmatprep.subr.mxu0 0.0
        %2340 = vmatpush1.msra.mxu0 0.0
        %2341 = vmatprep.subr.mxu0 0.0
        %2342 = vmatpush1.msra.mxu0 0.0
        %2343 = vmatprep.subr.mxu0 0.0
        %2344 = vmatpush1.msra.mxu0 0.0
        %2345 = vmatprep.subr.mxu0 0.0
        %2346 = vmatpush1.msra.mxu0 0.0
        %2347 = vmatprep.subr.mxu0 0.0
        %2348 = vmatpush1.msra.mxu0 0.0
        %2349 = vmatprep.subr.mxu0 0.0
        %2350 = vmatpush1.msra.mxu0 0.0
        %2351 = vmatprep.subr.mxu0 0.0
        %2352 = vmatpush1.msra.mxu0 0.0
        %2353 = vmatprep.subr.mxu0 0.0
        %2354 = vmatpush1.msra.mxu0 0.0
        %2355 = vmatprep.subr.mxu0 0.0
        %2356 = vmatpush1.msra.mxu0 0.0
        %2357 = vmatprep.subr.mxu0 0.0
        %2358 = vmatpush1.msra.mxu0 0.0
        %2359 = vmatprep.subr.mxu0 0.0
        %2360 = vmatpush1.msra.mxu0 0.0
        %2361 = vmatprep.subr.mxu0 0.0
        %2362 = vmatpush1.msra.mxu0 0.0
        %2363 = vmatprep.mubr.f32.mxu0 0.0
        %v2364 = vand.u32 %v182, 4294901760
        %2365 = vmatmul.mubr.f32.gmra.mrb[0].mxu0 %v2364
        %v2366 = vpop.f32.mrb[0].mxu0
        %v2367 = vadd.f32 %v2066, %v2366
        %v2368 = vpop.f32.mrb[0].mxu0
        %2369 = vmatprep.mubr.f32.mxu0 0.0
        %v2370 = vand.u32 %v185, 4294901760
        %2371 = vmatmul.mubr.f32.gmra.mrb[0].mxu0 %v2370
        %v2372 = vpop.f32.mrb[0].mxu0
        %v2373 = vadd.f32 %v2076, %v2372
        %v2374 = vpop.f32.mrb[0].mxu0
        %2375 = vmatprep.mubr.f32.mxu0 0.0
        %v2376 = vand.u32 %v188, 4294901760
        %2377 = vmatmul.mubr.f32.gmra.mrb[0].mxu0 %v2376
        %v2378 = vpop.f32.mrb[0].mxu0
        %v2379 = vadd.f32 %v2086, %v2378
        %v2380 = vpop.f32.mrb[0].mxu0
        %2381 = vmatprep.mubr.f32.mxu0 0.0
        %v2382 = vand.u32 %v191, 4294901760
        %2383 = vmatmul.mubr.f32.gmra.mrb[0].mxu0 %v2382
        %v2384 = vpop.f32.mrb[0].mxu0
        %v2385 = vadd.f32 %v2096, %v2384
        %v2386 = vpop.f32.mrb[0].mxu0
        %2387 = vmatprep.mubr.f32.mxu0 0.0
        %v2388 = vand.u32 %v194, 4294901760
        %2389 = vmatmul.mubr.f32.gmra.mrb[0].mxu0 %v2388
        %v2390 = vpop.f32.mrb[0].mxu0
        %v2391 = vadd.f32 %v2106, %v2390
        %v2392 = vpop.f32.mrb[0].mxu0
        %2393 = vmatprep.mubr.f32.mxu0 0.0
        %v2394 = vand.u32 %v197, 4294901760
        %2395 = vmatmul.mubr.f32.gmra.mrb[0].mxu0 %v2394
        %v2396 = vpop.f32.mrb[0].mxu0
        %v2397 = vadd.f32 %v2116, %v2396
        %v2398 = vpop.f32.mrb[0].mxu0
        %2399 = vmatprep.mubr.f32.mxu0 0.0
        %v2400 = vand.u32 %v200, 4294901760
        %2401 = vmatmul.mubr.f32.gmra.mrb[0].mxu0 %v2400
        %v2402 = vpop.f32.mrb[0].mxu0
        %v2403 = vadd.f32 %v2126, %v2402
        %v2404 = vpop.f32.mrb[0].mxu0
        %2405 = vmatprep.mubr.f32.mxu0 0.0
        %v2406 = vand.u32 %v203, 4294901760
        %2407 = vmatmul.mubr.f32.gmra.mrb[0].mxu0 %v2406
        %v2408 = vpop.f32.mrb[0].mxu0
        %v2409 = vadd.f32 %v2136, %v2408
        %v2410 = vpop.f32.mrb[0].mxu0
        %2411 = vmatprep.mubr.f32.mxu0 0.0
        %v2412 = vand.u32 %v206, 4294901760
        %2413 = vmatmul.mubr.f32.gmra.mrb[0].mxu0 %v2412
        %v2414 = vpop.f32.mrb[0].mxu0
        %v2415 = vadd.f32 %v2146, %v2414
        %v2416 = vpop.f32.mrb[0].mxu0
        %2417 = vmatprep.mubr.f32.mxu0 0.0
        %v2418 = vand.u32 %v209, 4294901760
        %2419 = vmatmul.mubr.f32.gmra.mrb[0].mxu0 %v2418
        %v2420 = vpop.f32.mrb[0].mxu0
        %v2421 = vadd.f32 %v2156, %v2420
        %v2422 = vpop.f32.mrb[0].mxu0
        %2423 = vmatprep.mubr.f32.mxu0 0.0
        %v2424 = vand.u32 %v212, 4294901760
        %2425 = vmatmul.mubr.f32.gmra.mrb[0].mxu0 %v2424
        %v2426 = vpop.f32.mrb[0].mxu0
        %v2427 = vadd.f32 %v2166, %v2426
        %v2428 = vpop.f32.mrb[0].mxu0
        %2429 = vmatprep.mubr.f32.mxu0 0.0
        %v2430 = vand.u32 %v215, 4294901760
        %2431 = vmatmul.mubr.f32.gmra.mrb[0].mxu0 %v2430
        %v2432 = vpop.f32.mrb[0].mxu0
        %v2433 = vadd.f32 %v2176, %v2432
        %v2434 = vpop.f32.mrb[0].mxu0
        %2435 = vmatprep.mubr.f32.mxu0 0.0
        %v2436 = vand.u32 %v218, 4294901760
        %2437 = vmatmul.mubr.f32.gmra.mrb[0].mxu0 %v2436
        %v2438 = vpop.f32.mrb[0].mxu0
        %v2439 = vadd.f32 %v2186, %v2438
        %v2440 = vpop.f32.mrb[0].mxu0
        %2441 = vmatprep.mubr.f32.mxu0 0.0
        %v2442 = vand.u32 %v221, 4294901760
        %2443 = vmatmul.mubr.f32.gmra.mrb[0].mxu0 %v2442
        %v2444 = vpop.f32.mrb[0].mxu0
        %v2445 = vadd.f32 %v2196, %v2444
        %v2446 = vpop.f32.mrb[0].mxu0
        %2447 = vmatprep.mubr.f32.mxu0 0.0
        %v2448 = vand.u32 %v224, 4294901760
        %2449 = vmatmul.mubr.f32.gmra.mrb[0].mxu0 %v2448
        %v2450 = vpop.f32.mrb[0].mxu0
        %v2451 = vadd.f32 %v2206, %v2450
        %v2452 = vpop.f32.mrb[0].mxu0
        %2453 = vmatprep.mubr.f32.mxu0 0.0
        %v2454 = vand.u32 %v227, 4294901760
        %2455 = vmatmul.mubr.f32.gmra.mrb[0].mxu0 %v2454
        %v2456 = vpop.f32.mrb[0].mxu0
        %v2457 = vadd.f32 %v2216, %v2456
        %v2458 = vpop.f32.mrb[0].mxu0
        %2459 = vdwg.mxu0
        %2460 = vmatprep.subr.mxu0 0.0
        %v2461 = vand.u32 %v260, 4294901760
        %v2462 = vsub.f32 %v260, %v2461
        %2463 = vmatpush1.msra.mxu0 %v2462
        %2464 = vmatprep.subr.mxu0 0.0
        %v2465 = vand.u32 %v261, 4294901760
        %v2466 = vsub.f32 %v261, %v2465
        %2467 = vmatpush1.msra.mxu0 %v2466
        %2468 = vmatprep.subr.mxu0 0.0
        %v2469 = vand.u32 %v262, 4294901760
        %v2470 = vsub.f32 %v262, %v2469
        %2471 = vmatpush1.msra.mxu0 %v2470
        %2472 = vmatprep.subr.mxu0 0.0
        %v2473 = vand.u32 %v263, 4294901760
        %v2474 = vsub.f32 %v263, %v2473
        %2475 = vmatpush1.msra.mxu0 %v2474
        %2476 = vmatprep.subr.mxu0 0.0
        %v2477 = vand.u32 %v264, 4294901760
        %v2478 = vsub.f32 %v264, %v2477
        %2479 = vmatpush1.msra.mxu0 %v2478
        %2480 = vmatprep.subr.mxu0 0.0
        %v2481 = vand.u32 %v265, 4294901760
        %v2482 = vsub.f32 %v265, %v2481
        %2483 = vmatpush1.msra.mxu0 %v2482
        %2484 = vmatprep.subr.mxu0 0.0
        %v2485 = vand.u32 %v266, 4294901760
        %v2486 = vsub.f32 %v266, %v2485
        %2487 = vmatpush1.msra.mxu0 %v2486
        %2488 = vmatprep.subr.mxu0 0.0
        %v2489 = vand.u32 %v267, 4294901760
        %v2490 = vsub.f32 %v267, %v2489
        %2491 = vmatpush1.msra.mxu0 %v2490
        %2492 = vmatprep.subr.mxu0 0.0
        %v2493 = vand.u32 %v268, 4294901760
        %v2494 = vsub.f32 %v268, %v2493
        %2495 = vmatpush1.msra.mxu0 %v2494
        %2496 = vmatprep.subr.mxu0 0.0
        %v2497 = vand.u32 %v269, 4294901760
        %v2498 = vsub.f32 %v269, %v2497
        %2499 = vmatpush1.msra.mxu0 %v2498
        %2500 = vmatprep.subr.mxu0 0.0
        %v2501 = vand.u32 %v270, 4294901760
        %v2502 = vsub.f32 %v270, %v2501
        %2503 = vmatpush1.msra.mxu0 %v2502
        %2504 = vmatprep.subr.mxu0 0.0
        %v2505 = vand.u32 %v271, 4294901760
        %v2506 = vsub.f32 %v271, %v2505
        %2507 = vmatpush1.msra.mxu0 %v2506
        %2508 = vmatprep.subr.mxu0 0.0
        %v2509 = vand.u32 %v272, 4294901760
        %v2510 = vsub.f32 %v272, %v2509
        %2511 = vmatpush1.msra.mxu0 %v2510
        %2512 = vmatprep.subr.mxu0 0.0
        %v2513 = vand.u32 %v273, 4294901760
        %v2514 = vsub.f32 %v273, %v2513
        %2515 = vmatpush1.msra.mxu0 %v2514
        %2516 = vmatprep.subr.mxu0 0.0
        %v2517 = vand.u32 %v274, 4294901760
        %v2518 = vsub.f32 %v274, %v2517
        %2519 = vmatpush1.msra.mxu0 %v2518
        %2520 = vmatprep.subr.mxu0 0.0
        %v2521 = vand.u32 %v275, 4294901760
        %v2522 = vsub.f32 %v275, %v2521
        %2523 = vmatpush1.msra.mxu0 %v2522
        %2524 = vmatprep.subr.mxu0 0.0
        %2525 = vmatpush1.msra.mxu0 0.0
        %2526 = vmatprep.subr.mxu0 0.0
        %2527 = vmatpush1.msra.mxu0 0.0
        %2528 = vmatprep.subr.mxu0 0.0
        %2529 = vmatpush1.msra.mxu0 0.0
        %2530 = vmatprep.subr.mxu0 0.0
        %2531 = vmatpush1.msra.mxu0 0.0
        %2532 = vmatprep.subr.mxu0 0.0
        %2533 = vmatpush1.msra.mxu0 0.0
        %2534 = vmatprep.subr.mxu0 0.0
        %2535 = vmatpush1.msra.mxu0 0.0
        %2536 = vmatprep.subr.mxu0 0.0
        %2537 = vmatpush1.msra.mxu0 0.0
        %2538 = vmatprep.subr.mxu0 0.0
        %2539 = vmatpush1.msra.mxu0 0.0
        %2540 = vmatprep.subr.mxu0 0.0
        %2541 = vmatpush1.msra.mxu0 0.0
        %2542 = vmatprep.subr.mxu0 0.0
        %2543 = vmatpush1.msra.mxu0 0.0
        %2544 = vmatprep.subr.mxu0 0.0
        %2545 = vmatpush1.msra.mxu0 0.0
        %2546 = vmatprep.subr.mxu0 0.0
        %2547 = vmatpush1.msra.mxu0 0.0
        %2548 = vmatprep.subr.mxu0 0.0
        %2549 = vmatpush1.msra.mxu0 0.0
        %2550 = vmatprep.subr.mxu0 0.0
        %2551 = vmatpush1.msra.mxu0 0.0
        %2552 = vmatprep.subr.mxu0 0.0
        %2553 = vmatpush1.msra.mxu0 0.0
        %2554 = vmatprep.subr.mxu0 0.0
        %2555 = vmatpush1.msra.mxu0 0.0
        %2556 = vmatprep.mubr.f32.mxu0 0.0
        %v2557 = vand.u32 %v182, 4294901760
        %v2558 = vsub.f32 %v182, %v2557
        %2559 = vmatmul.mubr.f32.gmra.mrb[0].mxu0 %v2558
        %v2560 = vpop.f32.mrb[0].mxu0
        %v2561 = vadd.f32 %v2367, %v2560
        %v2562 = vpop.f32.mrb[0].mxu0
        %2563 = vmatprep.mubr.f32.mxu0 0.0
        %v2564 = vand.u32 %v185, 4294901760
        %v2565 = vsub.f32 %v185, %v2564
        %2566 = vmatmul.mubr.f32.gmra.mrb[0].mxu0 %v2565
        %v2567 = vpop.f32.mrb[0].mxu0
        %v2568 = vadd.f32 %v2373, %v2567
        %v2569 = vpop.f32.mrb[0].mxu0
        %2570 = vmatprep.mubr.f32.mxu0 0.0
        %v2571 = vand.u32 %v188, 4294901760
        %v2572 = vsub.f32 %v188, %v2571
        %2573 = vmatmul.mubr.f32.gmra.mrb[0].mxu0 %v2572
        %v2574 = vpop.f32.mrb[0].mxu0
        %v2575 = vadd.f32 %v2379, %v2574
        %v2576 = vpop.f32.mrb[0].mxu0
        %2577 = vmatprep.mubr.f32.mxu0 0.0
        %v2578 = vand.u32 %v191, 4294901760
        %v2579 = vsub.f32 %v191, %v2578
        %2580 = vmatmul.mubr.f32.gmra.mrb[0].mxu0 %v2579
        %v2581 = vpop.f32.mrb[0].mxu0
        %v2582 = vadd.f32 %v2385, %v2581
        %v2583 = vpop.f32.mrb[0].mxu0
        %2584 = vmatprep.mubr.f32.mxu0 0.0
        %v2585 = vand.u32 %v194, 4294901760
        %v2586 = vsub.f32 %v194, %v2585
        %2587 = vmatmul.mubr.f32.gmra.mrb[0].mxu0 %v2586
        %v2588 = vpop.f32.mrb[0].mxu0
        %v2589 = vadd.f32 %v2391, %v2588
        %v2590 = vpop.f32.mrb[0].mxu0
        %2591 = vmatprep.mubr.f32.mxu0 0.0
        %v2592 = vand.u32 %v197, 4294901760
        %v2593 = vsub.f32 %v197, %v2592
        %2594 = vmatmul.mubr.f32.gmra.mrb[0].mxu0 %v2593
        %v2595 = vpop.f32.mrb[0].mxu0
        %v2596 = vadd.f32 %v2397, %v2595
        %v2597 = vpop.f32.mrb[0].mxu0
        %2598 = vmatprep.mubr.f32.mxu0 0.0
        %v2599 = vand.u32 %v200, 4294901760
        %v2600 = vsub.f32 %v200, %v2599
        %2601 = vmatmul.mubr.f32.gmra.mrb[0].mxu0 %v2600
        %v2602 = vpop.f32.mrb[0].mxu0
        %v2603 = vadd.f32 %v2403, %v2602
        %v2604 = vpop.f32.mrb[0].mxu0
        %2605 = vmatprep.mubr.f32.mxu0 0.0
        %v2606 = vand.u32 %v203, 4294901760
        %v2607 = vsub.f32 %v203, %v2606
        %2608 = vmatmul.mubr.f32.gmra.mrb[0].mxu0 %v2607
        %v2609 = vpop.f32.mrb[0].mxu0
        %v2610 = vadd.f32 %v2409, %v2609
        %v2611 = vpop.f32.mrb[0].mxu0
        %2612 = vmatprep.mubr.f32.mxu0 0.0
        %v2613 = vand.u32 %v206, 4294901760
        %v2614 = vsub.f32 %v206, %v2613
        %2615 = vmatmul.mubr.f32.gmra.mrb[0].mxu0 %v2614
        %v2616 = vpop.f32.mrb[0].mxu0
        %v2617 = vadd.f32 %v2415, %v2616
        %v2618 = vpop.f32.mrb[0].mxu0
        %2619 = vmatprep.mubr.f32.mxu0 0.0
        %v2620 = vand.u32 %v209, 4294901760
        %v2621 = vsub.f32 %v209, %v2620
        %2622 = vmatmul.mubr.f32.gmra.mrb[0].mxu0 %v2621
        %v2623 = vpop.f32.mrb[0].mxu0
        %v2624 = vadd.f32 %v2421, %v2623
        %v2625 = vpop.f32.mrb[0].mxu0
        %2626 = vmatprep.mubr.f32.mxu0 0.0
        %v2627 = vand.u32 %v212, 4294901760
        %v2628 = vsub.f32 %v212, %v2627
        %2629 = vmatmul.mubr.f32.gmra.mrb[0].mxu0 %v2628
        %v2630 = vpop.f32.mrb[0].mxu0
        %v2631 = vadd.f32 %v2427, %v2630
        %v2632 = vpop.f32.mrb[0].mxu0
        %2633 = vmatprep.mubr.f32.mxu0 0.0
        %v2634 = vand.u32 %v215, 4294901760
        %v2635 = vsub.f32 %v215, %v2634
        %2636 = vmatmul.mubr.f32.gmra.mrb[0].mxu0 %v2635
        %v2637 = vpop.f32.mrb[0].mxu0
        %v2638 = vadd.f32 %v2433, %v2637
        %v2639 = vpop.f32.mrb[0].mxu0
        %2640 = vmatprep.mubr.f32.mxu0 0.0
        %v2641 = vand.u32 %v218, 4294901760
        %v2642 = vsub.f32 %v218, %v2641
        %2643 = vmatmul.mubr.f32.gmra.mrb[0].mxu0 %v2642
        %v2644 = vpop.f32.mrb[0].mxu0
        %v2645 = vadd.f32 %v2439, %v2644
        %v2646 = vpop.f32.mrb[0].mxu0
        %2647 = vmatprep.mubr.f32.mxu0 0.0
        %v2648 = vand.u32 %v221, 4294901760
        %v2649 = vsub.f32 %v221, %v2648
        %2650 = vmatmul.mubr.f32.gmra.mrb[0].mxu0 %v2649
        %v2651 = vpop.f32.mrb[0].mxu0
        %v2652 = vadd.f32 %v2445, %v2651
        %v2653 = vpop.f32.mrb[0].mxu0
        %2654 = vmatprep.mubr.f32.mxu0 0.0
        %v2655 = vand.u32 %v224, 4294901760
        %v2656 = vsub.f32 %v224, %v2655
        %2657 = vmatmul.mubr.f32.gmra.mrb[0].mxu0 %v2656
        %v2658 = vpop.f32.mrb[0].mxu0
        %v2659 = vadd.f32 %v2451, %v2658
        %v2660 = vpop.f32.mrb[0].mxu0
        %2661 = vmatprep.mubr.f32.mxu0 0.0
        %v2662 = vand.u32 %v227, 4294901760
        %v2663 = vsub.f32 %v227, %v2662
        %2664 = vmatmul.mubr.f32.gmra.mrb[0].mxu0 %v2663
        %v2665 = vpop.f32.mrb[0].mxu0
        %v2666 = vadd.f32 %v2457, %v2665
        %v2667 = vpop.f32.mrb[0].mxu0
        %2668 = vdwg.mxu0
        %2669 = vmatprep.subr.mxu0 0.0
        %v2670 = vand.u32 %v260, 4294901760
        %2671 = vmatpush1.msra.mxu0 %v2670
        %2672 = vmatprep.subr.mxu0 0.0
        %v2673 = vand.u32 %v261, 4294901760
        %2674 = vmatpush1.msra.mxu0 %v2673
        %2675 = vmatprep.subr.mxu0 0.0
        %v2676 = vand.u32 %v262, 4294901760
        %2677 = vmatpush1.msra.mxu0 %v2676
        %2678 = vmatprep.subr.mxu0 0.0
        %v2679 = vand.u32 %v263, 4294901760
        %2680 = vmatpush1.msra.mxu0 %v2679
        %2681 = vmatprep.subr.mxu0 0.0
        %v2682 = vand.u32 %v264, 4294901760
        %2683 = vmatpush1.msra.mxu0 %v2682
        %2684 = vmatprep.subr.mxu0 0.0
        %v2685 = vand.u32 %v265, 4294901760
        %2686 = vmatpush1.msra.mxu0 %v2685
        %2687 = vmatprep.subr.mxu0 0.0
        %v2688 = vand.u32 %v266, 4294901760
        %2689 = vmatpush1.msra.mxu0 %v2688
        %2690 = vmatprep.subr.mxu0 0.0
        %v2691 = vand.u32 %v267, 4294901760
        %2692 = vmatpush1.msra.mxu0 %v2691
        %2693 = vmatprep.subr.mxu0 0.0
        %v2694 = vand.u32 %v268, 4294901760
        %2695 = vmatpush1.msra.mxu0 %v2694
        %2696 = vmatprep.subr.mxu0 0.0
        %v2697 = vand.u32 %v269, 4294901760
        %2698 = vmatpush1.msra.mxu0 %v2697
        %2699 = vmatprep.subr.mxu0 0.0
        %v2700 = vand.u32 %v270, 4294901760
        %2701 = vmatpush1.msra.mxu0 %v2700
        %2702 = vmatprep.subr.mxu0 0.0
        %v2703 = vand.u32 %v271, 4294901760
        %2704 = vmatpush1.msra.mxu0 %v2703
        %2705 = vmatprep.subr.mxu0 0.0
        %v2706 = vand.u32 %v272, 4294901760
        %2707 = vmatpush1.msra.mxu0 %v2706
        %2708 = vmatprep.subr.mxu0 0.0
        %v2709 = vand.u32 %v273, 4294901760
        %2710 = vmatpush1.msra.mxu0 %v2709
        %2711 = vmatprep.subr.mxu0 0.0
        %v2712 = vand.u32 %v274, 4294901760
        %2713 = vmatpush1.msra.mxu0 %v2712
        %2714 = vmatprep.subr.mxu0 0.0
        %v2715 = vand.u32 %v275, 4294901760
        %2716 = vmatpush1.msra.mxu0 %v2715
        %2717 = vmatprep.subr.mxu0 0.0
        %2718 = vmatpush1.msra.mxu0 0.0
        %2719 = vmatprep.subr.mxu0 0.0
        %2720 = vmatpush1.msra.mxu0 0.0
        %2721 = vmatprep.subr.mxu0 0.0
        %2722 = vmatpush1.msra.mxu0 0.0
        %2723 = vmatprep.subr.mxu0 0.0
        %2724 = vmatpush1.msra.mxu0 0.0
        %2725 = vmatprep.subr.mxu0 0.0
        %2726 = vmatpush1.msra.mxu0 0.0
        %2727 = vmatprep.subr.mxu0 0.0
        %2728 = vmatpush1.msra.mxu0 0.0
        %2729 = vmatprep.subr.mxu0 0.0
        %2730 = vmatpush1.msra.mxu0 0.0
        %2731 = vmatprep.subr.mxu0 0.0
        %2732 = vmatpush1.msra.mxu0 0.0
        %2733 = vmatprep.subr.mxu0 0.0
        %2734 = vmatpush1.msra.mxu0 0.0
        %2735 = vmatprep.subr.mxu0 0.0
        %2736 = vmatpush1.msra.mxu0 0.0
        %2737 = vmatprep.subr.mxu0 0.0
        %2738 = vmatpush1.msra.mxu0 0.0
        %2739 = vmatprep.subr.mxu0 0.0
        %2740 = vmatpush1.msra.mxu0 0.0
        %2741 = vmatprep.subr.mxu0 0.0
        %2742 = vmatpush1.msra.mxu0 0.0
        %2743 = vmatprep.subr.mxu0 0.0
        %2744 = vmatpush1.msra.mxu0 0.0
        %2745 = vmatprep.subr.mxu0 0.0
        %2746 = vmatpush1.msra.mxu0 0.0
        %2747 = vmatprep.subr.mxu0 0.0
        %2748 = vmatpush1.msra.mxu0 0.0
        %2749 = vmatprep.mubr.f32.mxu0 0.0
        %v2750 = vand.u32 %v182, 4294901760
        %v2751 = vsub.f32 %v182, %v2750
        %v2752 = vand.u32 %v2751, 4294901760
        %2753 = vmatmul.mubr.f32.gmra.mrb[0].mxu0 %v2752
        %v2754 = vpop.f32.mrb[0].mxu0
        %v2755 = vadd.f32 %v2561, %v2754
        %v2756 = vpop.f32.mrb[0].mxu0
        %2757 = vmatprep.mubr.f32.mxu0 0.0
        %v2758 = vand.u32 %v185, 4294901760
        %v2759 = vsub.f32 %v185, %v2758
        %v2760 = vand.u32 %v2759, 4294901760
        %2761 = vmatmul.mubr.f32.gmra.mrb[0].mxu0 %v2760
        %v2762 = vpop.f32.mrb[0].mxu0
        %v2763 = vadd.f32 %v2568, %v2762
        %v2764 = vpop.f32.mrb[0].mxu0
        %2765 = vmatprep.mubr.f32.mxu0 0.0
        %v2766 = vand.u32 %v188, 4294901760
        %v2767 = vsub.f32 %v188, %v2766
        %v2768 = vand.u32 %v2767, 4294901760
        %2769 = vmatmul.mubr.f32.gmra.mrb[0].mxu0 %v2768
        %v2770 = vpop.f32.mrb[0].mxu0
        %v2771 = vadd.f32 %v2575, %v2770
        %v2772 = vpop.f32.mrb[0].mxu0
        %2773 = vmatprep.mubr.f32.mxu0 0.0
        %v2774 = vand.u32 %v191, 4294901760
        %v2775 = vsub.f32 %v191, %v2774
        %v2776 = vand.u32 %v2775, 4294901760
        %2777 = vmatmul.mubr.f32.gmra.mrb[0].mxu0 %v2776
        %v2778 = vpop.f32.mrb[0].mxu0
        %v2779 = vadd.f32 %v2582, %v2778
        %v2780 = vpop.f32.mrb[0].mxu0
        %2781 = vmatprep.mubr.f32.mxu0 0.0
        %v2782 = vand.u32 %v194, 4294901760
        %v2783 = vsub.f32 %v194, %v2782
        %v2784 = vand.u32 %v2783, 4294901760
        %2785 = vmatmul.mubr.f32.gmra.mrb[0].mxu0 %v2784
        %v2786 = vpop.f32.mrb[0].mxu0
        %v2787 = vadd.f32 %v2589, %v2786
        %v2788 = vpop.f32.mrb[0].mxu0
        %2789 = vmatprep.mubr.f32.mxu0 0.0
        %v2790 = vand.u32 %v197, 4294901760
        %v2791 = vsub.f32 %v197, %v2790
        %v2792 = vand.u32 %v2791, 4294901760
        %2793 = vmatmul.mubr.f32.gmra.mrb[0].mxu0 %v2792
        %v2794 = vpop.f32.mrb[0].mxu0
        %v2795 = vadd.f32 %v2596, %v2794
        %v2796 = vpop.f32.mrb[0].mxu0
        %2797 = vmatprep.mubr.f32.mxu0 0.0
        %v2798 = vand.u32 %v200, 4294901760
        %v2799 = vsub.f32 %v200, %v2798
        %v2800 = vand.u32 %v2799, 4294901760
        %2801 = vmatmul.mubr.f32.gmra.mrb[0].mxu0 %v2800
        %v2802 = vpop.f32.mrb[0].mxu0
        %v2803 = vadd.f32 %v2603, %v2802
        %v2804 = vpop.f32.mrb[0].mxu0
        %2805 = vmatprep.mubr.f32.mxu0 0.0
        %v2806 = vand.u32 %v203, 4294901760
        %v2807 = vsub.f32 %v203, %v2806
        %v2808 = vand.u32 %v2807, 4294901760
        %2809 = vmatmul.mubr.f32.gmra.mrb[0].mxu0 %v2808
        %v2810 = vpop.f32.mrb[0].mxu0
        %v2811 = vadd.f32 %v2610, %v2810
        %v2812 = vpop.f32.mrb[0].mxu0
        %2813 = vmatprep.mubr.f32.mxu0 0.0
        %v2814 = vand.u32 %v206, 4294901760
        %v2815 = vsub.f32 %v206, %v2814
        %v2816 = vand.u32 %v2815, 4294901760
        %2817 = vmatmul.mubr.f32.gmra.mrb[0].mxu0 %v2816
        %v2818 = vpop.f32.mrb[0].mxu0
        %v2819 = vadd.f32 %v2617, %v2818
        %v2820 = vpop.f32.mrb[0].mxu0
        %2821 = vmatprep.mubr.f32.mxu0 0.0
        %v2822 = vand.u32 %v209, 4294901760
        %v2823 = vsub.f32 %v209, %v2822
        %v2824 = vand.u32 %v2823, 4294901760
        %2825 = vmatmul.mubr.f32.gmra.mrb[0].mxu0 %v2824
        %v2826 = vpop.f32.mrb[0].mxu0
        %v2827 = vadd.f32 %v2624, %v2826
        %v2828 = vpop.f32.mrb[0].mxu0
        %2829 = vmatprep.mubr.f32.mxu0 0.0
        %v2830 = vand.u32 %v212, 4294901760
        %v2831 = vsub.f32 %v212, %v2830
        %v2832 = vand.u32 %v2831, 4294901760
        %2833 = vmatmul.mubr.f32.gmra.mrb[0].mxu0 %v2832
        %v2834 = vpop.f32.mrb[0].mxu0
        %v2835 = vadd.f32 %v2631, %v2834
        %v2836 = vpop.f32.mrb[0].mxu0
        %2837 = vmatprep.mubr.f32.mxu0 0.0
        %v2838 = vand.u32 %v215, 4294901760
        %v2839 = vsub.f32 %v215, %v2838
        %v2840 = vand.u32 %v2839, 4294901760
        %2841 = vmatmul.mubr.f32.gmra.mrb[0].mxu0 %v2840
        %v2842 = vpop.f32.mrb[0].mxu0
        %v2843 = vadd.f32 %v2638, %v2842
        %v2844 = vpop.f32.mrb[0].mxu0
        %2845 = vmatprep.mubr.f32.mxu0 0.0
        %v2846 = vand.u32 %v218, 4294901760
        %v2847 = vsub.f32 %v218, %v2846
        %v2848 = vand.u32 %v2847, 4294901760
        %2849 = vmatmul.mubr.f32.gmra.mrb[0].mxu0 %v2848
        %v2850 = vpop.f32.mrb[0].mxu0
        %v2851 = vadd.f32 %v2645, %v2850
        %v2852 = vpop.f32.mrb[0].mxu0
        %2853 = vmatprep.mubr.f32.mxu0 0.0
        %v2854 = vand.u32 %v221, 4294901760
        %v2855 = vsub.f32 %v221, %v2854
        %v2856 = vand.u32 %v2855, 4294901760
        %2857 = vmatmul.mubr.f32.gmra.mrb[0].mxu0 %v2856
        %v2858 = vpop.f32.mrb[0].mxu0
        %v2859 = vadd.f32 %v2652, %v2858
        %v2860 = vpop.f32.mrb[0].mxu0
        %2861 = vmatprep.mubr.f32.mxu0 0.0
        %v2862 = vand.u32 %v224, 4294901760
        %v2863 = vsub.f32 %v224, %v2862
        %v2864 = vand.u32 %v2863, 4294901760
        %2865 = vmatmul.mubr.f32.gmra.mrb[0].mxu0 %v2864
        %v2866 = vpop.f32.mrb[0].mxu0
        %v2867 = vadd.f32 %v2659, %v2866
        %v2868 = vpop.f32.mrb[0].mxu0
        %2869 = vmatprep.mubr.f32.mxu0 0.0
        %v2870 = vand.u32 %v227, 4294901760
        %v2871 = vsub.f32 %v227, %v2870
        %v2872 = vand.u32 %v2871, 4294901760
        %2873 = vmatmul.mubr.f32.gmra.mrb[0].mxu0 %v2872
        %v2874 = vpop.f32.mrb[0].mxu0
        %v2875 = vadd.f32 %v2666, %v2874
        %v2876 = vpop.f32.mrb[0].mxu0
        %2877 = vdwg.mxu0
        %2878 = vmatprep.subr.mxu0 0.0
        %v2879 = vand.u32 %v260, 4294901760
        %v2880 = vsub.f32 %v260, %v2879
        %v2881 = vand.u32 %v2880, 4294901760
        %2882 = vmatpush1.msra.mxu0 %v2881
        %2883 = vmatprep.subr.mxu0 0.0
        %v2884 = vand.u32 %v261, 4294901760
        %v2885 = vsub.f32 %v261, %v2884
        %v2886 = vand.u32 %v2885, 4294901760
        %2887 = vmatpush1.msra.mxu0 %v2886
        %2888 = vmatprep.subr.mxu0 0.0
        %v2889 = vand.u32 %v262, 4294901760
        %v2890 = vsub.f32 %v262, %v2889
        %v2891 = vand.u32 %v2890, 4294901760
        %2892 = vmatpush1.msra.mxu0 %v2891
        %2893 = vmatprep.subr.mxu0 0.0
        %v2894 = vand.u32 %v263, 4294901760
        %v2895 = vsub.f32 %v263, %v2894
        %v2896 = vand.u32 %v2895, 4294901760
        %2897 = vmatpush1.msra.mxu0 %v2896
        %2898 = vmatprep.subr.mxu0 0.0
        %v2899 = vand.u32 %v264, 4294901760
        %v2900 = vsub.f32 %v264, %v2899
        %v2901 = vand.u32 %v2900, 4294901760
        %2902 = vmatpush1.msra.mxu0 %v2901
        %2903 = vmatprep.subr.mxu0 0.0
        %v2904 = vand.u32 %v265, 4294901760
        %v2905 = vsub.f32 %v265, %v2904
        %v2906 = vand.u32 %v2905, 4294901760
        %2907 = vmatpush1.msra.mxu0 %v2906
        %2908 = vmatprep.subr.mxu0 0.0
        %v2909 = vand.u32 %v266, 4294901760
        %v2910 = vsub.f32 %v266, %v2909
        %v2911 = vand.u32 %v2910, 4294901760
        %2912 = vmatpush1.msra.mxu0 %v2911
        %2913 = vmatprep.subr.mxu0 0.0
        %v2914 = vand.u32 %v267, 4294901760
        %v2915 = vsub.f32 %v267, %v2914
        %v2916 = vand.u32 %v2915, 4294901760
        %2917 = vmatpush1.msra.mxu0 %v2916
        %2918 = vmatprep.subr.mxu0 0.0
        %v2919 = vand.u32 %v268, 4294901760
        %v2920 = vsub.f32 %v268, %v2919
        %v2921 = vand.u32 %v2920, 4294901760
        %2922 = vmatpush1.msra.mxu0 %v2921
        %2923 = vmatprep.subr.mxu0 0.0
        %v2924 = vand.u32 %v269, 4294901760
        %v2925 = vsub.f32 %v269, %v2924
        %v2926 = vand.u32 %v2925, 4294901760
        %2927 = vmatpush1.msra.mxu0 %v2926
        %2928 = vmatprep.subr.mxu0 0.0
        %v2929 = vand.u32 %v270, 4294901760
        %v2930 = vsub.f32 %v270, %v2929
        %v2931 = vand.u32 %v2930, 4294901760
        %2932 = vmatpush1.msra.mxu0 %v2931
        %2933 = vmatprep.subr.mxu0 0.0
        %v2934 = vand.u32 %v271, 4294901760
        %v2935 = vsub.f32 %v271, %v2934
        %v2936 = vand.u32 %v2935, 4294901760
        %2937 = vmatpush1.msra.mxu0 %v2936
        %2938 = vmatprep.subr.mxu0 0.0
        %v2939 = vand.u32 %v272, 4294901760
        %v2940 = vsub.f32 %v272, %v2939
        %v2941 = vand.u32 %v2940, 4294901760
        %2942 = vmatpush1.msra.mxu0 %v2941
        %2943 = vmatprep.subr.mxu0 0.0
        %v2944 = vand.u32 %v273, 4294901760
        %v2945 = vsub.f32 %v273, %v2944
        %v2946 = vand.u32 %v2945, 4294901760
        %2947 = vmatpush1.msra.mxu0 %v2946
        %2948 = vmatprep.subr.mxu0 0.0
        %v2949 = vand.u32 %v274, 4294901760
        %v2950 = vsub.f32 %v274, %v2949
        %v2951 = vand.u32 %v2950, 4294901760
        %2952 = vmatpush1.msra.mxu0 %v2951
        %2953 = vmatprep.subr.mxu0 0.0
        %v2954 = vand.u32 %v275, 4294901760
        %v2955 = vsub.f32 %v275, %v2954
        %v2956 = vand.u32 %v2955, 4294901760
        %2957 = vmatpush1.msra.mxu0 %v2956
        %2958 = vmatprep.subr.mxu0 0.0
        %2959 = vmatpush1.msra.mxu0 0.0
        %2960 = vmatprep.subr.mxu0 0.0
        %2961 = vmatpush1.msra.mxu0 0.0
        %2962 = vmatprep.subr.mxu0 0.0
        %2963 = vmatpush1.msra.mxu0 0.0
        %2964 = vmatprep.subr.mxu0 0.0
        %2965 = vmatpush1.msra.mxu0 0.0
        %2966 = vmatprep.subr.mxu0 0.0
        %2967 = vmatpush1.msra.mxu0 0.0
        %2968 = vmatprep.subr.mxu0 0.0
        %2969 = vmatpush1.msra.mxu0 0.0
        %2970 = vmatprep.subr.mxu0 0.0
        %2971 = vmatpush1.msra.mxu0 0.0
        %2972 = vmatprep.subr.mxu0 0.0
        %2973 = vmatpush1.msra.mxu0 0.0
        %2974 = vmatprep.subr.mxu0 0.0
        %2975 = vmatpush1.msra.mxu0 0.0
        %2976 = vmatprep.subr.mxu0 0.0
        %2977 = vmatpush1.msra.mxu0 0.0
        %2978 = vmatprep.subr.mxu0 0.0
        %2979 = vmatpush1.msra.mxu0 0.0
        %2980 = vmatprep.subr.mxu0 0.0
        %2981 = vmatpush1.msra.mxu0 0.0
        %2982 = vmatprep.subr.mxu0 0.0
        %2983 = vmatpush1.msra.mxu0 0.0
        %2984 = vmatprep.subr.mxu0 0.0
        %2985 = vmatpush1.msra.mxu0 0.0
        %2986 = vmatprep.subr.mxu0 0.0
        %2987 = vmatpush1.msra.mxu0 0.0
        %2988 = vmatprep.subr.mxu0 0.0
        %2989 = vmatpush1.msra.mxu0 0.0
        %2990 = vmatprep.mubr.f32.mxu0 0.0
        %v2991 = vand.u32 %v182, 4294901760
        %2992 = vmatmul.mubr.f32.gmra.mrb[0].mxu0 %v2991
        %v2993 = vpop.f32.mrb[0].mxu0
        %v2994 = vadd.f32 %v2755, %v2993
        %v2995 = vpop.f32.mrb[0].mxu0
        %2996 = vmatprep.mubr.f32.mxu0 0.0
        %v2997 = vand.u32 %v185, 4294901760
        %2998 = vmatmul.mubr.f32.gmra.mrb[0].mxu0 %v2997
        %v2999 = vpop.f32.mrb[0].mxu0
        %v3000 = vadd.f32 %v2763, %v2999
        %v3001 = vpop.f32.mrb[0].mxu0
        %3002 = vmatprep.mubr.f32.mxu0 0.0
        %v3003 = vand.u32 %v188, 4294901760
        %3004 = vmatmul.mubr.f32.gmra.mrb[0].mxu0 %v3003
        %v3005 = vpop.f32.mrb[0].mxu0
        %v3006 = vadd.f32 %v2771, %v3005
        %v3007 = vpop.f32.mrb[0].mxu0
        %3008 = vmatprep.mubr.f32.mxu0 0.0
        %v3009 = vand.u32 %v191, 4294901760
        %3010 = vmatmul.mubr.f32.gmra.mrb[0].mxu0 %v3009
        %v3011 = vpop.f32.mrb[0].mxu0
        %v3012 = vadd.f32 %v2779, %v3011
        %v3013 = vpop.f32.mrb[0].mxu0
        %3014 = vmatprep.mubr.f32.mxu0 0.0
        %v3015 = vand.u32 %v194, 4294901760
        %3016 = vmatmul.mubr.f32.gmra.mrb[0].mxu0 %v3015
        %v3017 = vpop.f32.mrb[0].mxu0
        %v3018 = vadd.f32 %v2787, %v3017
        %v3019 = vpop.f32.mrb[0].mxu0
        %3020 = vmatprep.mubr.f32.mxu0 0.0
        %v3021 = vand.u32 %v197, 4294901760
        %3022 = vmatmul.mubr.f32.gmra.mrb[0].mxu0 %v3021
        %v3023 = vpop.f32.mrb[0].mxu0
        %v3024 = vadd.f32 %v2795, %v3023
        %v3025 = vpop.f32.mrb[0].mxu0
        %3026 = vmatprep.mubr.f32.mxu0 0.0
        %v3027 = vand.u32 %v200, 4294901760
        %3028 = vmatmul.mubr.f32.gmra.mrb[0].mxu0 %v3027
        %v3029 = vpop.f32.mrb[0].mxu0
        %v3030 = vadd.f32 %v2803, %v3029
        %v3031 = vpop.f32.mrb[0].mxu0
        %3032 = vmatprep.mubr.f32.mxu0 0.0
        %v3033 = vand.u32 %v203, 4294901760
        %3034 = vmatmul.mubr.f32.gmra.mrb[0].mxu0 %v3033
        %v3035 = vpop.f32.mrb[0].mxu0
        %v3036 = vadd.f32 %v2811, %v3035
        %v3037 = vpop.f32.mrb[0].mxu0
        %3038 = vmatprep.mubr.f32.mxu0 0.0
        %v3039 = vand.u32 %v206, 4294901760
        %3040 = vmatmul.mubr.f32.gmra.mrb[0].mxu0 %v3039
        %v3041 = vpop.f32.mrb[0].mxu0
        %v3042 = vadd.f32 %v2819, %v3041
        %v3043 = vpop.f32.mrb[0].mxu0
        %3044 = vmatprep.mubr.f32.mxu0 0.0
        %v3045 = vand.u32 %v209, 4294901760
        %3046 = vmatmul.mubr.f32.gmra.mrb[0].mxu0 %v3045
        %v3047 = vpop.f32.mrb[0].mxu0
        %v3048 = vadd.f32 %v2827, %v3047
        %v3049 = vpop.f32.mrb[0].mxu0
        %3050 = vmatprep.mubr.f32.mxu0 0.0
        %v3051 = vand.u32 %v212, 4294901760
        %3052 = vmatmul.mubr.f32.gmra.mrb[0].mxu0 %v3051
        %v3053 = vpop.f32.mrb[0].mxu0
        %v3054 = vadd.f32 %v2835, %v3053
        %v3055 = vpop.f32.mrb[0].mxu0
        %3056 = vmatprep.mubr.f32.mxu0 0.0
        %v3057 = vand.u32 %v215, 4294901760
        %3058 = vmatmul.mubr.f32.gmra.mrb[0].mxu0 %v3057
        %v3059 = vpop.f32.mrb[0].mxu0
        %v3060 = vadd.f32 %v2843, %v3059
        %v3061 = vpop.f32.mrb[0].mxu0
        %3062 = vmatprep.mubr.f32.mxu0 0.0
        %v3063 = vand.u32 %v218, 4294901760
        %3064 = vmatmul.mubr.f32.gmra.mrb[0].mxu0 %v3063
        %v3065 = vpop.f32.mrb[0].mxu0
        %v3066 = vadd.f32 %v2851, %v3065
        %v3067 = vpop.f32.mrb[0].mxu0
        %3068 = vmatprep.mubr.f32.mxu0 0.0
        %v3069 = vand.u32 %v221, 4294901760
        %3070 = vmatmul.mubr.f32.gmra.mrb[0].mxu0 %v3069
        %v3071 = vpop.f32.mrb[0].mxu0
        %v3072 = vadd.f32 %v2859, %v3071
        %v3073 = vpop.f32.mrb[0].mxu0
        %3074 = vmatprep.mubr.f32.mxu0 0.0
        %v3075 = vand.u32 %v224, 4294901760
        %3076 = vmatmul.mubr.f32.gmra.mrb[0].mxu0 %v3075
        %v3077 = vpop.f32.mrb[0].mxu0
        %v3078 = vadd.f32 %v2867, %v3077
        %v3079 = vpop.f32.mrb[0].mxu0
        %3080 = vmatprep.mubr.f32.mxu0 0.0
        %v3081 = vand.u32 %v227, 4294901760
        %3082 = vmatmul.mubr.f32.gmra.mrb[0].mxu0 %v3081
        %v3083 = vpop.f32.mrb[0].mxu0
        %v3084 = vadd.f32 %v2875, %v3083
        %v3085 = vpop.f32.mrb[0].mxu0
        %3086 = vdwg.mxu0
        %3087 = vmatprep.subr.mxu0 0.0
        %v3088 = vand.u32 %v260, 4294901760
        %3089 = vmatpush1.msra.mxu0 %v3088
        %3090 = vmatprep.subr.mxu0 0.0
        %v3091 = vand.u32 %v261, 4294901760
        %3092 = vmatpush1.msra.mxu0 %v3091
        %3093 = vmatprep.subr.mxu0 0.0
        %v3094 = vand.u32 %v262, 4294901760
        %3095 = vmatpush1.msra.mxu0 %v3094
        %3096 = vmatprep.subr.mxu0 0.0
        %v3097 = vand.u32 %v263, 4294901760
        %3098 = vmatpush1.msra.mxu0 %v3097
        %3099 = vmatprep.subr.mxu0 0.0
        %v3100 = vand.u32 %v264, 4294901760
        %3101 = vmatpush1.msra.mxu0 %v3100
        %3102 = vmatprep.subr.mxu0 0.0
        %v3103 = vand.u32 %v265, 4294901760
        %3104 = vmatpush1.msra.mxu0 %v3103
        %3105 = vmatprep.subr.mxu0 0.0
        %v3106 = vand.u32 %v266, 4294901760
        %3107 = vmatpush1.msra.mxu0 %v3106
        %3108 = vmatprep.subr.mxu0 0.0
        %v3109 = vand.u32 %v267, 4294901760
        %3110 = vmatpush1.msra.mxu0 %v3109
        %3111 = vmatprep.subr.mxu0 0.0
        %v3112 = vand.u32 %v268, 4294901760
        %3113 = vmatpush1.msra.mxu0 %v3112
        %3114 = vmatprep.subr.mxu0 0.0
        %v3115 = vand.u32 %v269, 4294901760
        %3116 = vmatpush1.msra.mxu0 %v3115
        %3117 = vmatprep.subr.mxu0 0.0
        %v3118 = vand.u32 %v270, 4294901760
        %3119 = vmatpush1.msra.mxu0 %v3118
        %3120 = vmatprep.subr.mxu0 0.0
        %v3121 = vand.u32 %v271, 4294901760
        %3122 = vmatpush1.msra.mxu0 %v3121
        %3123 = vmatprep.subr.mxu0 0.0
        %v3124 = vand.u32 %v272, 4294901760
        %3125 = vmatpush1.msra.mxu0 %v3124
        %3126 = vmatprep.subr.mxu0 0.0
        %v3127 = vand.u32 %v273, 4294901760
        %3128 = vmatpush1.msra.mxu0 %v3127
        %3129 = vmatprep.subr.mxu0 0.0
        %v3130 = vand.u32 %v274, 4294901760
        %3131 = vmatpush1.msra.mxu0 %v3130
        %3132 = vmatprep.subr.mxu0 0.0
        %v3133 = vand.u32 %v275, 4294901760
        %3134 = vmatpush1.msra.mxu0 %v3133
        %3135 = vmatprep.subr.mxu0 0.0
        %3136 = vmatpush1.msra.mxu0 0.0
        %3137 = vmatprep.subr.mxu0 0.0
        %3138 = vmatpush1.msra.mxu0 0.0
        %3139 = vmatprep.subr.mxu0 0.0
        %3140 = vmatpush1.msra.mxu0 0.0
        %3141 = vmatprep.subr.mxu0 0.0
        %3142 = vmatpush1.msra.mxu0 0.0
        %3143 = vmatprep.subr.mxu0 0.0
        %3144 = vmatpush1.msra.mxu0 0.0
        %3145 = vmatprep.subr.mxu0 0.0
        %3146 = vmatpush1.msra.mxu0 0.0
        %3147 = vmatprep.subr.mxu0 0.0
        %3148 = vmatpush1.msra.mxu0 0.0
        %3149 = vmatprep.subr.mxu0 0.0
        %3150 = vmatpush1.msra.mxu0 0.0
        %3151 = vmatprep.subr.mxu0 0.0
        %3152 = vmatpush1.msra.mxu0 0.0
        %3153 = vmatprep.subr.mxu0 0.0
        %3154 = vmatpush1.msra.mxu0 0.0
        %3155 = vmatprep.subr.mxu0 0.0
        %3156 = vmatpush1.msra.mxu0 0.0
        %3157 = vmatprep.subr.mxu0 0.0
        %3158 = vmatpush1.msra.mxu0 0.0
        %3159 = vmatprep.subr.mxu0 0.0
        %3160 = vmatpush1.msra.mxu0 0.0
        %3161 = vmatprep.subr.mxu0 0.0
        %3162 = vmatpush1.msra.mxu0 0.0
        %3163 = vmatprep.subr.mxu0 0.0
        %3164 = vmatpush1.msra.mxu0 0.0
        %3165 = vmatprep.subr.mxu0 0.0
        %3166 = vmatpush1.msra.mxu0 0.0
        %3167 = vmatprep.mubr.f32.mxu0 0.0
        %v3168 = vand.u32 %v182, 4294901760
        %3169 = vmatmul.mubr.f32.gmra.mrb[0].mxu0 %v3168
        %v3170 = vpop.f32.mrb[0].mxu0
        %v3171 = vadd.f32 %v2994, %v3170
        %v3172 = vpop.f32.mrb[0].mxu0
        %3173 = vmatprep.mubr.f32.mxu0 0.0
        %v3174 = vand.u32 %v185, 4294901760
        %3175 = vmatmul.mubr.f32.gmra.mrb[0].mxu0 %v3174
        %v3176 = vpop.f32.mrb[0].mxu0
        %v3177 = vadd.f32 %v3000, %v3176
        %v3178 = vpop.f32.mrb[0].mxu0
        %3179 = vmatprep.mubr.f32.mxu0 0.0
        %v3180 = vand.u32 %v188, 4294901760
        %3181 = vmatmul.mubr.f32.gmra.mrb[0].mxu0 %v3180
        %v3182 = vpop.f32.mrb[0].mxu0
        %v3183 = vadd.f32 %v3006, %v3182
        %v3184 = vpop.f32.mrb[0].mxu0
        %3185 = vmatprep.mubr.f32.mxu0 0.0
        %v3186 = vand.u32 %v191, 4294901760
        %3187 = vmatmul.mubr.f32.gmra.mrb[0].mxu0 %v3186
        %v3188 = vpop.f32.mrb[0].mxu0
        %v3189 = vadd.f32 %v3012, %v3188
        %v3190 = vpop.f32.mrb[0].mxu0
        %3191 = vmatprep.mubr.f32.mxu0 0.0
        %v3192 = vand.u32 %v194, 4294901760
        %3193 = vmatmul.mubr.f32.gmra.mrb[0].mxu0 %v3192
        %v3194 = vpop.f32.mrb[0].mxu0
        %v3195 = vadd.f32 %v3018, %v3194
        %v3196 = vpop.f32.mrb[0].mxu0
        %3197 = vmatprep.mubr.f32.mxu0 0.0
        %v3198 = vand.u32 %v197, 4294901760
        %3199 = vmatmul.mubr.f32.gmra.mrb[0].mxu0 %v3198
        %v3200 = vpop.f32.mrb[0].mxu0
        %v3201 = vadd.f32 %v3024, %v3200
        %v3202 = vpop.f32.mrb[0].mxu0
        %3203 = vmatprep.mubr.f32.mxu0 0.0
        %v3204 = vand.u32 %v200, 4294901760
        %3205 = vmatmul.mubr.f32.gmra.mrb[0].mxu0 %v3204
        %v3206 = vpop.f32.mrb[0].mxu0
        %v3207 = vadd.f32 %v3030, %v3206
        %v3208 = vpop.f32.mrb[0].mxu0
        %3209 = vmatprep.mubr.f32.mxu0 0.0
        %v3210 = vand.u32 %v203, 4294901760
        %3211 = vmatmul.mubr.f32.gmra.mrb[0].mxu0 %v3210
        %v3212 = vpop.f32.mrb[0].mxu0
        %v3213 = vadd.f32 %v3036, %v3212
        %v3214 = vpop.f32.mrb[0].mxu0
        %3215 = vmatprep.mubr.f32.mxu0 0.0
        %v3216 = vand.u32 %v206, 4294901760
        %3217 = vmatmul.mubr.f32.gmra.mrb[0].mxu0 %v3216
        %v3218 = vpop.f32.mrb[0].mxu0
        %v3219 = vadd.f32 %v3042, %v3218
        %v3220 = vpop.f32.mrb[0].mxu0
        %3221 = vmatprep.mubr.f32.mxu0 0.0
        %v3222 = vand.u32 %v209, 4294901760
        %3223 = vmatmul.mubr.f32.gmra.mrb[0].mxu0 %v3222
        %v3224 = vpop.f32.mrb[0].mxu0
        %v3225 = vadd.f32 %v3048, %v3224
        %v3226 = vpop.f32.mrb[0].mxu0
        %3227 = vmatprep.mubr.f32.mxu0 0.0
        %v3228 = vand.u32 %v212, 4294901760
        %3229 = vmatmul.mubr.f32.gmra.mrb[0].mxu0 %v3228
        %v3230 = vpop.f32.mrb[0].mxu0
        %v3231 = vadd.f32 %v3054, %v3230
        %v3232 = vpop.f32.mrb[0].mxu0
        %3233 = vmatprep.mubr.f32.mxu0 0.0
        %v3234 = vand.u32 %v215, 4294901760
        %3235 = vmatmul.mubr.f32.gmra.mrb[0].mxu0 %v3234
        %v3236 = vpop.f32.mrb[0].mxu0
        %v3237 = vadd.f32 %v3060, %v3236
        %v3238 = vpop.f32.mrb[0].mxu0
        %3239 = vmatprep.mubr.f32.mxu0 0.0
        %v3240 = vand.u32 %v218, 4294901760
        %3241 = vmatmul.mubr.f32.gmra.mrb[0].mxu0 %v3240
        %v3242 = vpop.f32.mrb[0].mxu0
        %v3243 = vadd.f32 %v3066, %v3242
        %v3244 = vpop.f32.mrb[0].mxu0
        %3245 = vmatprep.mubr.f32.mxu0 0.0
        %v3246 = vand.u32 %v221, 4294901760
        %3247 = vmatmul.mubr.f32.gmra.mrb[0].mxu0 %v3246
        %v3248 = vpop.f32.mrb[0].mxu0
        %v3249 = vadd.f32 %v3072, %v3248
        %v3250 = vpop.f32.mrb[0].mxu0
        %3251 = vmatprep.mubr.f32.mxu0 0.0
        %v3252 = vand.u32 %v224, 4294901760
        %3253 = vmatmul.mubr.f32.gmra.mrb[0].mxu0 %v3252
        %v3254 = vpop.f32.mrb[0].mxu0
        %v3255 = vadd.f32 %v3078, %v3254
        %v3256 = vpop.f32.mrb[0].mxu0
        %3257 = vmatprep.mubr.f32.mxu0 0.0
        %v3258 = vand.u32 %v227, 4294901760
        %3259 = vmatmul.mubr.f32.gmra.mrb[0].mxu0 %v3258
        %v3260 = vpop.f32.mrb[0].mxu0
        %v3261 = vadd.f32 %v3084, %v3260
        %v3262 = vpop.f32.mrb[0].mxu0
        %3263 = vdwg.mxu0
        %3264 = vst [vmem:[%s177] sm:$0xff] %v3171
        %3265 = vst [vmem:[%s177 + $0x8] sm:$0xff] %v3177
        %3266 = vst [vmem:[%s177 + $0x10] sm:$0xff] %v3183
        %3267 = vst [vmem:[%s177 + $0x18] sm:$0xff] %v3189
        %3268 = vst [vmem:[%s177 + $0x20] sm:$0xff] %v3195
        %3269 = vst [vmem:[%s177 + $0x28] sm:$0xff] %v3201
        %3270 = vst [vmem:[%s177 + $0x30] sm:$0xff] %v3207
        %3271 = vst [vmem:[%s177 + $0x38] sm:$0xff] %v3213
        %3272 = vst [vmem:[%s177 + $0x40] sm:$0xff] %v3219
        %3273 = vst [vmem:[%s177 + $0x48] sm:$0xff] %v3225
        %3274 = vst [vmem:[%s177 + $0x50] sm:$0xff] %v3231
        %3275 = vst [vmem:[%s177 + $0x58] sm:$0xff] %v3237
        %3276 = vst [vmem:[%s177 + $0x60] sm:$0xff] %v3243
        %3277 = vst [vmem:[%s177 + $0x68] sm:$0xff] %v3249
        %3278 = vst [vmem:[%s177 + $0x70] sm:$0xff] %v3255
        %3279 = vst [vmem:[%s177 + $0x78] sm:$0xff] %v3261
        %s3280 = sand.u32 %s75, 1
        %s3281 = scalar_lea.sflag [#allocation4], %s3280
        %s3282 = sand.u32 %s75, 1
        %s3283 = smul.addr %s3282, 128
        %s3284 = scalar_lea.vmem [#allocation7], %s3283
        // Predicated region
        $region37: #{tpu_custom_call.1} parent=27 // pred_check
          %p3285 = pneg %p85
        $region38: #{tpu_custom_call.1} parent=27 // pred_check_branch
          %3287 = sbr.rel (%p3285) target = $region40
        $region39: #{tpu_custom_call.1} parent=27 // pred_region
          %s3288 = smul.u32 16, %s20
          %s3290 = ssub.s32 2048, 2048
          %3291 = vsyncadd %s3281, %s3290
          %s3292 = smul.addr %s3288, 128
          %s3293 = scalar_lea.hbm %s2, %s3292
          %s3294 = sshll.u32 %s3284, 4
          %s3295 = int_to_ptr.vmem [resolvable:$true] %s3294
          %3300 = dma.vmem_to_hbm [thread:$0]  %s3295, 2048, %s3293, %s3281, 128, 128, 8
        $region40: #{tpu_custom_call.1} parent=27 // pred_fallthru
          _
      $region28: #{tpu_custom_call.1} parent=5 // pred_fallthru
        _
      %p3301 = scmp.le.s32.totalorder 2, %s15
      // Predicated region
      $region41: #{tpu_custom_call.1} parent=5 // pred_check
        %p3302 = pneg %p3301
      $region42: #{tpu_custom_call.1} parent=5 // pred_check_branch
        %3304 = sbr.rel (%p3302) target = $region44
      $region43: #{tpu_custom_call.1} parent=5 // pred_region
        %s3305 = ssub.s32 %s15, 2
        // Predicated region
        $region45: #{tpu_custom_call.1} parent=43 // pred_check
          %p3306 = pneg %p91
        $region46: #{tpu_custom_call.1} parent=43 // pred_check_branch
          %3308 = sbr.rel (%p3306) target = $region48
        $region47: #{tpu_custom_call.1} parent=43 // pred_region
          %s3309 = sand.u32 %s76, 1
          %s3310 = scalar_lea.sflag [#allocation4], %s3309
          %s3311 = sand.u32 %s76, 1
          %s3312 = smul.addr %s3311, 128
          %s3313 = scalar_lea.vmem [#allocation7], %s3312
          %3314 = dma.done %s3310, 2048
        $region48: #{tpu_custom_call.1} parent=43 // pred_fallthru
          _
      $region44: #{tpu_custom_call.1} parent=5 // pred_fallthru
        _
    $region6: #{tpu_custom_call.1} parent=1 // loop_footer
      %s19 = sadd.s32 1, %s15
    $region7: #{tpu_custom_call.1} parent=1 // loop_footer_branch
      %14 = sbr.rel target = $region3
    $region8: #{tpu_custom_call.1} parent=1 // loop_exit
      _
    %3315 = vsyncpa [#allocation3], 1
    %s3316 = scalar_lea.sflag [#allocation3], 1
    %3317 = vsyncpa %s3316, 1
    %3318 = vsyncpa [#allocation6], 1
    %3319 = vsyncpa [#allocation4], 1
    %s3320 = scalar_lea.sflag [#allocation4], 1
    %3321 = vsyncpa %s3320, 1

</llo_original>
